<compile_context>
chip_gen: v7x
topology: tpu7x:2x2x1
jax: 0.10.0
libtpu: 0.0.40
codegen_flags: <defaults>
</compile_context>

<pallas_src>
import functools

import jax
import jax.numpy as jnp
from jax.experimental import pallas as pl
from jax.experimental.pallas import tpu as pltpu


# -----------------------------------------------------------------------------
# Fused per-image kernel. grid = (N,), one batch element per step.
# Layout convention: every activation is (C, H*Wp) with Wp = W + 2*pad; column
# j maps to pixel (y = j // Wp, x = j % Wp); columns with x >= W are "garbage"
# and are masked to zero before being written into a padded buffer.
# -----------------------------------------------------------------------------
def _retinanet_kernel(x_ref, w1_ref, w23_ref, bbb_ref, wlat_ref, blat_ref,
                      waspp_ref, baspp_ref, wheads_ref, bg_ref, bse_ref,
                      whead_ref, bhead_ref, mask_ref,
                      out_ref,
                      s_c1, s_c2, s_p,
                      *, H, W, pad, seg_ch, num_classes):
    f32 = jnp.float32
    bf16 = jnp.bfloat16
    Wp = W + 2 * pad
    WIDE = H * Wp                          # lane width of every activation
    TOP = pad * Wp + pad                   # flat index of first interior pixel
    ATOP = pl.cdiv(TOP, 128) * 128         # 128-aligned interior start
    SHIFT = ATOP - TOP                     # buffer index = padded flat + SHIFT
    SC = seg_ch
    NC = num_classes

    mask = mask_ref[...]                   # (1, WIDE) f32: 1 on valid columns

    # ---- zero ONLY the two border lane-tiles of each padded buffer ---------
    # (the interior [ATOP, ATOP+WIDE), incl. all side padding columns, is
    #  fully rewritten with masked values every step -> no stale-data hazard,
    #  safe under megacore grid sharding.)
    for s in (s_c1, s_c2, s_p):
        n_ch, buflen = s.shape
        s[:, :ATOP] = jnp.zeros((n_ch, ATOP), s.dtype)
        s[:, ATOP + WIDE:] = jnp.zeros((n_ch, buflen - ATOP - WIDE), s.dtype)

    def taps(src, dil, shift):
        """9 dilated-tap slabs (C, WIDE), each a single contiguous lane slice."""
        out = []
        for ky in range(3):
            for kx in range(3):
                off = shift + (pad + (ky - 1) * dil) * Wp + pad + (kx - 1) * dil
                out.append(src[:, off:off + WIDE])
        return out

    def conv3x3(src, dil, shift, w, b):
        """'same' 3x3 dilated conv as one deep im2col matmul (bf16 -> f32)."""
        col = jnp.concatenate(taps(src, dil, shift), axis=0)   # (9C, WIDE) bf16
        return jnp.dot(w, col, preferred_element_type=f32) + b

    # ---------------- DilatedFPN trunk (dilations 1, 2, 4) ------------------
    xw = x_ref[0]                                              # (CIN_PAD, Hp*Wp) bf16
    c1 = (jnp.maximum(conv3x3(xw, 1, 0, w1_ref[...], bbb_ref[0]), 0.0)
          * mask).astype(bf16)
    s_c1[:, ATOP:ATOP + WIDE] = c1                             # aligned, unmasked

    c2 = (jnp.maximum(conv3x3(s_c1, 2, SHIFT, w23_ref[0], bbb_ref[1]), 0.0)
          * mask).astype(bf16)
    s_c2[:, ATOP:ATOP + WIDE] = c2

    c3 = (jnp.maximum(conv3x3(s_c2, 4, SHIFT, w23_ref[1], bbb_ref[2]), 0.0)
          * mask).astype(bf16)

    # ---- fused 1x1 laterals: ONE block-diagonal matmul -> packed [p1|p2|p3] -
    c_all = jnp.concatenate([c1, c2, c3], axis=0)              # (3*BB, WIDE) bf16
    p_all = (jnp.dot(wlat_ref[...], c_all, preferred_element_type=f32)
             + blat_ref[...])
    s_p[:, ATOP:ATOP + WIDE] = (p_all * mask).astype(bf16)     # (3*FP, WIDE)

    # -------- ASPP-lite branch: 3 dilations merged into ONE long-K matmul ----
    slabs = []
    for dil in (1, 2, 4):
        slabs.extend(taps(s_p, dil, SHIFT))
    col = jnp.concatenate(slabs, axis=0)                       # (3*9*3*FP, WIDE)
    feat = jnp.maximum(
        jnp.dot(waspp_ref[...], col, preferred_element_type=f32)
        + baspp_ref[...], 0.0)                                 # (SC, WIDE) f32

    # -------- context-encoding head: GAP -> channel gate + class logits ------
    pooled = jnp.sum(feat * mask, axis=1, keepdims=True) * (1.0 / (H * W))
    z = jnp.dot(wheads_ref[...],
                jnp.broadcast_to(pooled.astype(bf16), (SC, 128)),
                preferred_element_type=f32)                    # (SC+NC, 128)
    gate = jax.nn.sigmoid(z[:SC, 0:1] + bg_ref[...])           # (SC, 1)
    se = z[SC:SC + NC, 0:1] + bse_ref[...]                     # (NC, 1)

    # -------- gated 1x1 seg head; pack [seg | se] into ONE lane-dense store --
    fg = (feat * gate).astype(bf16)                            # (SC, WIDE)
    seg = (jnp.dot(whead_ref[...], fg, preferred_element_type=f32)
           + bhead_ref[...])                                   # (NC, WIDE)
    out_ref[0] = jnp.concatenate(
        [seg, jnp.broadcast_to(se, (NC, 128))], axis=1).astype(out_ref.dtype)


def _bcast_spec(shape):
    """Full-array block, broadcast (constant block index) across the grid."""
    rank = len(shape)
    return pl.BlockSpec(shape, lambda *args: (0,) * rank)
    # TODO(synk): add pipeline_mode=pl.Buffered(1) for these constant blocks to
    #             halve their VMEM footprint once tiles grow (v7x headroom).


# -----------------------------------------------------------------------------
# Pure-JAX f32 reference of the same synthetic architecture (for validation).
# -----------------------------------------------------------------------------
def _reference_forward(params, x):
    def conv(inp, w, b, dil):
        out = jax.lax.conv_general_dilated(
            inp, w, window_strides=(1, 1), padding=[(dil, dil), (dil, dil)],
            rhs_dilation=(dil, dil), dimension_numbers=('NCHW', 'HWIO', 'NCHW'))
        return out + b[None, :, None, None]

    c1 = jax.nn.relu(conv(x, params['c1']['w'], params['c1']['b'], 1))
    c2 = jax.nn.relu(conv(c1, params['c2']['w'], params['c2']['b'], 2))
    c3 = jax.nn.relu(conv(c2, params['c3']['w'], params['c3']['b'], 4))

    def lat(c, q):
        return (jnp.einsum('nchw,cf->nfhw', c, q['w'][0, 0])
                + q['b'][None, :, None, None])

    cat = jnp.concatenate(
        [lat(c1, params['l1']), lat(c2, params['l2']), lat(c3, params['l3'])],
        axis=1)
    a = (conv(cat, params['a1']['w'], params['a1']['b'], 1)
         + conv(cat, params['a2']['w'], params['a2']['b'], 2)
         + conv(cat, params['a3']['w'], params['a3']['b'], 4))
    feat = jax.nn.relu(a)
    pooled = feat.mean(axis=(2, 3))                             # (N, SC)
    se = pooled @ params['wse'] + params['bse']
    gate = jax.nn.sigmoid(pooled @ params['wg'] + params['bg'])
    fg = feat * gate[:, :, None, None]
    seg = (jnp.einsum('nchw,ck->nkhw', fg, params['head_w'])
           + params['head_b'][None, :, None, None])
    return se, seg


# -----------------------------------------------------------------------------
# Model: parameter construction + single-pallas_call forward.
# -----------------------------------------------------------------------------
class RetinaNetPallas:
    num_anchors = 3  # parity with the reference module

    def __init__(self, num_classes=2, input_size=(16, 16), in_ch=3,
                 backbone_ch=16, fpn_ch=16, seg_ch=16, seed=0):
        self.num_classes = num_classes
        self.input_size = input_size
        self.in_ch = in_ch
        self.backbone_ch = backbone_ch
        self.fpn_ch = fpn_ch
        self.seg_ch = seg_ch
        self._cin_pad = max(16, -(-in_ch // 16) * 16)   # pad Cin to bf16 tile
        key = jax.random.PRNGKey(seed)

        def conv_p(k, ksz, cin, cout):
            kw, kb = jax.random.split(k)
            return {'w': 0.05 * jax.random.normal(kw, (ksz, ksz, cin, cout),
                                                  jnp.float32),
                    'b': 0.02 * jax.random.normal(kb, (cout,), jnp.float32)}

        keys = jax.random.split(key, 12)
        p = {}
        # DilatedFPN trunk (dilations 1/2/4) + 1x1 laterals
        p['c1'] = conv_p(keys[0], 3, in_ch, backbone_ch)
        p['c2'] = conv_p(keys[1], 3, backbone_ch, backbone_ch)
        p['c3'] = conv_p(keys[2], 3, backbone_ch, backbone_ch)
        p['l1'] = conv_p(keys[3], 1, backbone_ch, fpn_ch)
        p['l2'] = conv_p(keys[4], 1, backbone_ch, fpn_ch)
        p['l3'] = conv_p(keys[5], 1, backbone_ch, fpn_ch)
        # SemanticSeg Deeplab / context-encoding branch (ASPP-lite fusion)
        cat_ch = 3 * fpn_ch
        p['a1'] = conv_p(keys[6], 3, cat_ch, seg_ch)
        p['a2'] = conv_p(keys[7], 3, cat_ch, seg_ch)
        p['a3'] = conv_p(keys[8], 3, cat_ch, seg_ch)
        # context-encoding head (class-presence logits + channel gate)
        p['wse'] = 0.05 * jax.random.normal(keys[9], (seg_ch, num_classes),
                                            jnp.float32)
        p['bse'] = 0.02 * jax.random.normal(keys[9], (num_classes,), jnp.float32)
        p['wg'] = 0.05 * jax.random.normal(keys[10], (seg_ch, seg_ch),
                                           jnp.float32)
        p['bg'] = 0.02 * jax.random.normal(keys[10], (seg_ch,), jnp.float32)
        # gated 1x1 segmentation head
        p['head_w'] = 0.05 * jax.random.normal(keys[11], (seg_ch, num_classes),
                                               jnp.float32)
        p['head_b'] = 0.02 * jax.random.normal(keys[11], (num_classes,),
                                               jnp.float32)
        self.params = p
        self._packed = self._pack_params()

    # --- one-time weight packing into channel-major (Cout, K) 2-D layouts ----
    def _pack_params(self):
        p = self.params
        bf16 = jnp.bfloat16
        BB, FP = self.backbone_ch, self.fpn_ch

        def w2d(w, cin_pad=None):
            # (3,3,Cin,Cout) -> (Cout, 9*Cin): K rows ordered (ky, kx, cin),
            # matching the in-kernel tap loop + packed-channel order.
            if cin_pad is not None and cin_pad > w.shape[2]:
                w = jnp.pad(w, ((0, 0), (0, 0), (0, cin_pad - w.shape[2]), (0, 0)))
            k, _, cin, cout = w.shape
            return w.transpose(3, 0, 1, 2).reshape(cout, k * k * cin)

        zfb = jnp.zeros((FP, BB), jnp.float32)
        l1t = p['l1']['w'][0, 0].T
        l2t = p['l2']['w'][0, 0].T
        l3t = p['l3']['w'][0, 0].T
        w_lat = jnp.block([[l1t, zfb, zfb], [zfb, l2t, zfb], [zfb, zfb, l3t]])

        return dict(
            w1=w2d(p['c1']['w'], self._cin_pad).astype(bf16),        # (BB, 144)
            w23=jnp.stack([w2d(p['c2']['w']),
                           w2d(p['c3']['w'])]).astype(bf16),         # (2,BB,144)
            b_bb=jnp.stack([p['c1']['b'], p['c2']['b'],
                            p['c3']['b']])[:, :, None],              # (3,BB,1)
            w_lat=w_lat.astype(bf16),                                # (3FP,3BB)
            b_lat=jnp.concatenate([p['l1']['b'], p['l2']['b'],
                                   p['l3']['b']])[:, None],          # (3FP,1)
            # three dilation branches stacked along K -> one (SC, 1296) weight
            w_aspp=jnp.concatenate([w2d(p['a1']['w']), w2d(p['a2']['w']),
                                    w2d(p['a3']['w'])], axis=1).astype(bf16),
            b_aspp=(p['a1']['b'] + p['a2']['b'] + p['a3']['b'])[:, None],
            # gate + se heads share one matmul: rows [0:SC]=wg.T, [SC:]=wse.T
            w_heads=jnp.concatenate([p['wg'].T, p['wse'].T],
                                    axis=0).astype(bf16),            # (SC+NC,SC)
            b_g=p['bg'][:, None],
            b_se=p['bse'][:, None],
            w_head=p['head_w'].T.astype(bf16),                       # (NC, SC)
            b_head=p['head_b'][:, None],
        )

    def __call__(self, x_nchw):
        N, Cin, H, W = x_nchw.shape
        pad = 4                                  # >= max dilation in the net
        Wp = W + 2 * pad
        Hp = H + 2 * pad
        WIDE = H * Wp
        TOP = pad * Wp + pad
        ATOP = pl.cdiv(TOP, 128) * 128
        BUFLEN = 2 * ATOP + WIDE                 # aligned interior + borders
        NC, BB, FP, SC = (self.num_classes, self.backbone_ch,
                          self.fpn_ch, self.seg_ch)
        CIN_PAD = self._cin_pad

        # One-time tiny input prep: zero-pad channels + spatial border, then
        # flatten to the wide channel-major layout (N, CIN_PAD, Hp*Wp), bf16.
        xp = jnp.pad(x_nchw, ((0, 0), (0, CIN_PAD - Cin), (pad, pad), (pad, pad)))
        x_wide = xp.reshape(N, CIN_PAD, Hp * Wp).astype(jnp.bfloat16)

        # valid-column mask (x < W) in the wide layout
        mask = ((jnp.arange(WIDE) % Wp) < W).astype(jnp.float32)[None, :]

        pk = self._packed
        operands = (x_wide, pk['w1'], pk['w23'], pk['b_bb'], pk['w_lat'],
                    pk['b_lat'], pk['w_aspp'], pk['b_aspp'], pk['w_heads'],
                    pk['b_g'], pk['b_se'], pk['w_head'], pk['b_head'], mask)

        in_specs = [pl.BlockSpec((1, CIN_PAD, Hp * Wp), lambda n: (n, 0, 0))]
        in_specs += [_bcast_spec(tuple(op.shape)) for op in operands[1:]]

        kernel = functools.partial(_retinanet_kernel, H=H, W=W, pad=pad,
                                   seg_ch=SC, num_classes=NC)
        out = pl.pallas_call(
            kernel,
            out_shape=jax.ShapeDtypeStruct((N, NC, WIDE + 128), jnp.float32),
            grid_spec=pltpu.PrefetchScalarGridSpec(
                num_scalar_prefetch=0,
                grid=(N,),
                in_specs=in_specs,
                out_specs=pl.BlockSpec((1, NC, WIDE + 128), lambda n: (n, 0, 0)),
                scratch_shapes=[
                    pltpu.VMEM((BB, BUFLEN), jnp.bfloat16),       # padded c1
                    pltpu.VMEM((BB, BUFLEN), jnp.bfloat16),       # padded c2
                    pltpu.VMEM((3 * FP, BUFLEN), jnp.bfloat16),   # packed p1|p2|p3
                ]),
            compiler_params=pltpu.CompilerParams(
                dimension_semantics=("parallel",)),   # batch across v7x's 2 TCs
        )(*operands)

        # free slices: se logits live in lanes [WIDE:], seg map in lanes [:WIDE]
        se = out[:, :, WIDE]                                   # (N, NC)
        seg = out[:, :, :WIDE].reshape(N, NC, H, Wp)[..., :W]  # (N, NC, H, W)
        return se, seg


if __name__ == "__main__":
    import numpy as np

    key = jax.random.PRNGKey(0)
    x = jax.random.normal(key, (2, 3, 16, 16), jnp.float32)   # NCHW input

    model = RetinaNetPallas(num_classes=2, input_size=(16, 16), seed=0)
    fwd = jax.jit(model.__call__)
    se, sem_seg_feat = fwd(x)
    jax.block_until_ready((se, sem_seg_feat))

    assert se.shape == (2, 2), se.shape
    assert sem_seg_feat.shape == (2, 2, 16, 16), sem_seg_feat.shape
    assert bool(jnp.all(jnp.isfinite(se)))
    assert bool(jnp.all(jnp.isfinite(sem_seg_feat)))

    # pure-JAX f32 reference of the same synthetic architecture (bf16 tolerance)
    se_ref, seg_ref = jax.jit(functools.partial(_reference_forward,
                                                model.params))(x)
    np.testing.assert_allclose(np.asarray(se), np.asarray(se_ref),
                               rtol=5e-2, atol=3e-2)
    np.testing.assert_allclose(np.asarray(sem_seg_feat), np.asarray(seg_ref),
                               rtol=5e-2, atol=3e-2)
    print("KERNEL_OK")
</pallas_src>

<mosaic_0001>
module attributes {stable_mosaic.version = 11 : i64} {
  func.func @_retinanet_kernel(%arg0: i32, %arg1: memref<1x16x576xbf16, #tpu.memory_space<vmem>>, %arg2: memref<16x144xbf16, #tpu.memory_space<vmem>>, %arg3: memref<2x16x144xbf16, #tpu.memory_space<vmem>>, %arg4: memref<3x16x1xf32, #tpu.memory_space<vmem>>, %arg5: memref<48x48xbf16, #tpu.memory_space<vmem>>, %arg6: memref<48x1xf32, #tpu.memory_space<vmem>>, %arg7: memref<16x1296xbf16, #tpu.memory_space<vmem>>, %arg8: memref<16x1xf32, #tpu.memory_space<vmem>>, %arg9: memref<18x16xbf16, #tpu.memory_space<vmem>>, %arg10: memref<16x1xf32, #tpu.memory_space<vmem>>, %arg11: memref<2x1xf32, #tpu.memory_space<vmem>>, %arg12: memref<2x16xbf16, #tpu.memory_space<vmem>>, %arg13: memref<2x1xf32, #tpu.memory_space<vmem>>, %arg14: memref<1x384xf32, #tpu.memory_space<vmem>>, %arg15: memref<1x2x512xf32, #tpu.memory_space<vmem>>, %arg16: memref<16x640xbf16, #tpu.memory_space<vmem>>, %arg17: memref<16x640xbf16, #tpu.memory_space<vmem>>, %arg18: memref<48x640xbf16, #tpu.memory_space<vmem>>) attributes {dimension_semantics = [#tpu.dimension_semantics<parallel>], iteration_bounds = array<i64: 2>, scalar_prefetch = 0 : i64, scratch_operands = 3 : i64, tpu.core_type = #tpu.core_type<tc>, window_params = [{transform_indices = @transform_0, window_bounds = array<i64: 1, 16, 576>}, {pipeline_mode = #tpu.pipeline_mode<synchronous>, transform_indices = @transform_1, window_bounds = array<i64: 16, 144>}, {pipeline_mode = #tpu.pipeline_mode<synchronous>, transform_indices = @transform_2, window_bounds = array<i64: 2, 16, 144>}, {pipeline_mode = #tpu.pipeline_mode<synchronous>, transform_indices = @transform_3, window_bounds = array<i64: 3, 16, 1>}, {pipeline_mode = #tpu.pipeline_mode<synchronous>, transform_indices = @transform_4, window_bounds = array<i64: 48, 48>}, {pipeline_mode = #tpu.pipeline_mode<synchronous>, transform_indices = @transform_5, window_bounds = array<i64: 48, 1>}, {pipeline_mode = #tpu.pipeline_mode<synchronous>, transform_indices = @transform_6, window_bounds = array<i64: 16, 1296>}, {pipeline_mode = #tpu.pipeline_mode<synchronous>, transform_indices = @transform_7, window_bounds = array<i64: 16, 1>}, {pipeline_mode = #tpu.pipeline_mode<synchronous>, transform_indices = @transform_8, window_bounds = array<i64: 18, 16>}, {pipeline_mode = #tpu.pipeline_mode<synchronous>, transform_indices = @transform_9, window_bounds = array<i64: 16, 1>}, {pipeline_mode = #tpu.pipeline_mode<synchronous>, transform_indices = @transform_10, window_bounds = array<i64: 2, 1>}, {pipeline_mode = #tpu.pipeline_mode<synchronous>, transform_indices = @transform_11, window_bounds = array<i64: 2, 16>}, {pipeline_mode = #tpu.pipeline_mode<synchronous>, transform_indices = @transform_12, window_bounds = array<i64: 2, 1>}, {pipeline_mode = #tpu.pipeline_mode<synchronous>, transform_indices = @transform_13, window_bounds = array<i64: 1, 384>}, {transform_indices = @transform_14, window_bounds = array<i64: 1, 2, 512>}]} {
    %c0 = arith.constant 0 : index
    %c0_0 = arith.constant 0 : index
    %0 = vector.load %arg14[%c0, %c0_0] : memref<1x384xf32, #tpu.memory_space<vmem>>, vector<1x384xf32>
    %cst = arith.constant 0.000000e+00 : bf16
    %1 = vector.broadcast %cst : bf16 to vector<16x128xbf16>
    %c0_1 = arith.constant 0 : index
    %c0_2 = arith.constant 0 : index
    %2 = vector.load %arg16[%c0_1, %c0_2] : memref<16x640xbf16, #tpu.memory_space<vmem>>, vector<16x128xbf16>
    tpu.vector_store %arg16[%c0_1, %c0_2], %1 {strides = array<i32>} : memref<16x640xbf16, #tpu.memory_space<vmem>>, vector<16x128xbf16>,
    %cst_3 = arith.constant 0.000000e+00 : bf16
    %3 = vector.broadcast %cst_3 : bf16 to vector<16x128xbf16>
    %c0_4 = arith.constant 0 : index
    %c512 = arith.constant 512 : index
    %4 = vector.load %arg16[%c0_4, %c512] : memref<16x640xbf16, #tpu.memory_space<vmem>>, vector<16x128xbf16>
    tpu.vector_store %arg16[%c0_4, %c512], %3 {strides = array<i32>} : memref<16x640xbf16, #tpu.memory_space<vmem>>, vector<16x128xbf16>,
    %cst_5 = arith.constant 0.000000e+00 : bf16
    %5 = vector.broadcast %cst_5 : bf16 to vector<16x128xbf16>
    %c0_6 = arith.constant 0 : index
    %c0_7 = arith.constant 0 : index
    %6 = vector.load %arg17[%c0_6, %c0_7] : memref<16x640xbf16, #tpu.memory_space<vmem>>, vector<16x128xbf16>
    tpu.vector_store %arg17[%c0_6, %c0_7], %5 {strides = array<i32>} : memref<16x640xbf16, #tpu.memory_space<vmem>>, vector<16x128xbf16>,
    %cst_8 = arith.constant 0.000000e+00 : bf16
    %7 = vector.broadcast %cst_8 : bf16 to vector<16x128xbf16>
    %c0_9 = arith.constant 0 : index
    %c512_10 = arith.constant 512 : index
    %8 = vector.load %arg17[%c0_9, %c512_10] : memref<16x640xbf16, #tpu.memory_space<vmem>>, vector<16x128xbf16>
    tpu.vector_store %arg17[%c0_9, %c512_10], %7 {strides = array<i32>} : memref<16x640xbf16, #tpu.memory_space<vmem>>, vector<16x128xbf16>,
    %cst_11 = arith.constant 0.000000e+00 : bf16
    %9 = vector.broadcast %cst_11 : bf16 to vector<48x128xbf16>
    %c0_12 = arith.constant 0 : index
    %c0_13 = arith.constant 0 : index
    %10 = vector.load %arg18[%c0_12, %c0_13] : memref<48x640xbf16, #tpu.memory_space<vmem>>, vector<48x128xbf16>
    tpu.vector_store %arg18[%c0_12, %c0_13], %9 {strides = array<i32>} : memref<48x640xbf16, #tpu.memory_space<vmem>>, vector<48x128xbf16>,
    %cst_14 = arith.constant 0.000000e+00 : bf16
    %11 = vector.broadcast %cst_14 : bf16 to vector<48x128xbf16>
    %c0_15 = arith.constant 0 : index
    %c512_16 = arith.constant 512 : index
    %12 = vector.load %arg18[%c0_15, %c512_16] : memref<48x640xbf16, #tpu.memory_space<vmem>>, vector<48x128xbf16>
    tpu.vector_store %arg18[%c0_15, %c512_16], %11 {strides = array<i32>} : memref<48x640xbf16, #tpu.memory_space<vmem>>, vector<48x128xbf16>,
    %c0_17 = arith.constant 0 : index
    %c0_18 = arith.constant 0 : index
    %c0_19 = arith.constant 0 : index
    %13 = vector.load %arg1[%c0_17, %c0_18, %c0_19] : memref<1x16x576xbf16, #tpu.memory_space<vmem>>, vector<1x16x576xbf16>
    %14 = vector.shape_cast %13 : vector<1x16x576xbf16> to vector<16x576xbf16>
    %c0_20 = arith.constant 0 : index
    %c0_21 = arith.constant 0 : index
    %15 = vector.load %arg2[%c0_20, %c0_21] : memref<16x144xbf16, #tpu.memory_space<vmem>>, vector<16x144xbf16>
    %c0_22 = arith.constant 0 : index
    %c0_23 = arith.constant 0 : index
    %c0_24 = arith.constant 0 : index
    %16 = vector.load %arg4[%c0_22, %c0_23, %c0_24] : memref<3x16x1xf32, #tpu.memory_space<vmem>>, vector<1x16x1xf32>
    %17 = vector.shape_cast %16 : vector<1x16x1xf32> to vector<16x1xf32>
    %18 = vector.extract_strided_slice %14 {offsets = [0, 75], sizes = [16, 384], strides = [1, 1]} : vector<16x576xbf16> to vector<16x384xbf16>
    %19 = vector.extract_strided_slice %14 {offsets = [0, 76], sizes = [16, 384], strides = [1, 1]} : vector<16x576xbf16> to vector<16x384xbf16>
    %20 = vector.extract_strided_slice %14 {offsets = [0, 77], sizes = [16, 384], strides = [1, 1]} : vector<16x576xbf16> to vector<16x384xbf16>
    %21 = vector.extract_strided_slice %14 {offsets = [0, 99], sizes = [16, 384], strides = [1, 1]} : vector<16x576xbf16> to vector<16x384xbf16>
    %22 = vector.extract_strided_slice %14 {offsets = [0, 100], sizes = [16, 384], strides = [1, 1]} : vector<16x576xbf16> to vector<16x384xbf16>
    %23 = vector.extract_strided_slice %14 {offsets = [0, 101], sizes = [16, 384], strides = [1, 1]} : vector<16x576xbf16> to vector<16x384xbf16>
    %24 = vector.extract_strided_slice %14 {offsets = [0, 123], sizes = [16, 384], strides = [1, 1]} : vector<16x576xbf16> to vector<16x384xbf16>
    %25 = vector.extract_strided_slice %14 {offsets = [0, 124], sizes = [16, 384], strides = [1, 1]} : vector<16x576xbf16> to vector<16x384xbf16>
    %26 = vector.extract_strided_slice %14 {offsets = [0, 125], sizes = [16, 384], strides = [1, 1]} : vector<16x576xbf16> to vector<16x384xbf16>
    %27 = tpu.concatenate %18, %19, %20, %21, %22, %23, %24, %25, %26 in 0 : vector<16x384xbf16>, vector<16x384xbf16>, vector<16x384xbf16>, vector<16x384xbf16>, vector<16x384xbf16>, vector<16x384xbf16>, vector<16x384xbf16>, vector<16x384xbf16>, vector<16x384xbf16> -> vector<144x384xbf16>
    %cst_25 = arith.constant dense<0.000000e+00> : vector<16x384xf32>
    %28 = tpu.matmul %15, %27, %cst_25 {dimension_numbers = #tpu.dot_dimension_numbers<[1], [0], [0], [1], [0, 0, 1, 1], [], []>} : vector<16x144xbf16>, vector<144x384xbf16>, vector<16x384xf32> -> vector<16x384xf32>
    %29 = vector.broadcast %17 : vector<16x1xf32> to vector<16x384xf32>
    %30 = arith.addf %28, %29 : vector<16x384xf32>
    %cst_26 = arith.constant 0.000000e+00 : f32
    %31 = vector.broadcast %cst_26 : f32 to vector<16x384xf32>
    %32 = arith.maximumf %30, %31 : vector<16x384xf32>
    %33 = vector.broadcast %0 : vector<1x384xf32> to vector<16x384xf32>
    %34 = arith.mulf %32, %33 : vector<16x384xf32>
    %35 = arith.truncf %34 : vector<16x384xf32> to vector<16x384xbf16>
    %c0_27 = arith.constant 0 : index
    %c128 = arith.constant 128 : index
    %36 = vector.load %arg16[%c0_27, %c128] : memref<16x640xbf16, #tpu.memory_space<vmem>>, vector<16x384xbf16>
    tpu.vector_store %arg16[%c0_27, %c128], %35 {strides = array<i32>} : memref<16x640xbf16, #tpu.memory_space<vmem>>, vector<16x384xbf16>,
    %c0_28 = arith.constant 0 : index
    %c0_29 = arith.constant 0 : index
    %c0_30 = arith.constant 0 : index
    %37 = vector.load %arg3[%c0_28, %c0_29, %c0_30] : memref<2x16x144xbf16, #tpu.memory_space<vmem>>, vector<1x16x144xbf16>
    %38 = vector.shape_cast %37 : vector<1x16x144xbf16> to vector<16x144xbf16>
    %c1 = arith.constant 1 : index
    %c0_31 = arith.constant 0 : index
    %c0_32 = arith.constant 0 : index
    %39 = vector.load %arg4[%c1, %c0_31, %c0_32] : memref<3x16x1xf32, #tpu.memory_space<vmem>>, vector<1x16x1xf32>
    %40 = vector.shape_cast %39 : vector<1x16x1xf32> to vector<16x1xf32>
    %c0_33 = arith.constant 0 : index
    %c78 = arith.constant 78 : index
    %41 = vector.load %arg16[%c0_33, %c78] : memref<16x640xbf16, #tpu.memory_space<vmem>>, vector<16x384xbf16>
    %c0_34 = arith.constant 0 : index
    %c80 = arith.constant 80 : index
    %42 = vector.load %arg16[%c0_34, %c80] : memref<16x640xbf16, #tpu.memory_space<vmem>>, vector<16x384xbf16>
    %c0_35 = arith.constant 0 : index
    %c82 = arith.constant 82 : index
    %43 = vector.load %arg16[%c0_35, %c82] : memref<16x640xbf16, #tpu.memory_space<vmem>>, vector<16x384xbf16>
    %c0_36 = arith.constant 0 : index
    %c126 = arith.constant 126 : index
    %44 = vector.load %arg16[%c0_36, %c126] : memref<16x640xbf16, #tpu.memory_space<vmem>>, vector<16x384xbf16>
    %c0_37 = arith.constant 0 : index
    %c128_38 = arith.constant 128 : index
    %45 = vector.load %arg16[%c0_37, %c128_38] : memref<16x640xbf16, #tpu.memory_space<vmem>>, vector<16x384xbf16>
    %c0_39 = arith.constant 0 : index
    %c130 = arith.constant 130 : index
    %46 = vector.load %arg16[%c0_39, %c130] : memref<16x640xbf16, #tpu.memory_space<vmem>>, vector<16x384xbf16>
    %c0_40 = arith.constant 0 : index
    %c174 = arith.constant 174 : index
    %47 = vector.load %arg16[%c0_40, %c174] : memref<16x640xbf16, #tpu.memory_space<vmem>>, vector<16x384xbf16>
    %c0_41 = arith.constant 0 : index
    %c176 = arith.constant 176 : index
    %48 = vector.load %arg16[%c0_41, %c176] : memref<16x640xbf16, #tpu.memory_space<vmem>>, vector<16x384xbf16>
    %c0_42 = arith.constant 0 : index
    %c178 = arith.constant 178 : index
    %49 = vector.load %arg16[%c0_42, %c178] : memref<16x640xbf16, #tpu.memory_space<vmem>>, vector<16x384xbf16>
    %50 = tpu.concatenate %41, %42, %43, %44, %45, %46, %47, %48, %49 in 0 : vector<16x384xbf16>, vector<16x384xbf16>, vector<16x384xbf16>, vector<16x384xbf16>, vector<16x384xbf16>, vector<16x384xbf16>, vector<16x384xbf16>, vector<16x384xbf16>, vector<16x384xbf16> -> vector<144x384xbf16>
    %cst_43 = arith.constant dense<0.000000e+00> : vector<16x384xf32>
    %51 = tpu.matmul %38, %50, %cst_43 {dimension_numbers = #tpu.dot_dimension_numbers<[1], [0], [0], [1], [0, 0, 1, 1], [], []>} : vector<16x144xbf16>, vector<144x384xbf16>, vector<16x384xf32> -> vector<16x384xf32>
    %52 = vector.broadcast %40 : vector<16x1xf32> to vector<16x384xf32>
    %53 = arith.addf %51, %52 : vector<16x384xf32>
    %cst_44 = arith.constant 0.000000e+00 : f32
    %54 = vector.broadcast %cst_44 : f32 to vector<16x384xf32>
    %55 = arith.maximumf %53, %54 : vector<16x384xf32>
    %56 = vector.broadcast %0 : vector<1x384xf32> to vector<16x384xf32>
    %57 = arith.mulf %55, %56 : vector<16x384xf32>
    %58 = arith.truncf %57 : vector<16x384xf32> to vector<16x384xbf16>
    %c0_45 = arith.constant 0 : index
    %c128_46 = arith.constant 128 : index
    %59 = vector.load %arg17[%c0_45, %c128_46] : memref<16x640xbf16, #tpu.memory_space<vmem>>, vector<16x384xbf16>
    tpu.vector_store %arg17[%c0_45, %c128_46], %58 {strides = array<i32>} : memref<16x640xbf16, #tpu.memory_space<vmem>>, vector<16x384xbf16>,
    %c1_47 = arith.constant 1 : index
    %c0_48 = arith.constant 0 : index
    %c0_49 = arith.constant 0 : index
    %60 = vector.load %arg3[%c1_47, %c0_48, %c0_49] : memref<2x16x144xbf16, #tpu.memory_space<vmem>>, vector<1x16x144xbf16>
    %61 = vector.shape_cast %60 : vector<1x16x144xbf16> to vector<16x144xbf16>
    %c2 = arith.constant 2 : index
    %c0_50 = arith.constant 0 : index
    %c0_51 = arith.constant 0 : index
    %62 = vector.load %arg4[%c2, %c0_50, %c0_51] : memref<3x16x1xf32, #tpu.memory_space<vmem>>, vector<1x16x1xf32>
    %63 = vector.shape_cast %62 : vector<1x16x1xf32> to vector<16x1xf32>
    %c0_52 = arith.constant 0 : index
    %c28 = arith.constant 28 : index
    %64 = vector.load %arg17[%c0_52, %c28] : memref<16x640xbf16, #tpu.memory_space<vmem>>, vector<16x384xbf16>
    %c0_53 = arith.constant 0 : index
    %c32 = arith.constant 32 : index
    %65 = vector.load %arg17[%c0_53, %c32] : memref<16x640xbf16, #tpu.memory_space<vmem>>, vector<16x384xbf16>
    %c0_54 = arith.constant 0 : index
    %c36 = arith.constant 36 : index
    %66 = vector.load %arg17[%c0_54, %c36] : memref<16x640xbf16, #tpu.memory_space<vmem>>, vector<16x384xbf16>
    %c0_55 = arith.constant 0 : index
    %c124 = arith.constant 124 : index
    %67 = vector.load %arg17[%c0_55, %c124] : memref<16x640xbf16, #tpu.memory_space<vmem>>, vector<16x384xbf16>
    %c0_56 = arith.constant 0 : index
    %c128_57 = arith.constant 128 : index
    %68 = vector.load %arg17[%c0_56, %c128_57] : memref<16x640xbf16, #tpu.memory_space<vmem>>, vector<16x384xbf16>
    %c0_58 = arith.constant 0 : index
    %c132 = arith.constant 132 : index
    %69 = vector.load %arg17[%c0_58, %c132] : memref<16x640xbf16, #tpu.memory_space<vmem>>, vector<16x384xbf16>
    %c0_59 = arith.constant 0 : index
    %c220 = arith.constant 220 : index
    %70 = vector.load %arg17[%c0_59, %c220] : memref<16x640xbf16, #tpu.memory_space<vmem>>, vector<16x384xbf16>
    %c0_60 = arith.constant 0 : index
    %c224 = arith.constant 224 : index
    %71 = vector.load %arg17[%c0_60, %c224] : memref<16x640xbf16, #tpu.memory_space<vmem>>, vector<16x384xbf16>
    %c0_61 = arith.constant 0 : index
    %c228 = arith.constant 228 : index
    %72 = vector.load %arg17[%c0_61, %c228] : memref<16x640xbf16, #tpu.memory_space<vmem>>, vector<16x384xbf16>
    %73 = tpu.concatenate %64, %65, %66, %67, %68, %69, %70, %71, %72 in 0 : vector<16x384xbf16>, vector<16x384xbf16>, vector<16x384xbf16>, vector<16x384xbf16>, vector<16x384xbf16>, vector<16x384xbf16>, vector<16x384xbf16>, vector<16x384xbf16>, vector<16x384xbf16> -> vector<144x384xbf16>
    %cst_62 = arith.constant dense<0.000000e+00> : vector<16x384xf32>
    %74 = tpu.matmul %61, %73, %cst_62 {dimension_numbers = #tpu.dot_dimension_numbers<[1], [0], [0], [1], [0, 0, 1, 1], [], []>} : vector<16x144xbf16>, vector<144x384xbf16>, vector<16x384xf32> -> vector<16x384xf32>
    %75 = vector.broadcast %63 : vector<16x1xf32> to vector<16x384xf32>
    %76 = arith.addf %74, %75 : vector<16x384xf32>
    %cst_63 = arith.constant 0.000000e+00 : f32
    %77 = vector.broadcast %cst_63 : f32 to vector<16x384xf32>
    %78 = arith.maximumf %76, %77 : vector<16x384xf32>
    %79 = vector.broadcast %0 : vector<1x384xf32> to vector<16x384xf32>
    %80 = arith.mulf %78, %79 : vector<16x384xf32>
    %81 = arith.truncf %80 : vector<16x384xf32> to vector<16x384xbf16>
    %82 = tpu.concatenate %35, %58, %81 in 0 : vector<16x384xbf16>, vector<16x384xbf16>, vector<16x384xbf16> -> vector<48x384xbf16>
    %c0_64 = arith.constant 0 : index
    %c0_65 = arith.constant 0 : index
    %83 = vector.load %arg5[%c0_64, %c0_65] : memref<48x48xbf16, #tpu.memory_space<vmem>>, vector<48x48xbf16>
    %cst_66 = arith.constant dense<0.000000e+00> : vector<48x384xf32>
    %84 = tpu.matmul %83, %82, %cst_66 {dimension_numbers = #tpu.dot_dimension_numbers<[1], [0], [0], [1], [0, 0, 1, 1], [], []>} : vector<48x48xbf16>, vector<48x384xbf16>, vector<48x384xf32> -> vector<48x384xf32>
    %c0_67 = arith.constant 0 : index
    %c0_68 = arith.constant 0 : index
    %85 = vector.load %arg6[%c0_67, %c0_68] : memref<48x1xf32, #tpu.memory_space<vmem>>, vector<48x1xf32>
    %86 = vector.broadcast %85 : vector<48x1xf32> to vector<48x384xf32>
    %87 = arith.addf %84, %86 : vector<48x384xf32>
    %88 = vector.broadcast %0 : vector<1x384xf32> to vector<48x384xf32>
    %89 = arith.mulf %87, %88 : vector<48x384xf32>
    %90 = arith.truncf %89 : vector<48x384xf32> to vector<48x384xbf16>
    %c0_69 = arith.constant 0 : index
    %c128_70 = arith.constant 128 : index
    %91 = vector.load %arg18[%c0_69, %c128_70] : memref<48x640xbf16, #tpu.memory_space<vmem>>, vector<48x384xbf16>
    tpu.vector_store %arg18[%c0_69, %c128_70], %90 {strides = array<i32>} : memref<48x640xbf16, #tpu.memory_space<vmem>>, vector<48x384xbf16>,
    %c0_71 = arith.constant 0 : index
    %c103 = arith.constant 103 : index
    %92 = vector.load %arg18[%c0_71, %c103] : memref<48x640xbf16, #tpu.memory_space<vmem>>, vector<48x384xbf16>
    %c0_72 = arith.constant 0 : index
    %c104 = arith.constant 104 : index
    %93 = vector.load %arg18[%c0_72, %c104] : memref<48x640xbf16, #tpu.memory_space<vmem>>, vector<48x384xbf16>
    %c0_73 = arith.constant 0 : index
    %c105 = arith.constant 105 : index
    %94 = vector.load %arg18[%c0_73, %c105] : memref<48x640xbf16, #tpu.memory_space<vmem>>, vector<48x384xbf16>
    %c0_74 = arith.constant 0 : index
    %c127 = arith.constant 127 : index
    %95 = vector.load %arg18[%c0_74, %c127] : memref<48x640xbf16, #tpu.memory_space<vmem>>, vector<48x384xbf16>
    %c0_75 = arith.constant 0 : index
    %c128_76 = arith.constant 128 : index
    %96 = vector.load %arg18[%c0_75, %c128_76] : memref<48x640xbf16, #tpu.memory_space<vmem>>, vector<48x384xbf16>
    %c0_77 = arith.constant 0 : index
    %c129 = arith.constant 129 : index
    %97 = vector.load %arg18[%c0_77, %c129] : memref<48x640xbf16, #tpu.memory_space<vmem>>, vector<48x384xbf16>
    %c0_78 = arith.constant 0 : index
    %c151 = arith.constant 151 : index
    %98 = vector.load %arg18[%c0_78, %c151] : memref<48x640xbf16, #tpu.memory_space<vmem>>, vector<48x384xbf16>
    %c0_79 = arith.constant 0 : index
    %c152 = arith.constant 152 : index
    %99 = vector.load %arg18[%c0_79, %c152] : memref<48x640xbf16, #tpu.memory_space<vmem>>, vector<48x384xbf16>
    %c0_80 = arith.constant 0 : index
    %c153 = arith.constant 153 : index
    %100 = vector.load %arg18[%c0_80, %c153] : memref<48x640xbf16, #tpu.memory_space<vmem>>, vector<48x384xbf16>
    %c0_81 = arith.constant 0 : index
    %c78_82 = arith.constant 78 : index
    %101 = vector.load %arg18[%c0_81, %c78_82] : memref<48x640xbf16, #tpu.memory_space<vmem>>, vector<48x384xbf16>
    %c0_83 = arith.constant 0 : index
    %c80_84 = arith.constant 80 : index
    %102 = vector.load %arg18[%c0_83, %c80_84] : memref<48x640xbf16, #tpu.memory_space<vmem>>, vector<48x384xbf16>
    %c0_85 = arith.constant 0 : index
    %c82_86 = arith.constant 82 : index
    %103 = vector.load %arg18[%c0_85, %c82_86] : memref<48x640xbf16, #tpu.memory_space<vmem>>, vector<48x384xbf16>
    %c0_87 = arith.constant 0 : index
    %c126_88 = arith.constant 126 : index
    %104 = vector.load %arg18[%c0_87, %c126_88] : memref<48x640xbf16, #tpu.memory_space<vmem>>, vector<48x384xbf16>
    %c0_89 = arith.constant 0 : index
    %c128_90 = arith.constant 128 : index
    %105 = vector.load %arg18[%c0_89, %c128_90] : memref<48x640xbf16, #tpu.memory_space<vmem>>, vector<48x384xbf16>
    %c0_91 = arith.constant 0 : index
    %c130_92 = arith.constant 130 : index
    %106 = vector.load %arg18[%c0_91, %c130_92] : memref<48x640xbf16, #tpu.memory_space<vmem>>, vector<48x384xbf16>
    %c0_93 = arith.constant 0 : index
    %c174_94 = arith.constant 174 : index
    %107 = vector.load %arg18[%c0_93, %c174_94] : memref<48x640xbf16, #tpu.memory_space<vmem>>, vector<48x384xbf16>
    %c0_95 = arith.constant 0 : index
    %c176_96 = arith.constant 176 : index
    %108 = vector.load %arg18[%c0_95, %c176_96] : memref<48x640xbf16, #tpu.memory_space<vmem>>, vector<48x384xbf16>
    %c0_97 = arith.constant 0 : index
    %c178_98 = arith.constant 178 : index
    %109 = vector.load %arg18[%c0_97, %c178_98] : memref<48x640xbf16, #tpu.memory_space<vmem>>, vector<48x384xbf16>
    %c0_99 = arith.constant 0 : index
    %c28_100 = arith.constant 28 : index
    %110 = vector.load %arg18[%c0_99, %c28_100] : memref<48x640xbf16, #tpu.memory_space<vmem>>, vector<48x384xbf16>
    %c0_101 = arith.constant 0 : index
    %c32_102 = arith.constant 32 : index
    %111 = vector.load %arg18[%c0_101, %c32_102] : memref<48x640xbf16, #tpu.memory_space<vmem>>, vector<48x384xbf16>
    %c0_103 = arith.constant 0 : index
    %c36_104 = arith.constant 36 : index
    %112 = vector.load %arg18[%c0_103, %c36_104] : memref<48x640xbf16, #tpu.memory_space<vmem>>, vector<48x384xbf16>
    %c0_105 = arith.constant 0 : index
    %c124_106 = arith.constant 124 : index
    %113 = vector.load %arg18[%c0_105, %c124_106] : memref<48x640xbf16, #tpu.memory_space<vmem>>, vector<48x384xbf16>
    %c0_107 = arith.constant 0 : index
    %c128_108 = arith.constant 128 : index
    %114 = vector.load %arg18[%c0_107, %c128_108] : memref<48x640xbf16, #tpu.memory_space<vmem>>, vector<48x384xbf16>
    %c0_109 = arith.constant 0 : index
    %c132_110 = arith.constant 132 : index
    %115 = vector.load %arg18[%c0_109, %c132_110] : memref<48x640xbf16, #tpu.memory_space<vmem>>, vector<48x384xbf16>
    %c0_111 = arith.constant 0 : index
    %c220_112 = arith.constant 220 : index
    %116 = vector.load %arg18[%c0_111, %c220_112] : memref<48x640xbf16, #tpu.memory_space<vmem>>, vector<48x384xbf16>
    %c0_113 = arith.constant 0 : index
    %c224_114 = arith.constant 224 : index
    %117 = vector.load %arg18[%c0_113, %c224_114] : memref<48x640xbf16, #tpu.memory_space<vmem>>, vector<48x384xbf16>
    %c0_115 = arith.constant 0 : index
    %c228_116 = arith.constant 228 : index
    %118 = vector.load %arg18[%c0_115, %c228_116] : memref<48x640xbf16, #tpu.memory_space<vmem>>, vector<48x384xbf16>
    %119 = tpu.concatenate %92, %93, %94, %95, %96, %97, %98, %99, %100, %101, %102, %103, %104, %105, %106, %107 in 0 : vector<48x384xbf16>, vector<48x384xbf16>, vector<48x384xbf16>, vector<48x384xbf16>, vector<48x384xbf16>, vector<48x384xbf16>, vector<48x384xbf16>, vector<48x384xbf16>, vector<48x384xbf16>, vector<48x384xbf16>, vector<48x384xbf16>, vector<48x384xbf16>, vector<48x384xbf16>, vector<48x384xbf16>, vector<48x384xbf16>, vector<48x384xbf16> -> vector<768x384xbf16>
    %120 = tpu.concatenate %108, %109, %110, %111, %112, %113, %114, %115, %116, %117, %118 in 0 : vector<48x384xbf16>, vector<48x384xbf16>, vector<48x384xbf16>, vector<48x384xbf16>, vector<48x384xbf16>, vector<48x384xbf16>, vector<48x384xbf16>, vector<48x384xbf16>, vector<48x384xbf16>, vector<48x384xbf16>, vector<48x384xbf16> -> vector<528x384xbf16>
    %121 = tpu.concatenate %119, %120 in 0 : vector<768x384xbf16>, vector<528x384xbf16> -> vector<1296x384xbf16>
    %c0_117 = arith.constant 0 : index
    %c0_118 = arith.constant 0 : index
    %122 = vector.load %arg7[%c0_117, %c0_118] : memref<16x1296xbf16, #tpu.memory_space<vmem>>, vector<16x1296xbf16>
    %cst_119 = arith.constant dense<0.000000e+00> : vector<16x384xf32>
    %123 = tpu.matmul %122, %121, %cst_119 {dimension_numbers = #tpu.dot_dimension_numbers<[1], [0], [0], [1], [0, 0, 1, 1], [], []>} : vector<16x1296xbf16>, vector<1296x384xbf16>, vector<16x384xf32> -> vector<16x384xf32>
    %c0_120 = arith.constant 0 : index
    %c0_121 = arith.constant 0 : index
    %124 = vector.load %arg8[%c0_120, %c0_121] : memref<16x1xf32, #tpu.memory_space<vmem>>, vector<16x1xf32>
    %125 = vector.broadcast %124 : vector<16x1xf32> to vector<16x384xf32>
    %126 = arith.addf %123, %125 : vector<16x384xf32>
    %cst_122 = arith.constant 0.000000e+00 : f32
    %127 = vector.broadcast %cst_122 : f32 to vector<16x384xf32>
    %128 = arith.maximumf %126, %127 : vector<16x384xf32>
    %129 = vector.broadcast %0 : vector<1x384xf32> to vector<16x384xf32>
    %130 = arith.mulf %128, %129 : vector<16x384xf32>
    %cst_123 = arith.constant dense<0.000000e+00> : vector<16xf32>
    %131 = vector.multi_reduction <add>, %130, %cst_123 [1] : vector<16x384xf32> to vector<16xf32>
    %132 = vector.shape_cast %131 : vector<16xf32> to vector<16x1xf32>
    %cst_124 = arith.constant 3.906250e-03 : f32
    %133 = vector.broadcast %cst_124 : f32 to vector<16x1xf32>
    %134 = arith.mulf %132, %133 : vector<16x1xf32>
    %c0_125 = arith.constant 0 : index
    %c0_126 = arith.constant 0 : index
    %135 = vector.load %arg9[%c0_125, %c0_126] : memref<18x16xbf16, #tpu.memory_space<vmem>>, vector<18x16xbf16>
    %136 = arith.truncf %134 : vector<16x1xf32> to vector<16x1xbf16>
    %137 = vector.shape_cast %136 : vector<16x1xbf16> to vector<16x1xbf16>
    %138 = vector.broadcast %137 : vector<16x1xbf16> to vector<16x128xbf16>
    %cst_127 = arith.constant dense<0.000000e+00> : vector<18x128xf32>
    %139 = tpu.matmul %135, %138, %cst_127 {dimension_numbers = #tpu.dot_dimension_numbers<[1], [0], [0], [1], [0, 0, 1, 1], [], []>} : vector<18x16xbf16>, vector<16x128xbf16>, vector<18x128xf32> -> vector<18x128xf32>
    %140 = vector.extract_strided_slice %139 {offsets = [0, 0], sizes = [16, 1], strides = [1, 1]} : vector<18x128xf32> to vector<16x1xf32>
    %c0_128 = arith.constant 0 : index
    %c0_129 = arith.constant 0 : index
    %141 = vector.load %arg10[%c0_128, %c0_129] : memref<16x1xf32, #tpu.memory_space<vmem>>, vector<16x1xf32>
    %142 = arith.addf %140, %141 : vector<16x1xf32>
    %143 = arith.negf %142 : vector<16x1xf32>
    %144 = math.exp %143 : vector<16x1xf32>
    %cst_130 = arith.constant 1.000000e+00 : f32
    %145 = vector.broadcast %cst_130 : f32 to vector<16x1xf32>
    %146 = arith.addf %145, %144 : vector<16x1xf32>
    %147 = arith.divf %145, %146 : vector<16x1xf32>
    %148 = vector.extract_strided_slice %139 {offsets = [16, 0], sizes = [2, 1], strides = [1, 1]} : vector<18x128xf32> to vector<2x1xf32>
    %c0_131 = arith.constant 0 : index
    %c0_132 = arith.constant 0 : index
    %149 = vector.load %arg11[%c0_131, %c0_132] : memref<2x1xf32, #tpu.memory_space<vmem>>, vector<2x1xf32>
    %150 = arith.addf %148, %149 : vector<2x1xf32>
    %151 = vector.broadcast %147 : vector<16x1xf32> to vector<16x384xf32>
    %152 = arith.mulf %128, %151 : vector<16x384xf32>
    %153 = arith.truncf %152 : vector<16x384xf32> to vector<16x384xbf16>
    %c0_133 = arith.constant 0 : index
    %c0_134 = arith.constant 0 : index
    %154 = vector.load %arg12[%c0_133, %c0_134] : memref<2x16xbf16, #tpu.memory_space<vmem>>, vector<2x16xbf16>
    %cst_135 = arith.constant dense<0.000000e+00> : vector<2x384xf32>
    %155 = tpu.matmul %154, %153, %cst_135 {dimension_numbers = #tpu.dot_dimension_numbers<[1], [0], [0], [1], [0, 0, 1, 1], [], []>} : vector<2x16xbf16>, vector<16x384xbf16>, vector<2x384xf32> -> vector<2x384xf32>
    %c0_136 = arith.constant 0 : index
    %c0_137 = arith.constant 0 : index
    %156 = vector.load %arg13[%c0_136, %c0_137] : memref<2x1xf32, #tpu.memory_space<vmem>>, vector<2x1xf32>
    %157 = vector.broadcast %156 : vector<2x1xf32> to vector<2x384xf32>
    %158 = arith.addf %155, %157 : vector<2x384xf32>
    %159 = vector.shape_cast %150 : vector<2x1xf32> to vector<2x1xf32>
    %160 = vector.broadcast %159 : vector<2x1xf32> to vector<2x128xf32>
    %161 = tpu.concatenate %158, %160 in 1 : vector<2x384xf32>, vector<2x128xf32> -> vector<2x512xf32>
    %c0_138 = arith.constant 0 : index
    %c0_139 = arith.constant 0 : index
    %c0_140 = arith.constant 0 : index
    %162 = vector.load %arg15[%c0_138, %c0_139, %c0_140] : memref<1x2x512xf32, #tpu.memory_space<vmem>>, vector<1x2x512xf32>
    %163 = vector.shape_cast %162 : vector<1x2x512xf32> to vector<2x512xf32>
    %164 = vector.shape_cast %161 : vector<2x512xf32> to vector<1x2x512xf32>
    tpu.vector_store %arg15[%c0_138, %c0_139, %c0_140], %164 {strides = array<i32>} : memref<1x2x512xf32, #tpu.memory_space<vmem>>, vector<1x2x512xf32>,
    return
  }
  func.func @transform_0(%arg0: i32) -> (i32, i32, i32) {
    %c0_i32 = arith.constant 0 : i32
    %c0_i32_0 = arith.constant 0 : i32
    %c0_i32_1 = arith.constant 0 : i32
    return %arg0, %c0_i32, %c0_i32_0 : i32, i32, i32
  }
  func.func @transform_1(%arg0: i32) -> (i32, i32) {
    %c0_i32 = arith.constant 0 : i32
    %c0_i32_0 = arith.constant 0 : i32
    %c0_i32_1 = arith.constant 0 : i32
    return %c0_i32, %c0_i32_0 : i32, i32
  }
  func.func @transform_2(%arg0: i32) -> (i32, i32, i32) {
    %c0_i32 = arith.constant 0 : i32
    %c0_i32_0 = arith.constant 0 : i32
    %c0_i32_1 = arith.constant 0 : i32
    %c0_i32_2 = arith.constant 0 : i32
    return %c0_i32, %c0_i32_0, %c0_i32_1 : i32, i32, i32
  }
  func.func @transform_3(%arg0: i32) -> (i32, i32, i32) {
    %c0_i32 = arith.constant 0 : i32
    %c0_i32_0 = arith.constant 0 : i32
    %c0_i32_1 = arith.constant 0 : i32
    %c0_i32_2 = arith.constant 0 : i32
    return %c0_i32, %c0_i32_0, %c0_i32_1 : i32, i32, i32
  }
  func.func @transform_4(%arg0: i32) -> (i32, i32) {
    %c0_i32 = arith.constant 0 : i32
    %c0_i32_0 = arith.constant 0 : i32
    %c0_i32_1 = arith.constant 0 : i32
    return %c0_i32, %c0_i32_0 : i32, i32
  }
  func.func @transform_5(%arg0: i32) -> (i32, i32) {
    %c0_i32 = arith.constant 0 : i32
    %c0_i32_0 = arith.constant 0 : i32
    %c0_i32_1 = arith.constant 0 : i32
    return %c0_i32, %c0_i32_0 : i32, i32
  }
  func.func @transform_6(%arg0: i32) -> (i32, i32) {
    %c0_i32 = arith.constant 0 : i32
    %c0_i32_0 = arith.constant 0 : i32
    %c0_i32_1 = arith.constant 0 : i32
    return %c0_i32, %c0_i32_0 : i32, i32
  }
  func.func @transform_7(%arg0: i32) -> (i32, i32) {
    %c0_i32 = arith.constant 0 : i32
    %c0_i32_0 = arith.constant 0 : i32
    %c0_i32_1 = arith.constant 0 : i32
    return %c0_i32, %c0_i32_0 : i32, i32
  }
  func.func @transform_8(%arg0: i32) -> (i32, i32) {
    %c0_i32 = arith.constant 0 : i32
    %c0_i32_0 = arith.constant 0 : i32
    %c0_i32_1 = arith.constant 0 : i32
    return %c0_i32, %c0_i32_0 : i32, i32
  }
  func.func @transform_9(%arg0: i32) -> (i32, i32) {
    %c0_i32 = arith.constant 0 : i32
    %c0_i32_0 = arith.constant 0 : i32
    %c0_i32_1 = arith.constant 0 : i32
    return %c0_i32, %c0_i32_0 : i32, i32
  }
  func.func @transform_10(%arg0: i32) -> (i32, i32) {
    %c0_i32 = arith.constant 0 : i32
    %c0_i32_0 = arith.constant 0 : i32
    %c0_i32_1 = arith.constant 0 : i32
    return %c0_i32, %c0_i32_0 : i32, i32
  }
  func.func @transform_11(%arg0: i32) -> (i32, i32) {
    %c0_i32 = arith.constant 0 : i32
    %c0_i32_0 = arith.constant 0 : i32
    %c0_i32_1 = arith.constant 0 : i32
    return %c0_i32, %c0_i32_0 : i32, i32
  }
  func.func @transform_12(%arg0: i32) -> (i32, i32) {
    %c0_i32 = arith.constant 0 : i32
    %c0_i32_0 = arith.constant 0 : i32
    %c0_i32_1 = arith.constant 0 : i32
    return %c0_i32, %c0_i32_0 : i32, i32
  }
  func.func @transform_13(%arg0: i32) -> (i32, i32) {
    %c0_i32 = arith.constant 0 : i32
    %c0_i32_0 = arith.constant 0 : i32
    %c0_i32_1 = arith.constant 0 : i32
    return %c0_i32, %c0_i32_0 : i32, i32
  }
  func.func @transform_14(%arg0: i32) -> (i32, i32, i32) {
    %c0_i32 = arith.constant 0 : i32
    %c0_i32_0 = arith.constant 0 : i32
    %c0_i32_1 = arith.constant 0 : i32
    return %arg0, %c0_i32, %c0_i32_0 : i32, i32, i32
  }
}

</mosaic_0001>

<llo_original>
// kernel: a_call__.1
$region0: #{a_call__.1}
  #allocation0 [shape = 'u32[]', space=smem, size = 0x4, offset = 0x4, fixed_abs, tag = 'smem constant byte address 0x4 - core index']
  #allocation1 [shape = 'u32[144,128]{1,0:T(1,128)}', space=vmem, size = 0x12000, scoped, tag = 'internal scratch']
  #allocation2 [shape = 'bf16[16,640]{1,0:T(16,128)(2,1)}', space=vmem, size = 0x5000, scoped, tag = 'scratch operand']
  #allocation3 [shape = 'bf16[16,640]{1,0:T(16,128)(2,1)}', space=vmem, size = 0x5000, scoped, tag = 'scratch operand']
  #allocation4 [shape = 'bf16[48,640]{1,0:T(16,128)(2,1)}', space=vmem, size = 0xf000, scoped, tag = 'scratch operand']
  %s0 = inlined_call_operand.vmem [shape: bf16[2,16,576], index: 0, kind: input, shape index: {}]
  %s1 = inlined_call_operand.vmem [shape: bf16[16,144], index: 1, kind: input, shape index: {}]
  %s2 = inlined_call_operand.vmem [shape: bf16[2,16,144], index: 2, kind: input, shape index: {}]
  %s3 = inlined_call_operand.vmem [shape: f32[3,16,1], index: 3, kind: input, shape index: {}]
  %s4 = inlined_call_operand.vmem [shape: bf16[48,48], index: 4, kind: input, shape index: {}]
  %s5 = inlined_call_operand.vmem [shape: f32[48,1], index: 5, kind: input, shape index: {}]
  %s6 = inlined_call_operand.vmem [shape: bf16[16,1296], index: 6, kind: input, shape index: {}]
  %s7 = inlined_call_operand.vmem [shape: f32[16,1], index: 7, kind: input, shape index: {}]
  %s8 = inlined_call_operand.vmem [shape: bf16[18,16], index: 8, kind: input, shape index: {}]
  %s9 = inlined_call_operand.vmem [shape: f32[16,1], index: 9, kind: input, shape index: {}]
  %s10 = inlined_call_operand.vmem [shape: f32[2,1], index: 10, kind: input, shape index: {}]
  %s11 = inlined_call_operand.vmem [shape: bf16[2,16], index: 11, kind: input, shape index: {}]
  %s12 = inlined_call_operand.vmem [shape: f32[2,1], index: 12, kind: input, shape index: {}]
  %s13 = inlined_call_operand.vmem [shape: f32[1,384], index: 13, kind: input, shape index: {}]
  %s14 = inlined_call_operand.vmem [shape: f32[2,2,512], index: 14, kind: output, shape index: {}]
  %s15 = sld [smem:[#allocation0]]
  $region89: #{a_call__.1} parent=0
    _
  %s17 = ssub.s32 1, %s15
  %s18 = scalar_select 0, %s17, %s15
  loop: start=0, step=1, limit=4
  $region2: #{a_call__.1} parent=0 // loop_pre_header
    _
  $region3: #{a_call__.1} parent=0 // loop_header
    %s20 = sphi 0, %s24
    %p21 = scmp.ge.s32.totalorder %s20, 4
    %s30 = sphi 0, %s32
    %s33 = sphi 0, %s30
    %s34 = sphi 0, %s33
    %s50 = sphi 0, %s34
    %s54 = sphi 0, %s54
    %s56 = sphi 0, %s54
    %s57 = sphi 0, %s56
    %s71 = sphi 0, %s57
    %s75 = sphi 0, %s75
    %s77 = sphi 0, %s75
    %s78 = sphi 0, %s77
    %s92 = sphi 0, %s78
    %s96 = sphi 0, %s96
    %s98 = sphi 0, %s96
    %s99 = sphi 0, %s98
    %s113 = sphi 0, %s99
    %s117 = sphi 0, %s117
    %s119 = sphi 0, %s117
    %s120 = sphi 0, %s119
    %s134 = sphi 0, %s120
    %s138 = sphi 0, %s138
    %s140 = sphi 0, %s138
    %s141 = sphi 0, %s140
    %s155 = sphi 0, %s141
    %s159 = sphi 0, %s159
    %s161 = sphi 0, %s159
    %s162 = sphi 0, %s161
    %s176 = sphi 0, %s162
    %s180 = sphi 0, %s180
    %s182 = sphi 0, %s180
    %s183 = sphi 0, %s182
    %s197 = sphi 0, %s183
    %s201 = sphi 0, %s201
    %s203 = sphi 0, %s201
    %s204 = sphi 0, %s203
    %s218 = sphi 0, %s204
    %s222 = sphi 0, %s222
    %s224 = sphi 0, %s222
    %s225 = sphi 0, %s224
    %s239 = sphi 0, %s225
    %s243 = sphi 0, %s243
    %s245 = sphi 0, %s243
    %s246 = sphi 0, %s245
    %s260 = sphi 0, %s246
    %s264 = sphi 0, %s264
    %s266 = sphi 0, %s264
    %s267 = sphi 0, %s266
    %s281 = sphi 0, %s267
    %s285 = sphi 0, %s285
    %s287 = sphi 0, %s285
    %s288 = sphi 0, %s287
    %s302 = sphi 0, %s288
    %s306 = sphi 0, %s306
    %s308 = sphi 0, %s306
    %s309 = sphi 0, %s308
    %s323 = sphi 0, %s309
    %s329 = sphi 0, %s331
    %s332 = sphi 0, %s329
    %s333 = sphi 0, %s332
    %s349 = sphi 0, %s333
  $region4: #{a_call__.1} parent=0 // loop_header_branch
    %23 = sbr.rel (%p21) target = $region8
  $region5: #{a_call__.1} parent=0 // loop_body
    %s25 = ssub.s32 %s20, 1
    %s26 = ssub.s32 %s20, 2
    %s27 = sadd.s32 %s20, 1
    %s28 = ssub.s32 %s20, %s27
    %p29 = scmp.eq.s32.totalorder %s28, 0
    %s31 = sadd.s32 %s30, 1
    %s32 = scalar_select %p29, %s30, %s31
    %p35 = pneg %p29
    %p36 = scmp.eq.s32.totalorder %s20, 1
    %p37 = por %p35, %p36
    %p38 = scmp.ne.s32.totalorder %s30, %s33
    %p39 = scmp.eq.s32.totalorder %s20, 0
    %p40 = por %p38, %p39
    %p41 = scmp.ne.s32.totalorder %s30, %s33
    %p42 = scmp.eq.s32.totalorder %s25, 1
    %p43 = por %p41, %p42
    %p44 = scmp.ne.s32.totalorder %s33, %s34
    %p45 = scmp.eq.s32.totalorder %s25, 0
    %p46 = por %p44, %p45
    %p47 = scmp.ne.s32.totalorder %s33, %s34
    %p48 = scmp.eq.s32.totalorder %s26, 1
    %p49 = por %p47, %p48
    %p51 = scmp.ne.s32.totalorder %s34, %s50
    %p52 = scmp.eq.s32.totalorder %s26, 0
    %p53 = por %p51, %p52
    %s55 = sadd.s32 %s54, 1
    %p58 = scmp.eq.s32.totalorder %s20, 1
    %p59 = scmp.ne.s32.totalorder %s54, %s56
    %p60 = scmp.eq.s32.totalorder %s20, 0
    %p61 = por %p59, %p60
    %p62 = scmp.ne.s32.totalorder %s54, %s56
    %p63 = scmp.eq.s32.totalorder %s25, 1
    %p64 = por %p62, %p63
    %p65 = scmp.ne.s32.totalorder %s56, %s57
    %p66 = scmp.eq.s32.totalorder %s25, 0
    %p67 = por %p65, %p66
    %p68 = scmp.ne.s32.totalorder %s56, %s57
    %p69 = scmp.eq.s32.totalorder %s26, 1
    %p70 = por %p68, %p69
    %p72 = scmp.ne.s32.totalorder %s57, %s71
    %p73 = scmp.eq.s32.totalorder %s26, 0
    %p74 = por %p72, %p73
    %s76 = sadd.s32 %s75, 1
    %p79 = scmp.eq.s32.totalorder %s20, 1
    %p80 = scmp.ne.s32.totalorder %s75, %s77
    %p81 = scmp.eq.s32.totalorder %s20, 0
    %p82 = por %p80, %p81
    %p83 = scmp.ne.s32.totalorder %s75, %s77
    %p84 = scmp.eq.s32.totalorder %s25, 1
    %p85 = por %p83, %p84
    %p86 = scmp.ne.s32.totalorder %s77, %s78
    %p87 = scmp.eq.s32.totalorder %s25, 0
    %p88 = por %p86, %p87
    %p89 = scmp.ne.s32.totalorder %s77, %s78
    %p90 = scmp.eq.s32.totalorder %s26, 1
    %p91 = por %p89, %p90
    %p93 = scmp.ne.s32.totalorder %s78, %s92
    %p94 = scmp.eq.s32.totalorder %s26, 0
    %p95 = por %p93, %p94
    %s97 = sadd.s32 %s96, 1
    %p100 = scmp.eq.s32.totalorder %s20, 1
    %p101 = scmp.ne.s32.totalorder %s96, %s98
    %p102 = scmp.eq.s32.totalorder %s20, 0
    %p103 = por %p101, %p102
    %p104 = scmp.ne.s32.totalorder %s96, %s98
    %p105 = scmp.eq.s32.totalorder %s25, 1
    %p106 = por %p104, %p105
    %p107 = scmp.ne.s32.totalorder %s98, %s99
    %p108 = scmp.eq.s32.totalorder %s25, 0
    %p109 = por %p107, %p108
    %p110 = scmp.ne.s32.totalorder %s98, %s99
    %p111 = scmp.eq.s32.totalorder %s26, 1
    %p112 = por %p110, %p111
    %p114 = scmp.ne.s32.totalorder %s99, %s113
    %p115 = scmp.eq.s32.totalorder %s26, 0
    %p116 = por %p114, %p115
    %s118 = sadd.s32 %s117, 1
    %p121 = scmp.eq.s32.totalorder %s20, 1
    %p122 = scmp.ne.s32.totalorder %s117, %s119
    %p123 = scmp.eq.s32.totalorder %s20, 0
    %p124 = por %p122, %p123
    %p125 = scmp.ne.s32.totalorder %s117, %s119
    %p126 = scmp.eq.s32.totalorder %s25, 1
    %p127 = por %p125, %p126
    %p128 = scmp.ne.s32.totalorder %s119, %s120
    %p129 = scmp.eq.s32.totalorder %s25, 0
    %p130 = por %p128, %p129
    %p131 = scmp.ne.s32.totalorder %s119, %s120
    %p132 = scmp.eq.s32.totalorder %s26, 1
    %p133 = por %p131, %p132
    %p135 = scmp.ne.s32.totalorder %s120, %s134
    %p136 = scmp.eq.s32.totalorder %s26, 0
    %p137 = por %p135, %p136
    %s139 = sadd.s32 %s138, 1
    %p142 = scmp.eq.s32.totalorder %s20, 1
    %p143 = scmp.ne.s32.totalorder %s138, %s140
    %p144 = scmp.eq.s32.totalorder %s20, 0
    %p145 = por %p143, %p144
    %p146 = scmp.ne.s32.totalorder %s138, %s140
    %p147 = scmp.eq.s32.totalorder %s25, 1
    %p148 = por %p146, %p147
    %p149 = scmp.ne.s32.totalorder %s140, %s141
    %p150 = scmp.eq.s32.totalorder %s25, 0
    %p151 = por %p149, %p150
    %p152 = scmp.ne.s32.totalorder %s140, %s141
    %p153 = scmp.eq.s32.totalorder %s26, 1
    %p154 = por %p152, %p153
    %p156 = scmp.ne.s32.totalorder %s141, %s155
    %p157 = scmp.eq.s32.totalorder %s26, 0
    %p158 = por %p156, %p157
    %s160 = sadd.s32 %s159, 1
    %p163 = scmp.eq.s32.totalorder %s20, 1
    %p164 = scmp.ne.s32.totalorder %s159, %s161
    %p165 = scmp.eq.s32.totalorder %s20, 0
    %p166 = por %p164, %p165
    %p167 = scmp.ne.s32.totalorder %s159, %s161
    %p168 = scmp.eq.s32.totalorder %s25, 1
    %p169 = por %p167, %p168
    %p170 = scmp.ne.s32.totalorder %s161, %s162
    %p171 = scmp.eq.s32.totalorder %s25, 0
    %p172 = por %p170, %p171
    %p173 = scmp.ne.s32.totalorder %s161, %s162
    %p174 = scmp.eq.s32.totalorder %s26, 1
    %p175 = por %p173, %p174
    %p177 = scmp.ne.s32.totalorder %s162, %s176
    %p178 = scmp.eq.s32.totalorder %s26, 0
    %p179 = por %p177, %p178
    %s181 = sadd.s32 %s180, 1
    %p184 = scmp.eq.s32.totalorder %s20, 1
    %p185 = scmp.ne.s32.totalorder %s180, %s182
    %p186 = scmp.eq.s32.totalorder %s20, 0
    %p187 = por %p185, %p186
    %p188 = scmp.ne.s32.totalorder %s180, %s182
    %p189 = scmp.eq.s32.totalorder %s25, 1
    %p190 = por %p188, %p189
    %p191 = scmp.ne.s32.totalorder %s182, %s183
    %p192 = scmp.eq.s32.totalorder %s25, 0
    %p193 = por %p191, %p192
    %p194 = scmp.ne.s32.totalorder %s182, %s183
    %p195 = scmp.eq.s32.totalorder %s26, 1
    %p196 = por %p194, %p195
    %p198 = scmp.ne.s32.totalorder %s183, %s197
    %p199 = scmp.eq.s32.totalorder %s26, 0
    %p200 = por %p198, %p199
    %s202 = sadd.s32 %s201, 1
    %p205 = scmp.eq.s32.totalorder %s20, 1
    %p206 = scmp.ne.s32.totalorder %s201, %s203
    %p207 = scmp.eq.s32.totalorder %s20, 0
    %p208 = por %p206, %p207
    %p209 = scmp.ne.s32.totalorder %s201, %s203
    %p210 = scmp.eq.s32.totalorder %s25, 1
    %p211 = por %p209, %p210
    %p212 = scmp.ne.s32.totalorder %s203, %s204
    %p213 = scmp.eq.s32.totalorder %s25, 0
    %p214 = por %p212, %p213
    %p215 = scmp.ne.s32.totalorder %s203, %s204
    %p216 = scmp.eq.s32.totalorder %s26, 1
    %p217 = por %p215, %p216
    %p219 = scmp.ne.s32.totalorder %s204, %s218
    %p220 = scmp.eq.s32.totalorder %s26, 0
    %p221 = por %p219, %p220
    %s223 = sadd.s32 %s222, 1
    %p226 = scmp.eq.s32.totalorder %s20, 1
    %p227 = scmp.ne.s32.totalorder %s222, %s224
    %p228 = scmp.eq.s32.totalorder %s20, 0
    %p229 = por %p227, %p228
    %p230 = scmp.ne.s32.totalorder %s222, %s224
    %p231 = scmp.eq.s32.totalorder %s25, 1
    %p232 = por %p230, %p231
    %p233 = scmp.ne.s32.totalorder %s224, %s225
    %p234 = scmp.eq.s32.totalorder %s25, 0
    %p235 = por %p233, %p234
    %p236 = scmp.ne.s32.totalorder %s224, %s225
    %p237 = scmp.eq.s32.totalorder %s26, 1
    %p238 = por %p236, %p237
    %p240 = scmp.ne.s32.totalorder %s225, %s239
    %p241 = scmp.eq.s32.totalorder %s26, 0
    %p242 = por %p240, %p241
    %s244 = sadd.s32 %s243, 1
    %p247 = scmp.eq.s32.totalorder %s20, 1
    %p248 = scmp.ne.s32.totalorder %s243, %s245
    %p249 = scmp.eq.s32.totalorder %s20, 0
    %p250 = por %p248, %p249
    %p251 = scmp.ne.s32.totalorder %s243, %s245
    %p252 = scmp.eq.s32.totalorder %s25, 1
    %p253 = por %p251, %p252
    %p254 = scmp.ne.s32.totalorder %s245, %s246
    %p255 = scmp.eq.s32.totalorder %s25, 0
    %p256 = por %p254, %p255
    %p257 = scmp.ne.s32.totalorder %s245, %s246
    %p258 = scmp.eq.s32.totalorder %s26, 1
    %p259 = por %p257, %p258
    %p261 = scmp.ne.s32.totalorder %s246, %s260
    %p262 = scmp.eq.s32.totalorder %s26, 0
    %p263 = por %p261, %p262
    %s265 = sadd.s32 %s264, 1
    %p268 = scmp.eq.s32.totalorder %s20, 1
    %p269 = scmp.ne.s32.totalorder %s264, %s266
    %p270 = scmp.eq.s32.totalorder %s20, 0
    %p271 = por %p269, %p270
    %p272 = scmp.ne.s32.totalorder %s264, %s266
    %p273 = scmp.eq.s32.totalorder %s25, 1
    %p274 = por %p272, %p273
    %p275 = scmp.ne.s32.totalorder %s266, %s267
    %p276 = scmp.eq.s32.totalorder %s25, 0
    %p277 = por %p275, %p276
    %p278 = scmp.ne.s32.totalorder %s266, %s267
    %p279 = scmp.eq.s32.totalorder %s26, 1
    %p280 = por %p278, %p279
    %p282 = scmp.ne.s32.totalorder %s267, %s281
    %p283 = scmp.eq.s32.totalorder %s26, 0
    %p284 = por %p282, %p283
    %s286 = sadd.s32 %s285, 1
    %p289 = scmp.eq.s32.totalorder %s20, 1
    %p290 = scmp.ne.s32.totalorder %s285, %s287
    %p291 = scmp.eq.s32.totalorder %s20, 0
    %p292 = por %p290, %p291
    %p293 = scmp.ne.s32.totalorder %s285, %s287
    %p294 = scmp.eq.s32.totalorder %s25, 1
    %p295 = por %p293, %p294
    %p296 = scmp.ne.s32.totalorder %s287, %s288
    %p297 = scmp.eq.s32.totalorder %s25, 0
    %p298 = por %p296, %p297
    %p299 = scmp.ne.s32.totalorder %s287, %s288
    %p300 = scmp.eq.s32.totalorder %s26, 1
    %p301 = por %p299, %p300
    %p303 = scmp.ne.s32.totalorder %s288, %s302
    %p304 = scmp.eq.s32.totalorder %s26, 0
    %p305 = por %p303, %p304
    %s307 = sadd.s32 %s306, 1
    %p310 = scmp.eq.s32.totalorder %s20, 1
    %p311 = scmp.ne.s32.totalorder %s306, %s308
    %p312 = scmp.eq.s32.totalorder %s20, 0
    %p313 = por %p311, %p312
    %p314 = scmp.ne.s32.totalorder %s306, %s308
    %p315 = scmp.eq.s32.totalorder %s25, 1
    %p316 = por %p314, %p315
    %p317 = scmp.ne.s32.totalorder %s308, %s309
    %p318 = scmp.eq.s32.totalorder %s25, 0
    %p319 = por %p317, %p318
    %p320 = scmp.ne.s32.totalorder %s308, %s309
    %p321 = scmp.eq.s32.totalorder %s26, 1
    %p322 = por %p320, %p321
    %p324 = scmp.ne.s32.totalorder %s309, %s323
    %p325 = scmp.eq.s32.totalorder %s26, 0
    %p326 = por %p324, %p325
    %s327 = ssub.s32 %s20, %s27
    %p328 = scmp.eq.s32.totalorder %s327, 0
    %s330 = sadd.s32 %s329, 1
    %s331 = scalar_select %p328, %s329, %s330
    %p334 = pneg %p328
    %p335 = scmp.eq.s32.totalorder %s20, 1
    %p336 = por %p334, %p335
    %p337 = scmp.ne.s32.totalorder %s329, %s332
    %p338 = scmp.eq.s32.totalorder %s20, 0
    %p339 = por %p337, %p338
    %p340 = scmp.ne.s32.totalorder %s329, %s332
    %p341 = scmp.eq.s32.totalorder %s25, 1
    %p342 = por %p340, %p341
    %p343 = scmp.ne.s32.totalorder %s332, %s333
    %p344 = scmp.eq.s32.totalorder %s25, 0
    %p345 = por %p343, %p344
    %p346 = scmp.ne.s32.totalorder %s332, %s333
    %p347 = scmp.eq.s32.totalorder %s26, 1
    %p348 = por %p346, %p347
    %p350 = scmp.ne.s32.totalorder %s333, %s349
    %p351 = scmp.eq.s32.totalorder %s26, 0
    %p352 = por %p350, %p351
    %p353 = scmp.le.s32.totalorder 1, %s20
    %p354 = scmp.lt.s32.totalorder %s20, 3
    %p355 = pnand %p353, %p354
    %p356 = pneg %p355
    // Predicated region
    $region9: #{a_call__.1} parent=5 // pred_check
      _
    $region10: #{a_call__.1} parent=5 // pred_check_branch
      %358 = sbr.rel (%p355) target = $region12
    $region11: #{a_call__.1} parent=5 // pred_region
      %s359 = ssub.s32 %s20, 1
      // Predicated region
      $region13: #{a_call__.1} parent=11 // pred_check
        %p360 = pneg %p67
      $region14: #{a_call__.1} parent=11 // pred_check_branch
        %362 = sbr.rel (%p360) target = $region16
      $region15: #{a_call__.1} parent=11 // pred_region
        _
      $region16: #{a_call__.1} parent=11 // pred_fallthru
        _
      // Predicated region
      $region17: #{a_call__.1} parent=11 // pred_check
        %p363 = pneg %p88
      $region18: #{a_call__.1} parent=11 // pred_check_branch
        %365 = sbr.rel (%p363) target = $region20
      $region19: #{a_call__.1} parent=11 // pred_region
        _
      $region20: #{a_call__.1} parent=11 // pred_fallthru
        _
      // Predicated region
      $region21: #{a_call__.1} parent=11 // pred_check
        %p366 = pneg %p109
      $region22: #{a_call__.1} parent=11 // pred_check_branch
        %368 = sbr.rel (%p366) target = $region24
      $region23: #{a_call__.1} parent=11 // pred_region
        _
      $region24: #{a_call__.1} parent=11 // pred_fallthru
        _
      // Predicated region
      $region25: #{a_call__.1} parent=11 // pred_check
        %p369 = pneg %p130
      $region26: #{a_call__.1} parent=11 // pred_check_branch
        %371 = sbr.rel (%p369) target = $region28
      $region27: #{a_call__.1} parent=11 // pred_region
        _
      $region28: #{a_call__.1} parent=11 // pred_fallthru
        _
      // Predicated region
      $region29: #{a_call__.1} parent=11 // pred_check
        %p372 = pneg %p151
      $region30: #{a_call__.1} parent=11 // pred_check_branch
        %374 = sbr.rel (%p372) target = $region32
      $region31: #{a_call__.1} parent=11 // pred_region
        _
      $region32: #{a_call__.1} parent=11 // pred_fallthru
        _
      // Predicated region
      $region33: #{a_call__.1} parent=11 // pred_check
        %p375 = pneg %p172
      $region34: #{a_call__.1} parent=11 // pred_check_branch
        %377 = sbr.rel (%p375) target = $region36
      $region35: #{a_call__.1} parent=11 // pred_region
        _
      $region36: #{a_call__.1} parent=11 // pred_fallthru
        _
      // Predicated region
      $region37: #{a_call__.1} parent=11 // pred_check
        %p378 = pneg %p193
      $region38: #{a_call__.1} parent=11 // pred_check_branch
        %380 = sbr.rel (%p378) target = $region40
      $region39: #{a_call__.1} parent=11 // pred_region
        _
      $region40: #{a_call__.1} parent=11 // pred_fallthru
        _
      // Predicated region
      $region41: #{a_call__.1} parent=11 // pred_check
        %p381 = pneg %p214
      $region42: #{a_call__.1} parent=11 // pred_check_branch
        %383 = sbr.rel (%p381) target = $region44
      $region43: #{a_call__.1} parent=11 // pred_region
        _
      $region44: #{a_call__.1} parent=11 // pred_fallthru
        _
      // Predicated region
      $region45: #{a_call__.1} parent=11 // pred_check
        %p384 = pneg %p235
      $region46: #{a_call__.1} parent=11 // pred_check_branch
        %386 = sbr.rel (%p384) target = $region48
      $region47: #{a_call__.1} parent=11 // pred_region
        _
      $region48: #{a_call__.1} parent=11 // pred_fallthru
        _
      // Predicated region
      $region49: #{a_call__.1} parent=11 // pred_check
        %p387 = pneg %p256
      $region50: #{a_call__.1} parent=11 // pred_check_branch
        %389 = sbr.rel (%p387) target = $region52
      $region51: #{a_call__.1} parent=11 // pred_region
        _
      $region52: #{a_call__.1} parent=11 // pred_fallthru
        _
      // Predicated region
      $region53: #{a_call__.1} parent=11 // pred_check
        %p390 = pneg %p277
      $region54: #{a_call__.1} parent=11 // pred_check_branch
        %392 = sbr.rel (%p390) target = $region56
      $region55: #{a_call__.1} parent=11 // pred_region
        _
      $region56: #{a_call__.1} parent=11 // pred_fallthru
        _
      // Predicated region
      $region57: #{a_call__.1} parent=11 // pred_check
        %p393 = pneg %p298
      $region58: #{a_call__.1} parent=11 // pred_check_branch
        %395 = sbr.rel (%p393) target = $region60
      $region59: #{a_call__.1} parent=11 // pred_region
        _
      $region60: #{a_call__.1} parent=11 // pred_fallthru
        _
      // Predicated region
      $region61: #{a_call__.1} parent=11 // pred_check
        %p396 = pneg %p319
      $region62: #{a_call__.1} parent=11 // pred_check_branch
        %398 = sbr.rel (%p396) target = $region64
      $region63: #{a_call__.1} parent=11 // pred_region
        _
      $region64: #{a_call__.1} parent=11 // pred_fallthru
        _
    $region12: #{a_call__.1} parent=5 // pred_fallthru
      _
    %p399 = scmp.lt.s32.totalorder %s20, 2
    // Predicated region
    $region65: #{a_call__.1} parent=5 // pred_check
      %p400 = pneg %p399
    $region66: #{a_call__.1} parent=5 // pred_check_branch
      %402 = sbr.rel (%p400) target = $region68
    $region67: #{a_call__.1} parent=5 // pred_region
      // Predicated region
      $region69: #{a_call__.1} parent=67 // pred_check
        %p403 = pneg %p40
      $region70: #{a_call__.1} parent=67 // pred_check_branch
        %405 = sbr.rel (%p403) target = $region72
      $region71: #{a_call__.1} parent=67 // pred_region
        %p406 = scmp.lt.s32.totalorder %s20, 1
        %s407 = scalar_select %p406, %s20, 1
        %s408 = smul.addr %s407, 10
        %s409 = smul.addr %s408, 4
        %s410 = scalar_lea.vmem %s0, %s409
      $region72: #{a_call__.1} parent=67 // pred_fallthru
        _
    $region68: #{a_call__.1} parent=5 // pred_fallthru
      _
    %p411 = scmp.le.s32.totalorder 1, %s20
    %p412 = scmp.lt.s32.totalorder %s20, 3
    %p413 = pnand %p411, %p412
    %p414 = pneg %p413
    // Predicated region
    $region73: #{a_call__.1} parent=5 // pred_check
      _
    $region74: #{a_call__.1} parent=5 // pred_check_branch
      %416 = sbr.rel (%p413) target = $region76
    $region75: #{a_call__.1} parent=5 // pred_region
      %s417 = ssub.s32 %s20, 1
      %p418 = scmp.lt.s32.totalorder %s25, 1
      %s419 = scalar_select %p418, %s25, 1
      %s420 = smul.addr %s419, 10
      %s421 = smul.addr %s420, 4
      %s422 = scalar_lea.vmem %s0, %s421
      %p423 = pneg %p46
      %p424 = pneg %p43
      %p425 = pneg %p67
      %p426 = pneg %p64
      %p427 = pneg %p88
      %p428 = pneg %p85
      %p429 = pneg %p109
      %p430 = pneg %p106
      %p431 = pneg %p130
      %p432 = pneg %p127
      %p433 = pneg %p151
      %p434 = pneg %p148
      %p435 = pneg %p172
      %p436 = pneg %p169
      %p437 = pneg %p193
      %p438 = pneg %p190
      %p439 = pneg %p214
      %p440 = pneg %p211
      %p441 = pneg %p235
      %p442 = pneg %p232
      %p443 = pneg %p256
      %p444 = pneg %p253
      %p445 = pneg %p277
      %p446 = pneg %p274
      %p447 = pneg %p298
      %p448 = pneg %p295
      %p449 = pneg %p319
      %p450 = pneg %p316
      %p451 = pneg %p345
      %p452 = pneg %p342
      %p453 = scmp.lt.s32.totalorder %s25, 1
      %s454 = scalar_select %p453, %s25, 1
      %s455 = smul.addr %s454, 4
      %s456 = smul.addr %s455, 2
      %s457 = scalar_lea.vmem %s14, %s456
      %p458 = scmp.lt.s32.totalorder %s25, 1
      %s459 = scalar_select %p458, %s25, 1
      %s460 = smul.addr %s459, 10
      %s461 = smul.addr %s460, 4
      %s462 = scalar_lea.vmem %s0, %s461
      %p463 = scmp.lt.s32.totalorder %s25, 1
      %s464 = scalar_select %p463, %s25, 1
      %s465 = smul.addr %s464, 4
      %s466 = smul.addr %s465, 2
      %s467 = scalar_lea.vmem %s14, %s466
      %v469 = vld [vmem:[%s13] sm:$0x7]
      %470 = vst [vmem:[#allocation2] sm:$0xff] 0
      %471 = vst [vmem:[#allocation2 + $0x20] sm:$0xff] 0
      %472 = vst [vmem:[#allocation3] sm:$0xff] 0
      %473 = vst [vmem:[#allocation3 + $0x20] sm:$0xff] 0
      %474 = vst [vmem:[#allocation4] sm:$0xff] 0
      %475 = vst [vmem:[#allocation4 + $0x28] sm:$0xff] 0
      %476 = vst [vmem:[#allocation4 + $0x50] sm:$0xff] 0
      %477 = vst [vmem:[#allocation4 + $0x20] sm:$0xff] 0
      %478 = vst [vmem:[#allocation4 + $0x48] sm:$0xff] 0
      %479 = vst [vmem:[#allocation4 + $0x70] sm:$0xff] 0
      %v480 = vld [vmem:[%s462] sm:$0xff]
      %v481 = vld [vmem:[%s462 + $0x8] sm:$0xff]
      %v482 = vld [vmem:[%s462 + $0x14] sm:$0xff]
      %v483 = vld [vmem:[%s462 + $0x1c] sm:$0xff]
      %v484 = vld [vmem:[%s1] sm:$0xff]
      %v485 = vld [vmem:[%s1 + $0x8] sm:$0xff]
      %v486 = vld [vmem:[%s3] sm:$0xff]
      %v487 = vld [vmem:[%s3 + $0x8] sm:$0xff]
      %v492 = vunpack.c.l.b16 %v480
      %v493 = vunpack.c.h.b16 %v480
      %v494 = vunpack.c.l.b16 %v481
      %v495 = vunpack.c.h.b16 %v481
      %v496 = vunpack.c.l.b16 %v482
      %v497 = vunpack.c.h.b16 %v482
      %v498 = vunpack.c.l.b16 %v483
      %v499 = vunpack.c.h.b16 %v483
      %v500 = vpack.c.b16 %v496, %v492
      %v501 = vpack.c.b16 %v497, %v493
      %v502 = vpack.c.b16 %v498, %v494
      %v503 = vpack.c.b16 %v499, %v495
      %504 = vrot.lane.b32.xlu0 %v500, 127
      %v505 = vpop.permute.xlu0 %504
      %506 = vrot.lane.b32.xlu0 %v501, 127
      %v507 = vpop.permute.xlu0 %506
      %508 = vrot.lane.b32.xlu0 %v502, 127
      %v509 = vpop.permute.xlu0 %508
      %510 = vrot.lane.b32.xlu0 %v503, 127
      %v511 = vpop.permute.xlu0 %510
      %vm512 = vcmask 1039360
      %v513 = vsel %vm512, %v505, %v507
      %v514 = vsel %vm512, %v507, %v509
      %v515 = vsel %vm512, %v509, %v511
      %516 = vrot.lane.b32.xlu0 %v500, 126
      %v517 = vpop.permute.xlu0 %516
      %518 = vrot.lane.b32.xlu0 %v501, 126
      %v519 = vpop.permute.xlu0 %518
      %520 = vrot.lane.b32.xlu0 %v502, 126
      %v521 = vpop.permute.xlu0 %520
      %522 = vrot.lane.b32.xlu0 %v503, 126
      %v523 = vpop.permute.xlu0 %522
      %vm524 = vcmask 1031168
      %v525 = vsel %vm524, %v517, %v519
      %v526 = vsel %vm524, %v519, %v521
      %v527 = vsel %vm524, %v521, %v523
      %528 = vrot.lane.b32.xlu0 %v500, 104
      %v529 = vpop.permute.xlu0 %528
      %530 = vrot.lane.b32.xlu0 %v501, 104
      %v531 = vpop.permute.xlu0 %530
      %532 = vrot.lane.b32.xlu0 %v502, 104
      %v533 = vpop.permute.xlu0 %532
      %534 = vrot.lane.b32.xlu0 %v503, 104
      %v535 = vpop.permute.xlu0 %534
      %vm536 = vcmask 850944
      %v537 = vsel %vm536, %v529, %v531
      %v538 = vsel %vm536, %v531, %v533
      %v539 = vsel %vm536, %v533, %v535
      %540 = vrot.lane.b32.xlu0 %v500, 103
      %v541 = vpop.permute.xlu0 %540
      %542 = vrot.lane.b32.xlu0 %v501, 103
      %v543 = vpop.permute.xlu0 %542
      %544 = vrot.lane.b32.xlu0 %v502, 103
      %v545 = vpop.permute.xlu0 %544
      %546 = vrot.lane.b32.xlu0 %v503, 103
      %v547 = vpop.permute.xlu0 %546
      %vm548 = vcmask 842752
      %v549 = vsel %vm548, %v541, %v543
      %v550 = vsel %vm548, %v543, %v545
      %v551 = vsel %vm548, %v545, %v547
      %552 = vrot.lane.b32.xlu0 %v500, 102
      %v553 = vpop.permute.xlu0 %552
      %554 = vrot.lane.b32.xlu0 %v501, 102
      %v555 = vpop.permute.xlu0 %554
      %556 = vrot.lane.b32.xlu0 %v502, 102
      %v557 = vpop.permute.xlu0 %556
      %558 = vrot.lane.b32.xlu0 %v503, 102
      %v559 = vpop.permute.xlu0 %558
      %vm560 = vcmask 834560
      %v561 = vsel %vm560, %v553, %v555
      %v562 = vsel %vm560, %v555, %v557
      %v563 = vsel %vm560, %v557, %v559
      %564 = vrot.lane.b32.xlu0 %v500, 80
      %v565 = vpop.permute.xlu0 %564
      %566 = vrot.lane.b32.xlu0 %v501, 80
      %v567 = vpop.permute.xlu0 %566
      %568 = vrot.lane.b32.xlu0 %v502, 80
      %v569 = vpop.permute.xlu0 %568
      %570 = vrot.lane.b32.xlu0 %v503, 80
      %v571 = vpop.permute.xlu0 %570
      %vm572 = vcmask 654336
      %v573 = vsel %vm572, %v565, %v567
      %v574 = vsel %vm572, %v567, %v569
      %v575 = vsel %vm572, %v569, %v571
      %576 = vrot.lane.b32.xlu0 %v500, 79
      %v577 = vpop.permute.xlu0 %576
      %578 = vrot.lane.b32.xlu0 %v501, 79
      %v579 = vpop.permute.xlu0 %578
      %580 = vrot.lane.b32.xlu0 %v502, 79
      %v581 = vpop.permute.xlu0 %580
      %582 = vrot.lane.b32.xlu0 %v503, 79
      %v583 = vpop.permute.xlu0 %582
      %vm584 = vcmask 646144
      %v585 = vsel %vm584, %v577, %v579
      %v586 = vsel %vm584, %v579, %v581
      %v587 = vsel %vm584, %v581, %v583
      %588 = vrot.lane.b32.xlu0 %v500, 78
      %v589 = vpop.permute.xlu0 %588
      %590 = vrot.lane.b32.xlu0 %v501, 78
      %v591 = vpop.permute.xlu0 %590
      %592 = vrot.lane.b32.xlu0 %v502, 78
      %v593 = vpop.permute.xlu0 %592
      %594 = vrot.lane.b32.xlu0 %v503, 78
      %v595 = vpop.permute.xlu0 %594
      %vm596 = vcmask 637952
      %v597 = vsel %vm596, %v589, %v591
      %v598 = vsel %vm596, %v591, %v593
      %v599 = vsel %vm596, %v593, %v595
      %601 = vset.pattern.permute.xlu0 0
      %602 = vperm.xlu0 %601, %v486
      %v603 = vpop.permute.xlu0 %602
      %606 = vset.pattern.permute.xlu0 0
      %607 = vperm.xlu0 %606, %v487
      %v608 = vpop.permute.xlu0 %607
      %v612 = vunpack.c.l.b16 %v484
      %v613 = vunpack.c.h.b16 %v484
      %v614 = vunpack.c.l.b16 %v485
      %v615 = vunpack.c.h.b16 %v485
      %v616 = vpack.c.b16 %v614, %v612
      %v617 = vpack.c.b16 %v615, %v613
      %619 = vrot.lane.b32.xlu0 %v500, 53
      %v620 = vpop.permute.xlu0 %619
      %621 = vrot.lane.b32.xlu0 %v501, 53
      %v622 = vpop.permute.xlu0 %621
      %623 = vrot.lane.b32.xlu0 %v502, 53
      %v624 = vpop.permute.xlu0 %623
      %625 = vrot.lane.b32.xlu0 %v503, 53
      %v626 = vpop.permute.xlu0 %625
      %627 = vrot.lane.b32.xlu0 %v513, 53
      %v628 = vpop.permute.xlu0 %627
      %629 = vrot.lane.b32.xlu0 %v514, 53
      %v630 = vpop.permute.xlu0 %629
      %631 = vrot.lane.b32.xlu0 %v515, 53
      %v632 = vpop.permute.xlu0 %631
      %633 = vrot.lane.b32.xlu0 %v511, 53
      %v634 = vpop.permute.xlu0 %633
      %635 = vrot.lane.b32.xlu0 %v525, 53
      %v636 = vpop.permute.xlu0 %635
      %637 = vrot.lane.b32.xlu0 %v526, 53
      %v638 = vpop.permute.xlu0 %637
      %639 = vrot.lane.b32.xlu0 %v527, 53
      %v640 = vpop.permute.xlu0 %639
      %641 = vrot.lane.b32.xlu0 %v523, 53
      %v642 = vpop.permute.xlu0 %641
      %643 = vrot.lane.b32.xlu0 %v537, 53
      %v644 = vpop.permute.xlu0 %643
      %645 = vrot.lane.b32.xlu0 %v538, 53
      %v646 = vpop.permute.xlu0 %645
      %647 = vrot.lane.b32.xlu0 %v539, 53
      %v648 = vpop.permute.xlu0 %647
      %649 = vrot.lane.b32.xlu0 %v535, 53
      %v650 = vpop.permute.xlu0 %649
      %651 = vrot.lane.b32.xlu0 %v549, 53
      %v652 = vpop.permute.xlu0 %651
      %653 = vrot.lane.b32.xlu0 %v550, 53
      %v654 = vpop.permute.xlu0 %653
      %655 = vrot.lane.b32.xlu0 %v551, 53
      %v656 = vpop.permute.xlu0 %655
      %657 = vrot.lane.b32.xlu0 %v547, 53
      %v658 = vpop.permute.xlu0 %657
      %659 = vrot.lane.b32.xlu0 %v561, 53
      %v660 = vpop.permute.xlu0 %659
      %661 = vrot.lane.b32.xlu0 %v562, 53
      %v662 = vpop.permute.xlu0 %661
      %663 = vrot.lane.b32.xlu0 %v563, 53
      %v664 = vpop.permute.xlu0 %663
      %665 = vrot.lane.b32.xlu0 %v559, 53
      %v666 = vpop.permute.xlu0 %665
      %667 = vrot.lane.b32.xlu0 %v573, 53
      %v668 = vpop.permute.xlu0 %667
      %669 = vrot.lane.b32.xlu0 %v574, 53
      %v670 = vpop.permute.xlu0 %669
      %671 = vrot.lane.b32.xlu0 %v575, 53
      %v672 = vpop.permute.xlu0 %671
      %673 = vrot.lane.b32.xlu0 %v571, 53
      %v674 = vpop.permute.xlu0 %673
      %675 = vrot.lane.b32.xlu0 %v585, 53
      %v676 = vpop.permute.xlu0 %675
      %677 = vrot.lane.b32.xlu0 %v586, 53
      %v678 = vpop.permute.xlu0 %677
      %679 = vrot.lane.b32.xlu0 %v587, 53
      %v680 = vpop.permute.xlu0 %679
      %681 = vrot.lane.b32.xlu0 %v583, 53
      %v682 = vpop.permute.xlu0 %681
      %683 = vrot.lane.b32.xlu0 %v597, 53
      %v684 = vpop.permute.xlu0 %683
      %685 = vrot.lane.b32.xlu0 %v598, 53
      %v686 = vpop.permute.xlu0 %685
      %687 = vrot.lane.b32.xlu0 %v599, 53
      %v688 = vpop.permute.xlu0 %687
      %689 = vrot.lane.b32.xlu0 %v595, 53
      %v690 = vpop.permute.xlu0 %689
      %vm691 = vcmask 433152
      %v692 = vsel %vm691, %v620, %v622
      %v693 = vsel %vm691, %v622, %v624
      %v694 = vsel %vm691, %v624, %v626
      %v695 = vsel %vm691, %v628, %v630
      %v696 = vsel %vm691, %v630, %v632
      %v697 = vsel %vm691, %v632, %v634
      %v698 = vsel %vm691, %v636, %v638
      %v699 = vsel %vm691, %v638, %v640
      %v700 = vsel %vm691, %v640, %v642
      %v701 = vsel %vm691, %v644, %v646
      %v702 = vsel %vm691, %v646, %v648
      %v703 = vsel %vm691, %v648, %v650
      %v704 = vsel %vm691, %v652, %v654
      %v705 = vsel %vm691, %v654, %v656
      %v706 = vsel %vm691, %v656, %v658
      %v707 = vsel %vm691, %v660, %v662
      %v708 = vsel %vm691, %v662, %v664
      %v709 = vsel %vm691, %v664, %v666
      %v710 = vsel %vm691, %v668, %v670
      %v711 = vsel %vm691, %v670, %v672
      %v712 = vsel %vm691, %v672, %v674
      %v713 = vsel %vm691, %v676, %v678
      %v714 = vsel %vm691, %v678, %v680
      %v715 = vsel %vm691, %v680, %v682
      %v716 = vsel %vm691, %v684, %v686
      %v717 = vsel %vm691, %v686, %v688
      %v718 = vsel %vm691, %v688, %v690
      %vm746 = vcmask 130048
      %v748 = vsel %vm746, %v617, 0
      %750 = vmatprep.subr.bf16.mxu0 %v693
      %751 = vmatpush1.bf16.msra.mxu0 %v692
      %752 = vmatprep.subr.bf16.mxu0 %v696
      %753 = vmatpush1.bf16.msra.mxu0 %v695
      %754 = vmatprep.subr.bf16.mxu0 %v699
      %755 = vmatpush1.bf16.msra.mxu0 %v698
      %756 = vmatprep.subr.bf16.mxu0 %v702
      %757 = vmatpush1.bf16.msra.mxu0 %v701
      %758 = vmatprep.subr.bf16.mxu0 %v705
      %759 = vmatpush1.bf16.msra.mxu0 %v704
      %760 = vmatprep.subr.bf16.mxu0 %v708
      %761 = vmatpush1.bf16.msra.mxu0 %v707
      %762 = vmatprep.subr.bf16.mxu0 %v711
      %763 = vmatpush1.bf16.msra.mxu0 %v710
      %764 = vmatprep.subr.bf16.mxu0 %v714
      %765 = vmatpush1.bf16.msra.mxu0 %v713
      %766 = vmatprep.subr.bf16.mxu0 %v717
      %767 = vmatpush1.bf16.msra.mxu0 %v716
      %768 = vmatprep.subr.bf16.mxu0 0
      %769 = vmatpush1.bf16.msra.mxu0 0
      %770 = vmatprep.subr.bf16.mxu0 0
      %771 = vmatpush1.bf16.msra.mxu0 0
      %772 = vmatprep.subr.bf16.mxu0 0
      %773 = vmatpush1.bf16.msra.mxu0 0
      %774 = vmatprep.subr.bf16.mxu0 0
      %775 = vmatpush1.bf16.msra.mxu0 0
      %776 = vmatprep.subr.bf16.mxu0 0
      %777 = vmatpush1.bf16.msra.mxu0 0
      %778 = vmatprep.subr.bf16.mxu0 0
      %779 = vmatpush1.bf16.msra.mxu0 0
      %780 = vmatprep.subr.bf16.mxu0 0
      %781 = vmatpush1.bf16.msra.mxu0 0
      %782 = vmatprep.mubr.bf16.mxu0 %v748
      %783 = vmatmul.mubr.bf16.gmra.mrb[0].mxu0 %v616
      %v784 = vpop.f32.mrb[0].mxu0
      %v785 = vadd.f32 %v603, %v784
      %v786 = vpop.f32.mrb[0].mxu0
      %v787 = vadd.f32 %v603, %v786
      %v788 = vpop.f32.mrb[0].mxu0
      %v789 = vadd.f32 %v608, %v788
      %v790 = vpop.f32.mrb[0].mxu0
      %v791 = vadd.f32 %v608, %v790
      %792 = vdwg.mxu0
      %793 = vmatprep.subr.bf16.mxu0 0
      %794 = vmatpush1.bf16.msra.mxu0 %v694
      %795 = vmatprep.subr.bf16.mxu0 0
      %796 = vmatpush1.bf16.msra.mxu0 %v697
      %797 = vmatprep.subr.bf16.mxu0 0
      %798 = vmatpush1.bf16.msra.mxu0 %v700
      %799 = vmatprep.subr.bf16.mxu0 0
      %800 = vmatpush1.bf16.msra.mxu0 %v703
      %801 = vmatprep.subr.bf16.mxu0 0
      %802 = vmatpush1.bf16.msra.mxu0 %v706
      %803 = vmatprep.subr.bf16.mxu0 0
      %804 = vmatpush1.bf16.msra.mxu0 %v709
      %805 = vmatprep.subr.bf16.mxu0 0
      %806 = vmatpush1.bf16.msra.mxu0 %v712
      %807 = vmatprep.subr.bf16.mxu0 0
      %808 = vmatpush1.bf16.msra.mxu0 %v715
      %809 = vmatprep.subr.bf16.mxu0 0
      %810 = vmatpush1.bf16.msra.mxu0 %v718
      %811 = vmatprep.subr.bf16.mxu0 0
      %812 = vmatpush1.bf16.msra.mxu0 0
      %813 = vmatprep.subr.bf16.mxu0 0
      %814 = vmatpush1.bf16.msra.mxu0 0
      %815 = vmatprep.subr.bf16.mxu0 0
      %816 = vmatpush1.bf16.msra.mxu0 0
      %817 = vmatprep.subr.bf16.mxu0 0
      %818 = vmatpush1.bf16.msra.mxu0 0
      %819 = vmatprep.subr.bf16.mxu0 0
      %820 = vmatpush1.bf16.msra.mxu0 0
      %821 = vmatprep.subr.bf16.mxu0 0
      %822 = vmatpush1.bf16.msra.mxu0 0
      %823 = vmatprep.subr.bf16.mxu0 0
      %824 = vmatpush1.bf16.msra.mxu0 0
      %825 = vmatprep.mubr.bf16.mxu0 %v748
      %826 = vmatmul.mubr.bf16.gmra.mrb[0].mxu0 %v616
      %v827 = vpop.f32.mrb[0].mxu0
      %v828 = vadd.f32 %v603, %v827
      %v829 = vpop.f32.mrb[0].mxu0
      %v830 = vpop.f32.mrb[0].mxu0
      %v831 = vadd.f32 %v608, %v830
      %v832 = vpop.f32.mrb[0].mxu0
      %833 = vdwg.mxu0
      %v834 = vmax.f32 %v785, 0.0
      %v835 = vmax.f32 %v787, 0.0
      %v836 = vmax.f32 %v828, 0.0
      %v837 = vmax.f32 %v789, 0.0
      %v838 = vmax.f32 %v791, 0.0
      %v839 = vmax.f32 %v831, 0.0
      %v841 = vlaneseq
      %v842 = vshrl.u32 %v841, 7
      %v843 = vsub.s32 0, %v842
      %v844 = vrot.slane %v469, %v843
      %v845 = vlaneseq
      %v846 = vshrl.u32 %v845, 7
      %v847 = vsub.s32 1, %v846
      %v848 = vrot.slane %v469, %v847
      %v849 = vlaneseq
      %v850 = vshrl.u32 %v849, 7
      %v851 = vsub.s32 2, %v850
      %v852 = vrot.slane %v469, %v851
      %v856 = vmul.f32 %v834, %v844
      %v857 = vmul.f32 %v835, %v848
      %v858 = vmul.f32 %v836, %v852
      %v859 = vmul.f32 %v837, %v844
      %v860 = vmul.f32 %v838, %v848
      %v861 = vmul.f32 %v839, %v852
      %v862 = vpack.c.bf16 %v859, %v856
      %v863 = vpack.c.bf16 %v860, %v857
      %v864 = vpack.c.bf16 %v861, %v858
      %865 = vst [vmem:[#allocation2 + $0x8] sm:$0xff] %v862
      %866 = vst [vmem:[#allocation2 + $0x10] sm:$0xff] %v863
      %867 = vst [vmem:[#allocation2 + $0x18] sm:$0xff] %v864
      %v868 = vld [vmem:[%s2] sm:$0xff]
      %v869 = vld [vmem:[%s2 + $0x8] sm:$0xff]
      %s870 = scalar_lea.vmem %s3, 16
      %v871 = vld [vmem:[%s870] sm:$0xff]
      %v872 = vld [vmem:[%s870 + $0x8] sm:$0xff]
      %v873 = vld [vmem:[#allocation2] sm:$0xff]
      %v874 = vld [vmem:[#allocation2 + $0x8] sm:$0xff]
      %v875 = vld [vmem:[#allocation2 + $0x10] sm:$0xff]
      %v876 = vld [vmem:[#allocation2 + $0x18] sm:$0xff]
      %v877 = vld [vmem:[#allocation2 + $0x8] sm:$0xff]
      %v878 = vld [vmem:[#allocation2 + $0x10] sm:$0xff]
      %v879 = vld [vmem:[#allocation2 + $0x18] sm:$0xff]
      %v880 = vld [vmem:[#allocation2 + $0x20] sm:$0xff]
      %885 = vrot.lane.b32.xlu0 %v873, 126
      %v886 = vpop.permute.xlu0 %885
      %887 = vrot.lane.b32.xlu0 %v874, 126
      %v888 = vpop.permute.xlu0 %887
      %889 = vrot.lane.b32.xlu0 %v875, 126
      %v890 = vpop.permute.xlu0 %889
      %891 = vrot.lane.b32.xlu0 %v876, 126
      %v892 = vpop.permute.xlu0 %891
      %v893 = vsel %vm524, %v886, %v888
      %v894 = vsel %vm524, %v888, %v890
      %v895 = vsel %vm524, %v890, %v892
      %896 = vrot.lane.b32.xlu0 %v873, 124
      %v897 = vpop.permute.xlu0 %896
      %898 = vrot.lane.b32.xlu0 %v874, 124
      %v899 = vpop.permute.xlu0 %898
      %900 = vrot.lane.b32.xlu0 %v875, 124
      %v901 = vpop.permute.xlu0 %900
      %902 = vrot.lane.b32.xlu0 %v876, 124
      %v903 = vpop.permute.xlu0 %902
      %vm904 = vcmask 1014784
      %v905 = vsel %vm904, %v897, %v899
      %v906 = vsel %vm904, %v899, %v901
      %v907 = vsel %vm904, %v901, %v903
      %908 = vrot.lane.b32.xlu0 %v873, 80
      %v909 = vpop.permute.xlu0 %908
      %910 = vrot.lane.b32.xlu0 %v874, 80
      %v911 = vpop.permute.xlu0 %910
      %912 = vrot.lane.b32.xlu0 %v875, 80
      %v913 = vpop.permute.xlu0 %912
      %914 = vrot.lane.b32.xlu0 %v876, 80
      %v915 = vpop.permute.xlu0 %914
      %v916 = vsel %vm572, %v909, %v911
      %v917 = vsel %vm572, %v911, %v913
      %v918 = vsel %vm572, %v913, %v915
      %919 = vrot.lane.b32.xlu0 %v874, 78
      %v920 = vpop.permute.xlu0 %919
      %921 = vrot.lane.b32.xlu0 %v875, 78
      %v922 = vpop.permute.xlu0 %921
      %923 = vrot.lane.b32.xlu0 %v876, 78
      %v924 = vpop.permute.xlu0 %923
      %v925 = vsel %vm596, %v920, %v922
      %v926 = vsel %vm596, %v922, %v924
      %931 = vrot.lane.b32.xlu0 %v877, 76
      %v932 = vpop.permute.xlu0 %931
      %933 = vrot.lane.b32.xlu0 %v878, 76
      %v934 = vpop.permute.xlu0 %933
      %935 = vrot.lane.b32.xlu0 %v879, 76
      %v936 = vpop.permute.xlu0 %935
      %937 = vrot.lane.b32.xlu0 %v880, 76
      %v938 = vpop.permute.xlu0 %937
      %vm939 = vcmask 621568
      %v940 = vsel %vm939, %v932, %v934
      %v941 = vsel %vm939, %v934, %v936
      %v942 = vsel %vm939, %v936, %v938
      %943 = vrot.lane.b32.xlu0 %v877, 32
      %v944 = vpop.permute.xlu0 %943
      %945 = vrot.lane.b32.xlu0 %v878, 32
      %v946 = vpop.permute.xlu0 %945
      %947 = vrot.lane.b32.xlu0 %v879, 32
      %v948 = vpop.permute.xlu0 %947
      %949 = vrot.lane.b32.xlu0 %v880, 32
      %v950 = vpop.permute.xlu0 %949
      %vm951 = vcmask 261120
      %v952 = vsel %vm951, %v944, %v946
      %v953 = vsel %vm951, %v946, %v948
      %v954 = vsel %vm951, %v948, %v950
      %955 = vrot.lane.b32.xlu0 %v877, 30
      %v956 = vpop.permute.xlu0 %955
      %957 = vrot.lane.b32.xlu0 %v878, 30
      %v958 = vpop.permute.xlu0 %957
      %959 = vrot.lane.b32.xlu0 %v879, 30
      %v960 = vpop.permute.xlu0 %959
      %961 = vrot.lane.b32.xlu0 %v880, 30
      %v962 = vpop.permute.xlu0 %961
      %vm963 = vcmask 244736
      %v964 = vsel %vm963, %v956, %v958
      %v965 = vsel %vm963, %v958, %v960
      %v966 = vsel %vm963, %v960, %v962
      %967 = vrot.lane.b32.xlu0 %v877, 28
      %v968 = vpop.permute.xlu0 %967
      %969 = vrot.lane.b32.xlu0 %v878, 28
      %v970 = vpop.permute.xlu0 %969
      %971 = vrot.lane.b32.xlu0 %v879, 28
      %v972 = vpop.permute.xlu0 %971
      %973 = vrot.lane.b32.xlu0 %v880, 28
      %v974 = vpop.permute.xlu0 %973
      %vm975 = vcmask 228352
      %v976 = vsel %vm975, %v968, %v970
      %v977 = vsel %vm975, %v970, %v972
      %v978 = vsel %vm975, %v972, %v974
      %980 = vset.pattern.permute.xlu0 0
      %981 = vperm.xlu0 %980, %v871
      %v982 = vpop.permute.xlu0 %981
      %985 = vset.pattern.permute.xlu0 0
      %986 = vperm.xlu0 %985, %v872
      %v987 = vpop.permute.xlu0 %986
      %v991 = vunpack.c.l.b16 %v868
      %v992 = vunpack.c.h.b16 %v868
      %v993 = vunpack.c.l.b16 %v869
      %v994 = vunpack.c.h.b16 %v869
      %v995 = vpack.c.b16 %v993, %v991
      %v996 = vpack.c.b16 %v994, %v992
      %998 = vrot.lane.b32.xlu0 %v873, 50
      %v999 = vpop.permute.xlu0 %998
      %1000 = vrot.lane.b32.xlu0 %v874, 50
      %v1001 = vpop.permute.xlu0 %1000
      %1002 = vrot.lane.b32.xlu0 %v875, 50
      %v1003 = vpop.permute.xlu0 %1002
      %1004 = vrot.lane.b32.xlu0 %v876, 50
      %v1005 = vpop.permute.xlu0 %1004
      %1006 = vrot.lane.b32.xlu0 %v893, 50
      %v1007 = vpop.permute.xlu0 %1006
      %1008 = vrot.lane.b32.xlu0 %v894, 50
      %v1009 = vpop.permute.xlu0 %1008
      %1010 = vrot.lane.b32.xlu0 %v895, 50
      %v1011 = vpop.permute.xlu0 %1010
      %1012 = vrot.lane.b32.xlu0 %v892, 50
      %v1013 = vpop.permute.xlu0 %1012
      %1014 = vrot.lane.b32.xlu0 %v905, 50
      %v1015 = vpop.permute.xlu0 %1014
      %1016 = vrot.lane.b32.xlu0 %v906, 50
      %v1017 = vpop.permute.xlu0 %1016
      %1018 = vrot.lane.b32.xlu0 %v907, 50
      %v1019 = vpop.permute.xlu0 %1018
      %1020 = vrot.lane.b32.xlu0 %v903, 50
      %v1021 = vpop.permute.xlu0 %1020
      %1022 = vrot.lane.b32.xlu0 %v916, 50
      %v1023 = vpop.permute.xlu0 %1022
      %1024 = vrot.lane.b32.xlu0 %v917, 50
      %v1025 = vpop.permute.xlu0 %1024
      %1026 = vrot.lane.b32.xlu0 %v918, 50
      %v1027 = vpop.permute.xlu0 %1026
      %1028 = vrot.lane.b32.xlu0 %v915, 50
      %v1029 = vpop.permute.xlu0 %1028
      %1030 = vrot.lane.b32.xlu0 %v920, 50
      %v1031 = vpop.permute.xlu0 %1030
      %1032 = vrot.lane.b32.xlu0 %v925, 50
      %v1033 = vpop.permute.xlu0 %1032
      %1034 = vrot.lane.b32.xlu0 %v926, 50
      %v1035 = vpop.permute.xlu0 %1034
      %1036 = vrot.lane.b32.xlu0 %v924, 50
      %v1037 = vpop.permute.xlu0 %1036
      %1038 = vrot.lane.b32.xlu0 %v932, 50
      %v1039 = vpop.permute.xlu0 %1038
      %1040 = vrot.lane.b32.xlu0 %v940, 50
      %v1041 = vpop.permute.xlu0 %1040
      %1042 = vrot.lane.b32.xlu0 %v941, 50
      %v1043 = vpop.permute.xlu0 %1042
      %1044 = vrot.lane.b32.xlu0 %v942, 50
      %v1045 = vpop.permute.xlu0 %1044
      %1046 = vrot.lane.b32.xlu0 %v944, 50
      %v1047 = vpop.permute.xlu0 %1046
      %1048 = vrot.lane.b32.xlu0 %v952, 50
      %v1049 = vpop.permute.xlu0 %1048
      %1050 = vrot.lane.b32.xlu0 %v953, 50
      %v1051 = vpop.permute.xlu0 %1050
      %1052 = vrot.lane.b32.xlu0 %v954, 50
      %v1053 = vpop.permute.xlu0 %1052
      %1054 = vrot.lane.b32.xlu0 %v956, 50
      %v1055 = vpop.permute.xlu0 %1054
      %1056 = vrot.lane.b32.xlu0 %v964, 50
      %v1057 = vpop.permute.xlu0 %1056
      %1058 = vrot.lane.b32.xlu0 %v965, 50
      %v1059 = vpop.permute.xlu0 %1058
      %1060 = vrot.lane.b32.xlu0 %v966, 50
      %v1061 = vpop.permute.xlu0 %1060
      %1062 = vrot.lane.b32.xlu0 %v968, 50
      %v1063 = vpop.permute.xlu0 %1062
      %1064 = vrot.lane.b32.xlu0 %v976, 50
      %v1065 = vpop.permute.xlu0 %1064
      %1066 = vrot.lane.b32.xlu0 %v977, 50
      %v1067 = vpop.permute.xlu0 %1066
      %1068 = vrot.lane.b32.xlu0 %v978, 50
      %v1069 = vpop.permute.xlu0 %1068
      %vm1070 = vcmask 408576
      %v1071 = vsel %vm1070, %v999, %v1001
      %v1072 = vsel %vm1070, %v1001, %v1003
      %v1073 = vsel %vm1070, %v1003, %v1005
      %v1074 = vsel %vm1070, %v1007, %v1009
      %v1075 = vsel %vm1070, %v1009, %v1011
      %v1076 = vsel %vm1070, %v1011, %v1013
      %v1077 = vsel %vm1070, %v1015, %v1017
      %v1078 = vsel %vm1070, %v1017, %v1019
      %v1079 = vsel %vm1070, %v1019, %v1021
      %v1080 = vsel %vm1070, %v1023, %v1025
      %v1081 = vsel %vm1070, %v1025, %v1027
      %v1082 = vsel %vm1070, %v1027, %v1029
      %v1083 = vsel %vm1070, %v1031, %v1033
      %v1084 = vsel %vm1070, %v1033, %v1035
      %v1085 = vsel %vm1070, %v1035, %v1037
      %v1086 = vsel %vm1070, %v1039, %v1041
      %v1087 = vsel %vm1070, %v1041, %v1043
      %v1088 = vsel %vm1070, %v1043, %v1045
      %v1089 = vsel %vm1070, %v1047, %v1049
      %v1090 = vsel %vm1070, %v1049, %v1051
      %v1091 = vsel %vm1070, %v1051, %v1053
      %v1092 = vsel %vm1070, %v1055, %v1057
      %v1093 = vsel %vm1070, %v1057, %v1059
      %v1094 = vsel %vm1070, %v1059, %v1061
      %v1095 = vsel %vm1070, %v1063, %v1065
      %v1096 = vsel %vm1070, %v1065, %v1067
      %v1097 = vsel %vm1070, %v1067, %v1069
      %v1126 = vsel %vm746, %v996, 0
      %1128 = vmatprep.subr.bf16.mxu0 %v1072
      %1129 = vmatpush1.bf16.msra.mxu0 %v1071
      %1130 = vmatprep.subr.bf16.mxu0 %v1075
      %1131 = vmatpush1.bf16.msra.mxu0 %v1074
      %1132 = vmatprep.subr.bf16.mxu0 %v1078
      %1133 = vmatpush1.bf16.msra.mxu0 %v1077
      %1134 = vmatprep.subr.bf16.mxu0 %v1081
      %1135 = vmatpush1.bf16.msra.mxu0 %v1080
      %1136 = vmatprep.subr.bf16.mxu0 %v1084
      %1137 = vmatpush1.bf16.msra.mxu0 %v1083
      %1138 = vmatprep.subr.bf16.mxu0 %v1087
      %1139 = vmatpush1.bf16.msra.mxu0 %v1086
      %1140 = vmatprep.subr.bf16.mxu0 %v1090
      %1141 = vmatpush1.bf16.msra.mxu0 %v1089
      %1142 = vmatprep.subr.bf16.mxu0 %v1093
      %1143 = vmatpush1.bf16.msra.mxu0 %v1092
      %1144 = vmatprep.subr.bf16.mxu0 %v1096
      %1145 = vmatpush1.bf16.msra.mxu0 %v1095
      %1146 = vmatprep.subr.bf16.mxu0 0
      %1147 = vmatpush1.bf16.msra.mxu0 0
      %1148 = vmatprep.subr.bf16.mxu0 0
      %1149 = vmatpush1.bf16.msra.mxu0 0
      %1150 = vmatprep.subr.bf16.mxu0 0
      %1151 = vmatpush1.bf16.msra.mxu0 0
      %1152 = vmatprep.subr.bf16.mxu0 0
      %1153 = vmatpush1.bf16.msra.mxu0 0
      %1154 = vmatprep.subr.bf16.mxu0 0
      %1155 = vmatpush1.bf16.msra.mxu0 0
      %1156 = vmatprep.subr.bf16.mxu0 0
      %1157 = vmatpush1.bf16.msra.mxu0 0
      %1158 = vmatprep.subr.bf16.mxu0 0
      %1159 = vmatpush1.bf16.msra.mxu0 0
      %1160 = vmatprep.mubr.bf16.mxu0 %v1126
      %1161 = vmatmul.mubr.bf16.gmra.mrb[0].mxu0 %v995
      %v1162 = vpop.f32.mrb[0].mxu0
      %v1163 = vadd.f32 %v982, %v1162
      %v1164 = vpop.f32.mrb[0].mxu0
      %v1165 = vadd.f32 %v982, %v1164
      %v1166 = vpop.f32.mrb[0].mxu0
      %v1167 = vadd.f32 %v987, %v1166
      %v1168 = vpop.f32.mrb[0].mxu0
      %v1169 = vadd.f32 %v987, %v1168
      %1170 = vdwg.mxu0
      %1171 = vmatprep.subr.bf16.mxu0 0
      %1172 = vmatpush1.bf16.msra.mxu0 %v1073
      %1173 = vmatprep.subr.bf16.mxu0 0
      %1174 = vmatpush1.bf16.msra.mxu0 %v1076
      %1175 = vmatprep.subr.bf16.mxu0 0
      %1176 = vmatpush1.bf16.msra.mxu0 %v1079
      %1177 = vmatprep.subr.bf16.mxu0 0
      %1178 = vmatpush1.bf16.msra.mxu0 %v1082
      %1179 = vmatprep.subr.bf16.mxu0 0
      %1180 = vmatpush1.bf16.msra.mxu0 %v1085
      %1181 = vmatprep.subr.bf16.mxu0 0
      %1182 = vmatpush1.bf16.msra.mxu0 %v1088
      %1183 = vmatprep.subr.bf16.mxu0 0
      %1184 = vmatpush1.bf16.msra.mxu0 %v1091
      %1185 = vmatprep.subr.bf16.mxu0 0
      %1186 = vmatpush1.bf16.msra.mxu0 %v1094
      %1187 = vmatprep.subr.bf16.mxu0 0
      %1188 = vmatpush1.bf16.msra.mxu0 %v1097
      %1189 = vmatprep.subr.bf16.mxu0 0
      %1190 = vmatpush1.bf16.msra.mxu0 0
      %1191 = vmatprep.subr.bf16.mxu0 0
      %1192 = vmatpush1.bf16.msra.mxu0 0
      %1193 = vmatprep.subr.bf16.mxu0 0
      %1194 = vmatpush1.bf16.msra.mxu0 0
      %1195 = vmatprep.subr.bf16.mxu0 0
      %1196 = vmatpush1.bf16.msra.mxu0 0
      %1197 = vmatprep.subr.bf16.mxu0 0
      %1198 = vmatpush1.bf16.msra.mxu0 0
      %1199 = vmatprep.subr.bf16.mxu0 0
      %1200 = vmatpush1.bf16.msra.mxu0 0
      %1201 = vmatprep.subr.bf16.mxu0 0
      %1202 = vmatpush1.bf16.msra.mxu0 0
      %1203 = vmatprep.mubr.bf16.mxu0 %v1126
      %1204 = vmatmul.mubr.bf16.gmra.mrb[0].mxu0 %v995
      %v1205 = vpop.f32.mrb[0].mxu0
      %v1206 = vadd.f32 %v982, %v1205
      %v1207 = vpop.f32.mrb[0].mxu0
      %v1208 = vpop.f32.mrb[0].mxu0
      %v1209 = vadd.f32 %v987, %v1208
      %v1210 = vpop.f32.mrb[0].mxu0
      %1211 = vdwg.mxu0
      %v1212 = vmax.f32 %v1163, 0.0
      %v1213 = vmax.f32 %v1165, 0.0
      %v1214 = vmax.f32 %v1206, 0.0
      %v1215 = vmax.f32 %v1167, 0.0
      %v1216 = vmax.f32 %v1169, 0.0
      %v1217 = vmax.f32 %v1209, 0.0
      %v1218 = vmul.f32 %v1212, %v844
      %v1219 = vmul.f32 %v1213, %v848
      %v1220 = vmul.f32 %v1214, %v852
      %v1221 = vmul.f32 %v1215, %v844
      %v1222 = vmul.f32 %v1216, %v848
      %v1223 = vmul.f32 %v1217, %v852
      %v1224 = vpack.c.bf16 %v1221, %v1218
      %v1225 = vpack.c.bf16 %v1222, %v1219
      %v1226 = vpack.c.bf16 %v1223, %v1220
      %1227 = vst [vmem:[#allocation3 + $0x8] sm:$0xff] %v1224
      %1228 = vst [vmem:[#allocation3 + $0x10] sm:$0xff] %v1225
      %1229 = vst [vmem:[#allocation3 + $0x18] sm:$0xff] %v1226
      %s1230 = scalar_lea.vmem %s2, 16
      %v1231 = vld [vmem:[%s1230] sm:$0xff]
      %v1232 = vld [vmem:[%s1230 + $0x8] sm:$0xff]
      %s1233 = scalar_lea.vmem %s3, 32
      %v1234 = vld [vmem:[%s1233] sm:$0xff]
      %v1235 = vld [vmem:[%s1233 + $0x8] sm:$0xff]
      %v1236 = vld [vmem:[#allocation3] sm:$0xff]
      %v1237 = vld [vmem:[#allocation3 + $0x8] sm:$0xff]
      %v1238 = vld [vmem:[#allocation3 + $0x10] sm:$0xff]
      %v1239 = vld [vmem:[#allocation3 + $0x18] sm:$0xff]
      %v1240 = vld [vmem:[#allocation3 + $0x8] sm:$0xff]
      %v1241 = vld [vmem:[#allocation3 + $0x10] sm:$0xff]
      %v1242 = vld [vmem:[#allocation3 + $0x18] sm:$0xff]
      %v1243 = vld [vmem:[#allocation3 + $0x20] sm:$0xff]
      %1248 = vrot.lane.b32.xlu0 %v1236, 124
      %v1249 = vpop.permute.xlu0 %1248
      %1250 = vrot.lane.b32.xlu0 %v1237, 124
      %v1251 = vpop.permute.xlu0 %1250
      %1252 = vrot.lane.b32.xlu0 %v1238, 124
      %v1253 = vpop.permute.xlu0 %1252
      %1254 = vrot.lane.b32.xlu0 %v1239, 124
      %v1255 = vpop.permute.xlu0 %1254
      %v1256 = vsel %vm904, %v1249, %v1251
      %v1257 = vsel %vm904, %v1251, %v1253
      %v1258 = vsel %vm904, %v1253, %v1255
      %1259 = vrot.lane.b32.xlu0 %v1236, 120
      %v1260 = vpop.permute.xlu0 %1259
      %1261 = vrot.lane.b32.xlu0 %v1237, 120
      %v1262 = vpop.permute.xlu0 %1261
      %1263 = vrot.lane.b32.xlu0 %v1238, 120
      %v1264 = vpop.permute.xlu0 %1263
      %1265 = vrot.lane.b32.xlu0 %v1239, 120
      %v1266 = vpop.permute.xlu0 %1265
      %vm1267 = vcmask 982016
      %v1268 = vsel %vm1267, %v1260, %v1262
      %v1269 = vsel %vm1267, %v1262, %v1264
      %v1270 = vsel %vm1267, %v1264, %v1266
      %1271 = vrot.lane.b32.xlu0 %v1236, 32
      %v1272 = vpop.permute.xlu0 %1271
      %1273 = vrot.lane.b32.xlu0 %v1237, 32
      %v1274 = vpop.permute.xlu0 %1273
      %1275 = vrot.lane.b32.xlu0 %v1238, 32
      %v1276 = vpop.permute.xlu0 %1275
      %1277 = vrot.lane.b32.xlu0 %v1239, 32
      %v1278 = vpop.permute.xlu0 %1277
      %v1279 = vsel %vm951, %v1272, %v1274
      %v1280 = vsel %vm951, %v1274, %v1276
      %v1281 = vsel %vm951, %v1276, %v1278
      %1282 = vrot.lane.b32.xlu0 %v1237, 28
      %v1283 = vpop.permute.xlu0 %1282
      %1284 = vrot.lane.b32.xlu0 %v1238, 28
      %v1285 = vpop.permute.xlu0 %1284
      %1286 = vrot.lane.b32.xlu0 %v1239, 28
      %v1287 = vpop.permute.xlu0 %1286
      %v1288 = vsel %vm975, %v1283, %v1285
      %v1289 = vsel %vm975, %v1285, %v1287
      %1294 = vrot.lane.b32.xlu0 %v1240, 24
      %v1295 = vpop.permute.xlu0 %1294
      %1296 = vrot.lane.b32.xlu0 %v1241, 24
      %v1297 = vpop.permute.xlu0 %1296
      %1298 = vrot.lane.b32.xlu0 %v1242, 24
      %v1299 = vpop.permute.xlu0 %1298
      %1300 = vrot.lane.b32.xlu0 %v1243, 24
      %v1301 = vpop.permute.xlu0 %1300
      %vm1302 = vcmask 195584
      %v1303 = vsel %vm1302, %v1295, %v1297
      %v1304 = vsel %vm1302, %v1297, %v1299
      %v1305 = vsel %vm1302, %v1299, %v1301
      %1306 = vrot.lane.b32.xlu0 %v1240, 64
      %v1307 = vpop.permute.xlu0 %1306
      %1308 = vrot.lane.b32.xlu0 %v1241, 64
      %v1309 = vpop.permute.xlu0 %1308
      %1310 = vrot.lane.b32.xlu0 %v1242, 64
      %v1311 = vpop.permute.xlu0 %1310
      %1312 = vrot.lane.b32.xlu0 %v1243, 64
      %v1313 = vpop.permute.xlu0 %1312
      %vm1314 = vcmask 523264
      %v1315 = vsel %vm1314, %v1307, %v1309
      %v1316 = vsel %vm1314, %v1309, %v1311
      %v1317 = vsel %vm1314, %v1311, %v1313
      %1318 = vrot.lane.b32.xlu0 %v1240, 60
      %v1319 = vpop.permute.xlu0 %1318
      %1320 = vrot.lane.b32.xlu0 %v1241, 60
      %v1321 = vpop.permute.xlu0 %1320
      %1322 = vrot.lane.b32.xlu0 %v1242, 60
      %v1323 = vpop.permute.xlu0 %1322
      %1324 = vrot.lane.b32.xlu0 %v1243, 60
      %v1325 = vpop.permute.xlu0 %1324
      %vm1326 = vcmask 490496
      %v1327 = vsel %vm1326, %v1319, %v1321
      %v1328 = vsel %vm1326, %v1321, %v1323
      %v1329 = vsel %vm1326, %v1323, %v1325
      %1330 = vrot.lane.b32.xlu0 %v1240, 56
      %v1331 = vpop.permute.xlu0 %1330
      %1332 = vrot.lane.b32.xlu0 %v1241, 56
      %v1333 = vpop.permute.xlu0 %1332
      %1334 = vrot.lane.b32.xlu0 %v1242, 56
      %v1335 = vpop.permute.xlu0 %1334
      %1336 = vrot.lane.b32.xlu0 %v1243, 56
      %v1337 = vpop.permute.xlu0 %1336
      %vm1338 = vcmask 457728
      %v1339 = vsel %vm1338, %v1331, %v1333
      %v1340 = vsel %vm1338, %v1333, %v1335
      %v1341 = vsel %vm1338, %v1335, %v1337
      %1343 = vset.pattern.permute.xlu0 0
      %1344 = vperm.xlu0 %1343, %v1234
      %v1345 = vpop.permute.xlu0 %1344
      %1348 = vset.pattern.permute.xlu0 0
      %1349 = vperm.xlu0 %1348, %v1235
      %v1350 = vpop.permute.xlu0 %1349
      %v1354 = vunpack.c.l.b16 %v1231
      %v1355 = vunpack.c.h.b16 %v1231
      %v1356 = vunpack.c.l.b16 %v1232
      %v1357 = vunpack.c.h.b16 %v1232
      %v1358 = vpack.c.b16 %v1356, %v1354
      %v1359 = vpack.c.b16 %v1357, %v1355
      %1361 = vrot.lane.b32.xlu0 %v1236, 100
      %v1362 = vpop.permute.xlu0 %1361
      %1363 = vrot.lane.b32.xlu0 %v1237, 100
      %v1364 = vpop.permute.xlu0 %1363
      %1365 = vrot.lane.b32.xlu0 %v1238, 100
      %v1366 = vpop.permute.xlu0 %1365
      %1367 = vrot.lane.b32.xlu0 %v1239, 100
      %v1368 = vpop.permute.xlu0 %1367
      %1369 = vrot.lane.b32.xlu0 %v1256, 100
      %v1370 = vpop.permute.xlu0 %1369
      %1371 = vrot.lane.b32.xlu0 %v1257, 100
      %v1372 = vpop.permute.xlu0 %1371
      %1373 = vrot.lane.b32.xlu0 %v1258, 100
      %v1374 = vpop.permute.xlu0 %1373
      %1375 = vrot.lane.b32.xlu0 %v1255, 100
      %v1376 = vpop.permute.xlu0 %1375
      %1377 = vrot.lane.b32.xlu0 %v1268, 100
      %v1378 = vpop.permute.xlu0 %1377
      %1379 = vrot.lane.b32.xlu0 %v1269, 100
      %v1380 = vpop.permute.xlu0 %1379
      %1381 = vrot.lane.b32.xlu0 %v1270, 100
      %v1382 = vpop.permute.xlu0 %1381
      %1383 = vrot.lane.b32.xlu0 %v1266, 100
      %v1384 = vpop.permute.xlu0 %1383
      %1385 = vrot.lane.b32.xlu0 %v1279, 100
      %v1386 = vpop.permute.xlu0 %1385
      %1387 = vrot.lane.b32.xlu0 %v1280, 100
      %v1388 = vpop.permute.xlu0 %1387
      %1389 = vrot.lane.b32.xlu0 %v1281, 100
      %v1390 = vpop.permute.xlu0 %1389
      %1391 = vrot.lane.b32.xlu0 %v1278, 100
      %v1392 = vpop.permute.xlu0 %1391
      %1393 = vrot.lane.b32.xlu0 %v1283, 100
      %v1394 = vpop.permute.xlu0 %1393
      %1395 = vrot.lane.b32.xlu0 %v1288, 100
      %v1396 = vpop.permute.xlu0 %1395
      %1397 = vrot.lane.b32.xlu0 %v1289, 100
      %v1398 = vpop.permute.xlu0 %1397
      %1399 = vrot.lane.b32.xlu0 %v1287, 100
      %v1400 = vpop.permute.xlu0 %1399
      %1401 = vrot.lane.b32.xlu0 %v1295, 100
      %v1402 = vpop.permute.xlu0 %1401
      %1403 = vrot.lane.b32.xlu0 %v1303, 100
      %v1404 = vpop.permute.xlu0 %1403
      %1405 = vrot.lane.b32.xlu0 %v1304, 100
      %v1406 = vpop.permute.xlu0 %1405
      %1407 = vrot.lane.b32.xlu0 %v1305, 100
      %v1408 = vpop.permute.xlu0 %1407
      %1409 = vrot.lane.b32.xlu0 %v1315, 100
      %v1410 = vpop.permute.xlu0 %1409
      %1411 = vrot.lane.b32.xlu0 %v1316, 100
      %v1412 = vpop.permute.xlu0 %1411
      %1413 = vrot.lane.b32.xlu0 %v1317, 100
      %v1414 = vpop.permute.xlu0 %1413
      %1415 = vrot.lane.b32.xlu0 %v1313, 100
      %v1416 = vpop.permute.xlu0 %1415
      %1417 = vrot.lane.b32.xlu0 %v1327, 100
      %v1418 = vpop.permute.xlu0 %1417
      %1419 = vrot.lane.b32.xlu0 %v1328, 100
      %v1420 = vpop.permute.xlu0 %1419
      %1421 = vrot.lane.b32.xlu0 %v1329, 100
      %v1422 = vpop.permute.xlu0 %1421
      %1423 = vrot.lane.b32.xlu0 %v1325, 100
      %v1424 = vpop.permute.xlu0 %1423
      %1425 = vrot.lane.b32.xlu0 %v1339, 100
      %v1426 = vpop.permute.xlu0 %1425
      %1427 = vrot.lane.b32.xlu0 %v1340, 100
      %v1428 = vpop.permute.xlu0 %1427
      %1429 = vrot.lane.b32.xlu0 %v1341, 100
      %v1430 = vpop.permute.xlu0 %1429
      %1431 = vrot.lane.b32.xlu0 %v1337, 100
      %v1432 = vpop.permute.xlu0 %1431
      %vm1433 = vcmask 818176
      %v1434 = vsel %vm1433, %v1362, %v1364
      %v1435 = vsel %vm1433, %v1364, %v1366
      %v1436 = vsel %vm1433, %v1366, %v1368
      %v1437 = vsel %vm1433, %v1370, %v1372
      %v1438 = vsel %vm1433, %v1372, %v1374
      %v1439 = vsel %vm1433, %v1374, %v1376
      %v1440 = vsel %vm1433, %v1378, %v1380
      %v1441 = vsel %vm1433, %v1380, %v1382
      %v1442 = vsel %vm1433, %v1382, %v1384
      %v1443 = vsel %vm1433, %v1386, %v1388
      %v1444 = vsel %vm1433, %v1388, %v1390
      %v1445 = vsel %vm1433, %v1390, %v1392
      %v1446 = vsel %vm1433, %v1394, %v1396
      %v1447 = vsel %vm1433, %v1396, %v1398
      %v1448 = vsel %vm1433, %v1398, %v1400
      %v1449 = vsel %vm1433, %v1402, %v1404
      %v1450 = vsel %vm1433, %v1404, %v1406
      %v1451 = vsel %vm1433, %v1406, %v1408
      %v1452 = vsel %vm1433, %v1410, %v1412
      %v1453 = vsel %vm1433, %v1412, %v1414
      %v1454 = vsel %vm1433, %v1414, %v1416
      %v1455 = vsel %vm1433, %v1418, %v1420
      %v1456 = vsel %vm1433, %v1420, %v1422
      %v1457 = vsel %vm1433, %v1422, %v1424
      %v1458 = vsel %vm1433, %v1426, %v1428
      %v1459 = vsel %vm1433, %v1428, %v1430
      %v1460 = vsel %vm1433, %v1430, %v1432
      %v1489 = vsel %vm746, %v1359, 0
      %1491 = vmatprep.subr.bf16.mxu0 %v1435
      %1492 = vmatpush1.bf16.msra.mxu0 %v1434
      %1493 = vmatprep.subr.bf16.mxu0 %v1438
      %1494 = vmatpush1.bf16.msra.mxu0 %v1437
      %1495 = vmatprep.subr.bf16.mxu0 %v1441
      %1496 = vmatpush1.bf16.msra.mxu0 %v1440
      %1497 = vmatprep.subr.bf16.mxu0 %v1444
      %1498 = vmatpush1.bf16.msra.mxu0 %v1443
      %1499 = vmatprep.subr.bf16.mxu0 %v1447
      %1500 = vmatpush1.bf16.msra.mxu0 %v1446
      %1501 = vmatprep.subr.bf16.mxu0 %v1450
      %1502 = vmatpush1.bf16.msra.mxu0 %v1449
      %1503 = vmatprep.subr.bf16.mxu0 %v1453
      %1504 = vmatpush1.bf16.msra.mxu0 %v1452
      %1505 = vmatprep.subr.bf16.mxu0 %v1456
      %1506 = vmatpush1.bf16.msra.mxu0 %v1455
      %1507 = vmatprep.subr.bf16.mxu0 %v1459
      %1508 = vmatpush1.bf16.msra.mxu0 %v1458
      %1509 = vmatprep.subr.bf16.mxu0 0
      %1510 = vmatpush1.bf16.msra.mxu0 0
      %1511 = vmatprep.subr.bf16.mxu0 0
      %1512 = vmatpush1.bf16.msra.mxu0 0
      %1513 = vmatprep.subr.bf16.mxu0 0
      %1514 = vmatpush1.bf16.msra.mxu0 0
      %1515 = vmatprep.subr.bf16.mxu0 0
      %1516 = vmatpush1.bf16.msra.mxu0 0
      %1517 = vmatprep.subr.bf16.mxu0 0
      %1518 = vmatpush1.bf16.msra.mxu0 0
      %1519 = vmatprep.subr.bf16.mxu0 0
      %1520 = vmatpush1.bf16.msra.mxu0 0
      %1521 = vmatprep.subr.bf16.mxu0 0
      %1522 = vmatpush1.bf16.msra.mxu0 0
      %1523 = vmatprep.mubr.bf16.mxu0 %v1489
      %1524 = vmatmul.mubr.bf16.gmra.mrb[0].mxu0 %v1358
      %v1525 = vpop.f32.mrb[0].mxu0
      %v1526 = vadd.f32 %v1345, %v1525
      %v1527 = vpop.f32.mrb[0].mxu0
      %v1528 = vadd.f32 %v1345, %v1527
      %v1529 = vpop.f32.mrb[0].mxu0
      %v1530 = vadd.f32 %v1350, %v1529
      %v1531 = vpop.f32.mrb[0].mxu0
      %v1532 = vadd.f32 %v1350, %v1531
      %1533 = vdwg.mxu0
      %1534 = vmatprep.subr.bf16.mxu0 0
      %1535 = vmatpush1.bf16.msra.mxu0 %v1436
      %1536 = vmatprep.subr.bf16.mxu0 0
      %1537 = vmatpush1.bf16.msra.mxu0 %v1439
      %1538 = vmatprep.subr.bf16.mxu0 0
      %1539 = vmatpush1.bf16.msra.mxu0 %v1442
      %1540 = vmatprep.subr.bf16.mxu0 0
      %1541 = vmatpush1.bf16.msra.mxu0 %v1445
      %1542 = vmatprep.subr.bf16.mxu0 0
      %1543 = vmatpush1.bf16.msra.mxu0 %v1448
      %1544 = vmatprep.subr.bf16.mxu0 0
      %1545 = vmatpush1.bf16.msra.mxu0 %v1451
      %1546 = vmatprep.subr.bf16.mxu0 0
      %1547 = vmatpush1.bf16.msra.mxu0 %v1454
      %1548 = vmatprep.subr.bf16.mxu0 0
      %1549 = vmatpush1.bf16.msra.mxu0 %v1457
      %1550 = vmatprep.subr.bf16.mxu0 0
      %1551 = vmatpush1.bf16.msra.mxu0 %v1460
      %1552 = vmatprep.subr.bf16.mxu0 0
      %1553 = vmatpush1.bf16.msra.mxu0 0
      %1554 = vmatprep.subr.bf16.mxu0 0
      %1555 = vmatpush1.bf16.msra.mxu0 0
      %1556 = vmatprep.subr.bf16.mxu0 0
      %1557 = vmatpush1.bf16.msra.mxu0 0
      %1558 = vmatprep.subr.bf16.mxu0 0
      %1559 = vmatpush1.bf16.msra.mxu0 0
      %1560 = vmatprep.subr.bf16.mxu0 0
      %1561 = vmatpush1.bf16.msra.mxu0 0
      %1562 = vmatprep.subr.bf16.mxu0 0
      %1563 = vmatpush1.bf16.msra.mxu0 0
      %1564 = vmatprep.subr.bf16.mxu0 0
      %1565 = vmatpush1.bf16.msra.mxu0 0
      %1566 = vmatprep.mubr.bf16.mxu0 %v1489
      %1567 = vmatmul.mubr.bf16.gmra.mrb[0].mxu0 %v1358
      %v1568 = vpop.f32.mrb[0].mxu0
      %v1569 = vadd.f32 %v1345, %v1568
      %v1570 = vpop.f32.mrb[0].mxu0
      %v1571 = vpop.f32.mrb[0].mxu0
      %v1572 = vadd.f32 %v1350, %v1571
      %v1573 = vpop.f32.mrb[0].mxu0
      %1574 = vdwg.mxu0
      %v1575 = vmax.f32 %v1526, 0.0
      %v1576 = vmax.f32 %v1528, 0.0
      %v1577 = vmax.f32 %v1569, 0.0
      %v1578 = vmax.f32 %v1530, 0.0
      %v1579 = vmax.f32 %v1532, 0.0
      %v1580 = vmax.f32 %v1572, 0.0
      %v1581 = vmul.f32 %v1575, %v844
      %v1582 = vmul.f32 %v1576, %v848
      %v1583 = vmul.f32 %v1577, %v852
      %v1584 = vmul.f32 %v1578, %v844
      %v1585 = vmul.f32 %v1579, %v848
      %v1586 = vmul.f32 %v1580, %v852
      %v1587 = vpack.c.bf16 %v1584, %v1581
      %v1588 = vpack.c.bf16 %v1585, %v1582
      %v1589 = vpack.c.bf16 %v1586, %v1583
      %v1590 = vld [vmem:[%s4] sm:$0xf]
      %v1591 = vld [vmem:[%s4 + $0x4] sm:$0xf]
      %v1592 = vld [vmem:[%s4 + $0x8] sm:$0xf]
      %v1593 = vld [vmem:[%s4 + $0xc] sm:$0xf]
      %v1594 = vld [vmem:[%s4 + $0x10] sm:$0xf]
      %v1595 = vld [vmem:[%s4 + $0x14] sm:$0xf]
      %v1596 = vld [vmem:[%s5] sm:$0xff]
      %v1597 = vld [vmem:[%s5 + $0x8] sm:$0xff]
      %v1598 = vld [vmem:[%s5 + $0x10] sm:$0xff]
      %v1599 = vld [vmem:[%s5 + $0x18] sm:$0xff]
      %v1600 = vld [vmem:[%s5 + $0x20] sm:$0xff]
      %v1601 = vld [vmem:[%s5 + $0x28] sm:$0xff]
      %1603 = vset.pattern.permute.xlu0 0
      %1604 = vperm.xlu0 %1603, %v1596
      %v1605 = vpop.permute.xlu0 %1604
      %1608 = vset.pattern.permute.xlu0 0
      %1609 = vperm.xlu0 %1608, %v1597
      %v1610 = vpop.permute.xlu0 %1609
      %1613 = vset.pattern.permute.xlu0 0
      %1614 = vperm.xlu0 %1613, %v1598
      %v1615 = vpop.permute.xlu0 %1614
      %1618 = vset.pattern.permute.xlu0 0
      %1619 = vperm.xlu0 %1618, %v1599
      %v1620 = vpop.permute.xlu0 %1619
      %1623 = vset.pattern.permute.xlu0 0
      %1624 = vperm.xlu0 %1623, %v1600
      %v1625 = vpop.permute.xlu0 %1624
      %1628 = vset.pattern.permute.xlu0 0
      %1629 = vperm.xlu0 %1628, %v1601
      %v1630 = vpop.permute.xlu0 %1629
      %v1638 = vunpack.c.l.b16 %v1590
      %v1639 = vunpack.c.l.b16 %v1591
      %v1640 = vunpack.c.l.b16 %v1592
      %v1641 = vunpack.c.l.b16 %v1593
      %v1642 = vunpack.c.l.b16 %v1594
      %v1643 = vunpack.c.l.b16 %v1595
      %v1644 = vpack.c.b16 %v1639, %v1638
      %v1645 = vpack.c.b16 %v1641, %v1640
      %v1646 = vpack.c.b16 %v1643, %v1642
      %vm1647 = vcmask 392192
      %v1649 = vsel %vm1647, %v1644, 0
      %v1652 = vsel %vm1647, %v1645, 0
      %v1655 = vsel %vm1647, %v1646, 0
      %1657 = vmatprep.subr.bf16.mxu0 %v863
      %1658 = vmatpush1.bf16.msra.mxu0 %v862
      %1659 = vmatprep.subr.bf16.mxu0 %v1225
      %1660 = vmatpush1.bf16.msra.mxu0 %v1224
      %1661 = vmatprep.subr.bf16.mxu0 %v1588
      %1662 = vmatpush1.bf16.msra.mxu0 %v1587
      %1663 = vmatprep.subr.bf16.mxu0 0
      %1664 = vmatpush1.bf16.msra.mxu0 0
      %1665 = vmatprep.subr.bf16.mxu0 0
      %1666 = vmatpush1.bf16.msra.mxu0 0
      %1667 = vmatprep.subr.bf16.mxu0 0
      %1668 = vmatpush1.bf16.msra.mxu0 0
      %1669 = vmatprep.subr.bf16.mxu0 0
      %1670 = vmatpush1.bf16.msra.mxu0 0
      %1671 = vmatprep.subr.bf16.mxu0 0
      %1672 = vmatpush1.bf16.msra.mxu0 0
      %1673 = vmatprep.subr.bf16.mxu0 0
      %1674 = vmatpush1.bf16.msra.mxu0 0
      %1675 = vmatprep.subr.bf16.mxu0 0
      %1676 = vmatpush1.bf16.msra.mxu0 0
      %1677 = vmatprep.subr.bf16.mxu0 0
      %1678 = vmatpush1.bf16.msra.mxu0 0
      %1679 = vmatprep.subr.bf16.mxu0 0
      %1680 = vmatpush1.bf16.msra.mxu0 0
      %1681 = vmatprep.subr.bf16.mxu0 0
      %1682 = vmatpush1.bf16.msra.mxu0 0
      %1683 = vmatprep.subr.bf16.mxu0 0
      %1684 = vmatpush1.bf16.msra.mxu0 0
      %1685 = vmatprep.subr.bf16.mxu0 0
      %1686 = vmatpush1.bf16.msra.mxu0 0
      %1687 = vmatprep.subr.bf16.mxu0 0
      %1688 = vmatpush1.bf16.msra.mxu0 0
      %1689 = vmatprep.mubr.bf16.mxu0 0
      %1690 = vmatmul.mubr.bf16.gmra.mrb[0].mxu0 %v1649
      %v1691 = vpop.f32.mrb[0].mxu0
      %v1692 = vadd.f32 %v1605, %v1691
      %v1693 = vpop.f32.mrb[0].mxu0
      %v1694 = vadd.f32 %v1605, %v1693
      %v1695 = vpop.f32.mrb[0].mxu0
      %v1696 = vadd.f32 %v1610, %v1695
      %v1697 = vpop.f32.mrb[0].mxu0
      %v1698 = vadd.f32 %v1610, %v1697
      %1699 = vmatprep.mubr.bf16.mxu0 0
      %1700 = vmatmul.mubr.bf16.gmra.mrb[0].mxu0 %v1652
      %v1701 = vpop.f32.mrb[0].mxu0
      %v1702 = vadd.f32 %v1615, %v1701
      %v1703 = vpop.f32.mrb[0].mxu0
      %v1704 = vadd.f32 %v1615, %v1703
      %v1705 = vpop.f32.mrb[0].mxu0
      %v1706 = vadd.f32 %v1620, %v1705
      %v1707 = vpop.f32.mrb[0].mxu0
      %v1708 = vadd.f32 %v1620, %v1707
      %1709 = vmatprep.mubr.bf16.mxu0 0
      %1710 = vmatmul.mubr.bf16.gmra.mrb[0].mxu0 %v1655
      %v1711 = vpop.f32.mrb[0].mxu0
      %v1712 = vadd.f32 %v1625, %v1711
      %v1713 = vpop.f32.mrb[0].mxu0
      %v1714 = vadd.f32 %v1625, %v1713
      %v1715 = vpop.f32.mrb[0].mxu0
      %v1716 = vadd.f32 %v1630, %v1715
      %v1717 = vpop.f32.mrb[0].mxu0
      %v1718 = vadd.f32 %v1630, %v1717
      %1719 = vdwg.mxu0
      %1720 = vmatprep.subr.bf16.mxu0 0
      %1721 = vmatpush1.bf16.msra.mxu0 %v864
      %1722 = vmatprep.subr.bf16.mxu0 0
      %1723 = vmatpush1.bf16.msra.mxu0 %v1226
      %1724 = vmatprep.subr.bf16.mxu0 0
      %1725 = vmatpush1.bf16.msra.mxu0 %v1589
      %1726 = vmatprep.subr.bf16.mxu0 0
      %1727 = vmatpush1.bf16.msra.mxu0 0
      %1728 = vmatprep.subr.bf16.mxu0 0
      %1729 = vmatpush1.bf16.msra.mxu0 0
      %1730 = vmatprep.subr.bf16.mxu0 0
      %1731 = vmatpush1.bf16.msra.mxu0 0
      %1732 = vmatprep.subr.bf16.mxu0 0
      %1733 = vmatpush1.bf16.msra.mxu0 0
      %1734 = vmatprep.subr.bf16.mxu0 0
      %1735 = vmatpush1.bf16.msra.mxu0 0
      %1736 = vmatprep.subr.bf16.mxu0 0
      %1737 = vmatpush1.bf16.msra.mxu0 0
      %1738 = vmatprep.subr.bf16.mxu0 0
      %1739 = vmatpush1.bf16.msra.mxu0 0
      %1740 = vmatprep.subr.bf16.mxu0 0
      %1741 = vmatpush1.bf16.msra.mxu0 0
      %1742 = vmatprep.subr.bf16.mxu0 0
      %1743 = vmatpush1.bf16.msra.mxu0 0
      %1744 = vmatprep.subr.bf16.mxu0 0
      %1745 = vmatpush1.bf16.msra.mxu0 0
      %1746 = vmatprep.subr.bf16.mxu0 0
      %1747 = vmatpush1.bf16.msra.mxu0 0
      %1748 = vmatprep.subr.bf16.mxu0 0
      %1749 = vmatpush1.bf16.msra.mxu0 0
      %1750 = vmatprep.subr.bf16.mxu0 0
      %1751 = vmatpush1.bf16.msra.mxu0 0
      %1752 = vmatprep.mubr.bf16.mxu0 0
      %1753 = vmatmul.mubr.bf16.gmra.mrb[0].mxu0 %v1649
      %v1754 = vpop.f32.mrb[0].mxu0
      %v1755 = vadd.f32 %v1605, %v1754
      %v1756 = vpop.f32.mrb[0].mxu0
      %v1757 = vpop.f32.mrb[0].mxu0
      %v1758 = vadd.f32 %v1610, %v1757
      %v1759 = vpop.f32.mrb[0].mxu0
      %1760 = vmatprep.mubr.bf16.mxu0 0
      %1761 = vmatmul.mubr.bf16.gmra.mrb[0].mxu0 %v1652
      %v1762 = vpop.f32.mrb[0].mxu0
      %v1763 = vadd.f32 %v1615, %v1762
      %v1764 = vpop.f32.mrb[0].mxu0
      %v1765 = vpop.f32.mrb[0].mxu0
      %v1766 = vadd.f32 %v1620, %v1765
      %v1767 = vpop.f32.mrb[0].mxu0
      %1768 = vmatprep.mubr.bf16.mxu0 0
      %1769 = vmatmul.mubr.bf16.gmra.mrb[0].mxu0 %v1655
      %v1770 = vpop.f32.mrb[0].mxu0
      %v1771 = vadd.f32 %v1625, %v1770
      %v1772 = vpop.f32.mrb[0].mxu0
      %v1773 = vpop.f32.mrb[0].mxu0
      %v1774 = vadd.f32 %v1630, %v1773
      %v1775 = vpop.f32.mrb[0].mxu0
      %1776 = vdwg.mxu0
      %v1777 = vmul.f32 %v1692, %v844
      %v1778 = vmul.f32 %v1694, %v848
      %v1779 = vmul.f32 %v1755, %v852
      %v1780 = vmul.f32 %v1696, %v844
      %v1781 = vmul.f32 %v1698, %v848
      %v1782 = vmul.f32 %v1758, %v852
      %v1783 = vmul.f32 %v1702, %v844
      %v1784 = vmul.f32 %v1704, %v848
      %v1785 = vmul.f32 %v1763, %v852
      %v1786 = vmul.f32 %v1706, %v844
      %v1787 = vmul.f32 %v1708, %v848
      %v1788 = vmul.f32 %v1766, %v852
      %v1789 = vmul.f32 %v1712, %v844
      %v1790 = vmul.f32 %v1714, %v848
      %v1791 = vmul.f32 %v1771, %v852
      %v1792 = vmul.f32 %v1716, %v844
      %v1793 = vmul.f32 %v1718, %v848
      %v1794 = vmul.f32 %v1774, %v852
      %v1795 = vpack.c.bf16 %v1780, %v1777
      %v1796 = vpack.c.bf16 %v1781, %v1778
      %v1797 = vpack.c.bf16 %v1782, %v1779
      %v1798 = vpack.c.bf16 %v1786, %v1783
      %v1799 = vpack.c.bf16 %v1787, %v1784
      %v1800 = vpack.c.bf16 %v1788, %v1785
      %v1801 = vpack.c.bf16 %v1792, %v1789
      %v1802 = vpack.c.bf16 %v1793, %v1790
      %v1803 = vpack.c.bf16 %v1794, %v1791
      %1804 = vst [vmem:[#allocation4 + $0x8] sm:$0xff] %v1795
      %1805 = vst [vmem:[#allocation4 + $0x10] sm:$0xff] %v1796
      %1806 = vst [vmem:[#allocation4 + $0x18] sm:$0xff] %v1797
      %1807 = vst [vmem:[#allocation4 + $0x30] sm:$0xff] %v1798
      %1808 = vst [vmem:[#allocation4 + $0x38] sm:$0xff] %v1799
      %1809 = vst [vmem:[#allocation4 + $0x40] sm:$0xff] %v1800
      %1810 = vst [vmem:[#allocation4 + $0x58] sm:$0xff] %v1801
      %1811 = vst [vmem:[#allocation4 + $0x60] sm:$0xff] %v1802
      %1812 = vst [vmem:[#allocation4 + $0x68] sm:$0xff] %v1803
      %v1813 = vld [vmem:[#allocation4] sm:$0xff]
      %v1814 = vld [vmem:[#allocation4 + $0x8] sm:$0xff]
      %v1815 = vld [vmem:[#allocation4 + $0x10] sm:$0xff]
      %v1816 = vld [vmem:[#allocation4 + $0x18] sm:$0xff]
      %v1817 = vld [vmem:[#allocation4 + $0x28] sm:$0xff]
      %v1818 = vld [vmem:[#allocation4 + $0x30] sm:$0xff]
      %v1819 = vld [vmem:[#allocation4 + $0x38] sm:$0xff]
      %v1820 = vld [vmem:[#allocation4 + $0x40] sm:$0xff]
      %v1821 = vld [vmem:[#allocation4 + $0x50] sm:$0xff]
      %v1822 = vld [vmem:[#allocation4 + $0x58] sm:$0xff]
      %v1823 = vld [vmem:[#allocation4 + $0x60] sm:$0xff]
      %v1824 = vld [vmem:[#allocation4 + $0x68] sm:$0xff]
      %v1825 = vld [vmem:[#allocation4 + $0x8] sm:$0xff]
      %v1826 = vld [vmem:[#allocation4 + $0x10] sm:$0xff]
      %v1827 = vld [vmem:[#allocation4 + $0x18] sm:$0xff]
      %v1828 = vld [vmem:[#allocation4 + $0x20] sm:$0xff]
      %v1829 = vld [vmem:[#allocation4 + $0x30] sm:$0xff]
      %v1830 = vld [vmem:[#allocation4 + $0x38] sm:$0xff]
      %v1831 = vld [vmem:[#allocation4 + $0x40] sm:$0xff]
      %v1832 = vld [vmem:[#allocation4 + $0x48] sm:$0xff]
      %v1833 = vld [vmem:[#allocation4 + $0x58] sm:$0xff]
      %v1834 = vld [vmem:[#allocation4 + $0x60] sm:$0xff]
      %v1835 = vld [vmem:[#allocation4 + $0x68] sm:$0xff]
      %v1836 = vld [vmem:[#allocation4 + $0x70] sm:$0xff]
      %1849 = vrot.lane.b32.xlu0 %v1813, 127
      %v1850 = vpop.permute.xlu0 %1849
      %1851 = vrot.lane.b32.xlu0 %v1814, 127
      %v1852 = vpop.permute.xlu0 %1851
      %1853 = vrot.lane.b32.xlu0 %v1815, 127
      %v1854 = vpop.permute.xlu0 %1853
      %1855 = vrot.lane.b32.xlu0 %v1816, 127
      %v1856 = vpop.permute.xlu0 %1855
      %1857 = vrot.lane.b32.xlu0 %v1817, 127
      %v1858 = vpop.permute.xlu0 %1857
      %1859 = vrot.lane.b32.xlu0 %v1818, 127
      %v1860 = vpop.permute.xlu0 %1859
      %1861 = vrot.lane.b32.xlu0 %v1819, 127
      %v1862 = vpop.permute.xlu0 %1861
      %1863 = vrot.lane.b32.xlu0 %v1820, 127
      %v1864 = vpop.permute.xlu0 %1863
      %1865 = vrot.lane.b32.xlu0 %v1821, 127
      %v1866 = vpop.permute.xlu0 %1865
      %1867 = vrot.lane.b32.xlu0 %v1822, 127
      %v1868 = vpop.permute.xlu0 %1867
      %1869 = vrot.lane.b32.xlu0 %v1823, 127
      %v1870 = vpop.permute.xlu0 %1869
      %1871 = vrot.lane.b32.xlu0 %v1824, 127
      %v1872 = vpop.permute.xlu0 %1871
      %v1873 = vsel %vm512, %v1850, %v1852
      %v1874 = vsel %vm512, %v1852, %v1854
      %v1875 = vsel %vm512, %v1854, %v1856
      %v1876 = vsel %vm512, %v1858, %v1860
      %v1877 = vsel %vm512, %v1860, %v1862
      %v1878 = vsel %vm512, %v1862, %v1864
      %v1879 = vsel %vm512, %v1866, %v1868
      %v1880 = vsel %vm512, %v1868, %v1870
      %v1881 = vsel %vm512, %v1870, %v1872
      %1882 = vrot.lane.b32.xlu0 %v1813, 126
      %v1883 = vpop.permute.xlu0 %1882
      %1884 = vrot.lane.b32.xlu0 %v1814, 126
      %v1885 = vpop.permute.xlu0 %1884
      %1886 = vrot.lane.b32.xlu0 %v1815, 126
      %v1887 = vpop.permute.xlu0 %1886
      %1888 = vrot.lane.b32.xlu0 %v1816, 126
      %v1889 = vpop.permute.xlu0 %1888
      %1890 = vrot.lane.b32.xlu0 %v1817, 126
      %v1891 = vpop.permute.xlu0 %1890
      %1892 = vrot.lane.b32.xlu0 %v1818, 126
      %v1893 = vpop.permute.xlu0 %1892
      %1894 = vrot.lane.b32.xlu0 %v1819, 126
      %v1895 = vpop.permute.xlu0 %1894
      %1896 = vrot.lane.b32.xlu0 %v1820, 126
      %v1897 = vpop.permute.xlu0 %1896
      %1898 = vrot.lane.b32.xlu0 %v1821, 126
      %v1899 = vpop.permute.xlu0 %1898
      %1900 = vrot.lane.b32.xlu0 %v1822, 126
      %v1901 = vpop.permute.xlu0 %1900
      %1902 = vrot.lane.b32.xlu0 %v1823, 126
      %v1903 = vpop.permute.xlu0 %1902
      %1904 = vrot.lane.b32.xlu0 %v1824, 126
      %v1905 = vpop.permute.xlu0 %1904
      %v1906 = vsel %vm524, %v1883, %v1885
      %v1907 = vsel %vm524, %v1885, %v1887
      %v1908 = vsel %vm524, %v1887, %v1889
      %v1909 = vsel %vm524, %v1891, %v1893
      %v1910 = vsel %vm524, %v1893, %v1895
      %v1911 = vsel %vm524, %v1895, %v1897
      %v1912 = vsel %vm524, %v1899, %v1901
      %v1913 = vsel %vm524, %v1901, %v1903
      %v1914 = vsel %vm524, %v1903, %v1905
      %1915 = vrot.lane.b32.xlu0 %v1813, 104
      %v1916 = vpop.permute.xlu0 %1915
      %1917 = vrot.lane.b32.xlu0 %v1814, 104
      %v1918 = vpop.permute.xlu0 %1917
      %1919 = vrot.lane.b32.xlu0 %v1815, 104
      %v1920 = vpop.permute.xlu0 %1919
      %1921 = vrot.lane.b32.xlu0 %v1816, 104
      %v1922 = vpop.permute.xlu0 %1921
      %1923 = vrot.lane.b32.xlu0 %v1817, 104
      %v1924 = vpop.permute.xlu0 %1923
      %1925 = vrot.lane.b32.xlu0 %v1818, 104
      %v1926 = vpop.permute.xlu0 %1925
      %1927 = vrot.lane.b32.xlu0 %v1819, 104
      %v1928 = vpop.permute.xlu0 %1927
      %1929 = vrot.lane.b32.xlu0 %v1820, 104
      %v1930 = vpop.permute.xlu0 %1929
      %1931 = vrot.lane.b32.xlu0 %v1821, 104
      %v1932 = vpop.permute.xlu0 %1931
      %1933 = vrot.lane.b32.xlu0 %v1822, 104
      %v1934 = vpop.permute.xlu0 %1933
      %1935 = vrot.lane.b32.xlu0 %v1823, 104
      %v1936 = vpop.permute.xlu0 %1935
      %1937 = vrot.lane.b32.xlu0 %v1824, 104
      %v1938 = vpop.permute.xlu0 %1937
      %v1939 = vsel %vm536, %v1916, %v1918
      %v1940 = vsel %vm536, %v1918, %v1920
      %v1941 = vsel %vm536, %v1920, %v1922
      %v1942 = vsel %vm536, %v1924, %v1926
      %v1943 = vsel %vm536, %v1926, %v1928
      %v1944 = vsel %vm536, %v1928, %v1930
      %v1945 = vsel %vm536, %v1932, %v1934
      %v1946 = vsel %vm536, %v1934, %v1936
      %v1947 = vsel %vm536, %v1936, %v1938
      %1948 = vrot.lane.b32.xlu0 %v1814, 103
      %v1949 = vpop.permute.xlu0 %1948
      %1950 = vrot.lane.b32.xlu0 %v1815, 103
      %v1951 = vpop.permute.xlu0 %1950
      %1952 = vrot.lane.b32.xlu0 %v1816, 103
      %v1953 = vpop.permute.xlu0 %1952
      %1954 = vrot.lane.b32.xlu0 %v1818, 103
      %v1955 = vpop.permute.xlu0 %1954
      %1956 = vrot.lane.b32.xlu0 %v1819, 103
      %v1957 = vpop.permute.xlu0 %1956
      %1958 = vrot.lane.b32.xlu0 %v1820, 103
      %v1959 = vpop.permute.xlu0 %1958
      %1960 = vrot.lane.b32.xlu0 %v1822, 103
      %v1961 = vpop.permute.xlu0 %1960
      %1962 = vrot.lane.b32.xlu0 %v1823, 103
      %v1963 = vpop.permute.xlu0 %1962
      %1964 = vrot.lane.b32.xlu0 %v1824, 103
      %v1965 = vpop.permute.xlu0 %1964
      %v1966 = vsel %vm548, %v1949, %v1951
      %v1967 = vsel %vm548, %v1951, %v1953
      %v1968 = vsel %vm548, %v1955, %v1957
      %v1969 = vsel %vm548, %v1957, %v1959
      %v1970 = vsel %vm548, %v1961, %v1963
      %v1971 = vsel %vm548, %v1963, %v1965
      %1984 = vrot.lane.b32.xlu0 %v1825, 102
      %v1985 = vpop.permute.xlu0 %1984
      %1986 = vrot.lane.b32.xlu0 %v1826, 102
      %v1987 = vpop.permute.xlu0 %1986
      %1988 = vrot.lane.b32.xlu0 %v1827, 102
      %v1989 = vpop.permute.xlu0 %1988
      %1990 = vrot.lane.b32.xlu0 %v1828, 102
      %v1991 = vpop.permute.xlu0 %1990
      %1992 = vrot.lane.b32.xlu0 %v1829, 102
      %v1993 = vpop.permute.xlu0 %1992
      %1994 = vrot.lane.b32.xlu0 %v1830, 102
      %v1995 = vpop.permute.xlu0 %1994
      %1996 = vrot.lane.b32.xlu0 %v1831, 102
      %v1997 = vpop.permute.xlu0 %1996
      %1998 = vrot.lane.b32.xlu0 %v1832, 102
      %v1999 = vpop.permute.xlu0 %1998
      %2000 = vrot.lane.b32.xlu0 %v1833, 102
      %v2001 = vpop.permute.xlu0 %2000
      %2002 = vrot.lane.b32.xlu0 %v1834, 102
      %v2003 = vpop.permute.xlu0 %2002
      %2004 = vrot.lane.b32.xlu0 %v1835, 102
      %v2005 = vpop.permute.xlu0 %2004
      %2006 = vrot.lane.b32.xlu0 %v1836, 102
      %v2007 = vpop.permute.xlu0 %2006
      %v2008 = vsel %vm560, %v1985, %v1987
      %v2009 = vsel %vm560, %v1987, %v1989
      %v2010 = vsel %vm560, %v1989, %v1991
      %v2011 = vsel %vm560, %v1993, %v1995
      %v2012 = vsel %vm560, %v1995, %v1997
      %v2013 = vsel %vm560, %v1997, %v1999
      %v2014 = vsel %vm560, %v2001, %v2003
      %v2015 = vsel %vm560, %v2003, %v2005
      %v2016 = vsel %vm560, %v2005, %v2007
      %2017 = vrot.lane.b32.xlu0 %v1825, 80
      %v2018 = vpop.permute.xlu0 %2017
      %2019 = vrot.lane.b32.xlu0 %v1826, 80
      %v2020 = vpop.permute.xlu0 %2019
      %2021 = vrot.lane.b32.xlu0 %v1827, 80
      %v2022 = vpop.permute.xlu0 %2021
      %2023 = vrot.lane.b32.xlu0 %v1828, 80
      %v2024 = vpop.permute.xlu0 %2023
      %2025 = vrot.lane.b32.xlu0 %v1829, 80
      %v2026 = vpop.permute.xlu0 %2025
      %2027 = vrot.lane.b32.xlu0 %v1830, 80
      %v2028 = vpop.permute.xlu0 %2027
      %2029 = vrot.lane.b32.xlu0 %v1831, 80
      %v2030 = vpop.permute.xlu0 %2029
      %2031 = vrot.lane.b32.xlu0 %v1832, 80
      %v2032 = vpop.permute.xlu0 %2031
      %2033 = vrot.lane.b32.xlu0 %v1833, 80
      %v2034 = vpop.permute.xlu0 %2033
      %2035 = vrot.lane.b32.xlu0 %v1834, 80
      %v2036 = vpop.permute.xlu0 %2035
      %2037 = vrot.lane.b32.xlu0 %v1835, 80
      %v2038 = vpop.permute.xlu0 %2037
      %2039 = vrot.lane.b32.xlu0 %v1836, 80
      %v2040 = vpop.permute.xlu0 %2039
      %v2041 = vsel %vm572, %v2018, %v2020
      %v2042 = vsel %vm572, %v2020, %v2022
      %v2043 = vsel %vm572, %v2022, %v2024
      %v2044 = vsel %vm572, %v2026, %v2028
      %v2045 = vsel %vm572, %v2028, %v2030
      %v2046 = vsel %vm572, %v2030, %v2032
      %v2047 = vsel %vm572, %v2034, %v2036
      %v2048 = vsel %vm572, %v2036, %v2038
      %v2049 = vsel %vm572, %v2038, %v2040
      %2050 = vrot.lane.b32.xlu0 %v1825, 79
      %v2051 = vpop.permute.xlu0 %2050
      %2052 = vrot.lane.b32.xlu0 %v1826, 79
      %v2053 = vpop.permute.xlu0 %2052
      %2054 = vrot.lane.b32.xlu0 %v1827, 79
      %v2055 = vpop.permute.xlu0 %2054
      %2056 = vrot.lane.b32.xlu0 %v1828, 79
      %v2057 = vpop.permute.xlu0 %2056
      %2058 = vrot.lane.b32.xlu0 %v1829, 79
      %v2059 = vpop.permute.xlu0 %2058
      %2060 = vrot.lane.b32.xlu0 %v1830, 79
      %v2061 = vpop.permute.xlu0 %2060
      %2062 = vrot.lane.b32.xlu0 %v1831, 79
      %v2063 = vpop.permute.xlu0 %2062
      %2064 = vrot.lane.b32.xlu0 %v1832, 79
      %v2065 = vpop.permute.xlu0 %2064
      %2066 = vrot.lane.b32.xlu0 %v1833, 79
      %v2067 = vpop.permute.xlu0 %2066
      %2068 = vrot.lane.b32.xlu0 %v1834, 79
      %v2069 = vpop.permute.xlu0 %2068
      %2070 = vrot.lane.b32.xlu0 %v1835, 79
      %v2071 = vpop.permute.xlu0 %2070
      %2072 = vrot.lane.b32.xlu0 %v1836, 79
      %v2073 = vpop.permute.xlu0 %2072
      %v2074 = vsel %vm584, %v2051, %v2053
      %v2075 = vsel %vm584, %v2053, %v2055
      %v2076 = vsel %vm584, %v2055, %v2057
      %v2077 = vsel %vm584, %v2059, %v2061
      %v2078 = vsel %vm584, %v2061, %v2063
      %v2079 = vsel %vm584, %v2063, %v2065
      %v2080 = vsel %vm584, %v2067, %v2069
      %v2081 = vsel %vm584, %v2069, %v2071
      %v2082 = vsel %vm584, %v2071, %v2073
      %2083 = vrot.lane.b32.xlu0 %v1825, 78
      %v2084 = vpop.permute.xlu0 %2083
      %2085 = vrot.lane.b32.xlu0 %v1826, 78
      %v2086 = vpop.permute.xlu0 %2085
      %2087 = vrot.lane.b32.xlu0 %v1827, 78
      %v2088 = vpop.permute.xlu0 %2087
      %2089 = vrot.lane.b32.xlu0 %v1828, 78
      %v2090 = vpop.permute.xlu0 %2089
      %2091 = vrot.lane.b32.xlu0 %v1829, 78
      %v2092 = vpop.permute.xlu0 %2091
      %2093 = vrot.lane.b32.xlu0 %v1830, 78
      %v2094 = vpop.permute.xlu0 %2093
      %2095 = vrot.lane.b32.xlu0 %v1831, 78
      %v2096 = vpop.permute.xlu0 %2095
      %2097 = vrot.lane.b32.xlu0 %v1832, 78
      %v2098 = vpop.permute.xlu0 %2097
      %2099 = vrot.lane.b32.xlu0 %v1833, 78
      %v2100 = vpop.permute.xlu0 %2099
      %2101 = vrot.lane.b32.xlu0 %v1834, 78
      %v2102 = vpop.permute.xlu0 %2101
      %2103 = vrot.lane.b32.xlu0 %v1835, 78
      %v2104 = vpop.permute.xlu0 %2103
      %2105 = vrot.lane.b32.xlu0 %v1836, 78
      %v2106 = vpop.permute.xlu0 %2105
      %v2107 = vsel %vm596, %v2084, %v2086
      %v2108 = vsel %vm596, %v2086, %v2088
      %v2109 = vsel %vm596, %v2088, %v2090
      %v2110 = vsel %vm596, %v2092, %v2094
      %v2111 = vsel %vm596, %v2094, %v2096
      %v2112 = vsel %vm596, %v2096, %v2098
      %v2113 = vsel %vm596, %v2100, %v2102
      %v2114 = vsel %vm596, %v2102, %v2104
      %v2115 = vsel %vm596, %v2104, %v2106
      %2116 = vrot.lane.b32.xlu0 %v1813, 25
      %v2117 = vpop.permute.xlu0 %2116
      %2118 = vrot.lane.b32.xlu0 %v1814, 25
      %v2119 = vpop.permute.xlu0 %2118
      %2120 = vrot.lane.b32.xlu0 %v1815, 25
      %v2121 = vpop.permute.xlu0 %2120
      %2122 = vrot.lane.b32.xlu0 %v1816, 25
      %v2123 = vpop.permute.xlu0 %2122
      %2124 = vrot.lane.b32.xlu0 %v1817, 25
      %v2125 = vpop.permute.xlu0 %2124
      %2126 = vrot.lane.b32.xlu0 %v1818, 25
      %v2127 = vpop.permute.xlu0 %2126
      %2128 = vrot.lane.b32.xlu0 %v1819, 25
      %v2129 = vpop.permute.xlu0 %2128
      %2130 = vrot.lane.b32.xlu0 %v1820, 25
      %v2131 = vpop.permute.xlu0 %2130
      %2132 = vrot.lane.b32.xlu0 %v1821, 25
      %v2133 = vpop.permute.xlu0 %2132
      %2134 = vrot.lane.b32.xlu0 %v1822, 25
      %v2135 = vpop.permute.xlu0 %2134
      %2136 = vrot.lane.b32.xlu0 %v1823, 25
      %v2137 = vpop.permute.xlu0 %2136
      %2138 = vrot.lane.b32.xlu0 %v1824, 25
      %v2139 = vpop.permute.xlu0 %2138
      %vm2140 = vcmask 203776
      %v2141 = vsel %vm2140, %v2117, %v2119
      %v2142 = vsel %vm2140, %v2119, %v2121
      %v2143 = vsel %vm2140, %v2121, %v2123
      %v2144 = vsel %vm2140, %v2125, %v2127
      %v2145 = vsel %vm2140, %v2127, %v2129
      %v2146 = vsel %vm2140, %v2129, %v2131
      %v2147 = vsel %vm2140, %v2133, %v2135
      %v2148 = vsel %vm2140, %v2135, %v2137
      %v2149 = vsel %vm2140, %v2137, %v2139
      %2150 = vrot.lane.b32.xlu0 %v1813, 23
      %v2151 = vpop.permute.xlu0 %2150
      %2152 = vrot.lane.b32.xlu0 %v1814, 23
      %v2153 = vpop.permute.xlu0 %2152
      %2154 = vrot.lane.b32.xlu0 %v1815, 23
      %v2155 = vpop.permute.xlu0 %2154
      %2156 = vrot.lane.b32.xlu0 %v1816, 23
      %v2157 = vpop.permute.xlu0 %2156
      %2158 = vrot.lane.b32.xlu0 %v1817, 23
      %v2159 = vpop.permute.xlu0 %2158
      %2160 = vrot.lane.b32.xlu0 %v1818, 23
      %v2161 = vpop.permute.xlu0 %2160
      %2162 = vrot.lane.b32.xlu0 %v1819, 23
      %v2163 = vpop.permute.xlu0 %2162
      %2164 = vrot.lane.b32.xlu0 %v1820, 23
      %v2165 = vpop.permute.xlu0 %2164
      %2166 = vrot.lane.b32.xlu0 %v1821, 23
      %v2167 = vpop.permute.xlu0 %2166
      %2168 = vrot.lane.b32.xlu0 %v1822, 23
      %v2169 = vpop.permute.xlu0 %2168
      %2170 = vrot.lane.b32.xlu0 %v1823, 23
      %v2171 = vpop.permute.xlu0 %2170
      %2172 = vrot.lane.b32.xlu0 %v1824, 23
      %v2173 = vpop.permute.xlu0 %2172
      %vm2174 = vcmask 187392
      %v2175 = vsel %vm2174, %v2151, %v2153
      %v2176 = vsel %vm2174, %v2153, %v2155
      %v2177 = vsel %vm2174, %v2155, %v2157
      %v2178 = vsel %vm2174, %v2159, %v2161
      %v2179 = vsel %vm2174, %v2161, %v2163
      %v2180 = vsel %vm2174, %v2163, %v2165
      %v2181 = vsel %vm2174, %v2167, %v2169
      %v2182 = vsel %vm2174, %v2169, %v2171
      %v2183 = vsel %vm2174, %v2171, %v2173
      %2184 = vrot.lane.b32.xlu0 %v1813, 21
      %v2185 = vpop.permute.xlu0 %2184
      %2186 = vrot.lane.b32.xlu0 %v1814, 21
      %v2187 = vpop.permute.xlu0 %2186
      %2188 = vrot.lane.b32.xlu0 %v1815, 21
      %v2189 = vpop.permute.xlu0 %2188
      %2190 = vrot.lane.b32.xlu0 %v1816, 21
      %v2191 = vpop.permute.xlu0 %2190
      %2192 = vrot.lane.b32.xlu0 %v1817, 21
      %v2193 = vpop.permute.xlu0 %2192
      %2194 = vrot.lane.b32.xlu0 %v1818, 21
      %v2195 = vpop.permute.xlu0 %2194
      %2196 = vrot.lane.b32.xlu0 %v1819, 21
      %v2197 = vpop.permute.xlu0 %2196
      %2198 = vrot.lane.b32.xlu0 %v1820, 21
      %v2199 = vpop.permute.xlu0 %2198
      %2200 = vrot.lane.b32.xlu0 %v1821, 21
      %v2201 = vpop.permute.xlu0 %2200
      %2202 = vrot.lane.b32.xlu0 %v1822, 21
      %v2203 = vpop.permute.xlu0 %2202
      %2204 = vrot.lane.b32.xlu0 %v1823, 21
      %v2205 = vpop.permute.xlu0 %2204
      %2206 = vrot.lane.b32.xlu0 %v1824, 21
      %v2207 = vpop.permute.xlu0 %2206
      %vm2208 = vcmask 171008
      %v2209 = vsel %vm2208, %v2185, %v2187
      %v2210 = vsel %vm2208, %v2187, %v2189
      %v2211 = vsel %vm2208, %v2189, %v2191
      %v2212 = vsel %vm2208, %v2193, %v2195
      %v2213 = vsel %vm2208, %v2195, %v2197
      %v2214 = vsel %vm2208, %v2197, %v2199
      %v2215 = vsel %vm2208, %v2201, %v2203
      %v2216 = vsel %vm2208, %v2203, %v2205
      %v2217 = vsel %vm2208, %v2205, %v2207
      %2218 = vrot.lane.b32.xlu0 %v1813, 105
      %v2219 = vpop.permute.xlu0 %2218
      %2220 = vrot.lane.b32.xlu0 %v1814, 105
      %v2221 = vpop.permute.xlu0 %2220
      %2222 = vrot.lane.b32.xlu0 %v1815, 105
      %v2223 = vpop.permute.xlu0 %2222
      %2224 = vrot.lane.b32.xlu0 %v1816, 105
      %v2225 = vpop.permute.xlu0 %2224
      %2226 = vrot.lane.b32.xlu0 %v1817, 105
      %v2227 = vpop.permute.xlu0 %2226
      %2228 = vrot.lane.b32.xlu0 %v1818, 105
      %v2229 = vpop.permute.xlu0 %2228
      %2230 = vrot.lane.b32.xlu0 %v1819, 105
      %v2231 = vpop.permute.xlu0 %2230
      %2232 = vrot.lane.b32.xlu0 %v1820, 105
      %v2233 = vpop.permute.xlu0 %2232
      %2234 = vrot.lane.b32.xlu0 %v1821, 105
      %v2235 = vpop.permute.xlu0 %2234
      %2236 = vrot.lane.b32.xlu0 %v1822, 105
      %v2237 = vpop.permute.xlu0 %2236
      %2238 = vrot.lane.b32.xlu0 %v1823, 105
      %v2239 = vpop.permute.xlu0 %2238
      %2240 = vrot.lane.b32.xlu0 %v1824, 105
      %v2241 = vpop.permute.xlu0 %2240
      %vm2242 = vcmask 859136
      %v2243 = vsel %vm2242, %v2219, %v2221
      %v2244 = vsel %vm2242, %v2221, %v2223
      %v2245 = vsel %vm2242, %v2223, %v2225
      %v2246 = vsel %vm2242, %v2227, %v2229
      %v2247 = vsel %vm2242, %v2229, %v2231
      %v2248 = vsel %vm2242, %v2231, %v2233
      %v2249 = vsel %vm2242, %v2235, %v2237
      %v2250 = vsel %vm2242, %v2237, %v2239
      %v2251 = vsel %vm2242, %v2239, %v2241
      %2252 = vrot.lane.b32.xlu0 %v1825, 101
      %v2253 = vpop.permute.xlu0 %2252
      %2254 = vrot.lane.b32.xlu0 %v1826, 101
      %v2255 = vpop.permute.xlu0 %2254
      %2256 = vrot.lane.b32.xlu0 %v1827, 101
      %v2257 = vpop.permute.xlu0 %2256
      %2258 = vrot.lane.b32.xlu0 %v1828, 101
      %v2259 = vpop.permute.xlu0 %2258
      %2260 = vrot.lane.b32.xlu0 %v1829, 101
      %v2261 = vpop.permute.xlu0 %2260
      %2262 = vrot.lane.b32.xlu0 %v1830, 101
      %v2263 = vpop.permute.xlu0 %2262
      %2264 = vrot.lane.b32.xlu0 %v1831, 101
      %v2265 = vpop.permute.xlu0 %2264
      %2266 = vrot.lane.b32.xlu0 %v1832, 101
      %v2267 = vpop.permute.xlu0 %2266
      %2268 = vrot.lane.b32.xlu0 %v1833, 101
      %v2269 = vpop.permute.xlu0 %2268
      %2270 = vrot.lane.b32.xlu0 %v1834, 101
      %v2271 = vpop.permute.xlu0 %2270
      %2272 = vrot.lane.b32.xlu0 %v1835, 101
      %v2273 = vpop.permute.xlu0 %2272
      %2274 = vrot.lane.b32.xlu0 %v1836, 101
      %v2275 = vpop.permute.xlu0 %2274
      %vm2276 = vcmask 826368
      %v2277 = vsel %vm2276, %v2253, %v2255
      %v2278 = vsel %vm2276, %v2255, %v2257
      %v2279 = vsel %vm2276, %v2257, %v2259
      %v2280 = vsel %vm2276, %v2261, %v2263
      %v2281 = vsel %vm2276, %v2263, %v2265
      %v2282 = vsel %vm2276, %v2265, %v2267
      %v2283 = vsel %vm2276, %v2269, %v2271
      %v2284 = vsel %vm2276, %v2271, %v2273
      %v2285 = vsel %vm2276, %v2273, %v2275
      %2286 = vrot.lane.b32.xlu0 %v1825, 57
      %v2287 = vpop.permute.xlu0 %2286
      %2288 = vrot.lane.b32.xlu0 %v1826, 57
      %v2289 = vpop.permute.xlu0 %2288
      %2290 = vrot.lane.b32.xlu0 %v1827, 57
      %v2291 = vpop.permute.xlu0 %2290
      %2292 = vrot.lane.b32.xlu0 %v1828, 57
      %v2293 = vpop.permute.xlu0 %2292
      %2294 = vrot.lane.b32.xlu0 %v1829, 57
      %v2295 = vpop.permute.xlu0 %2294
      %2296 = vrot.lane.b32.xlu0 %v1830, 57
      %v2297 = vpop.permute.xlu0 %2296
      %2298 = vrot.lane.b32.xlu0 %v1831, 57
      %v2299 = vpop.permute.xlu0 %2298
      %2300 = vrot.lane.b32.xlu0 %v1832, 57
      %v2301 = vpop.permute.xlu0 %2300
      %2302 = vrot.lane.b32.xlu0 %v1833, 57
      %v2303 = vpop.permute.xlu0 %2302
      %2304 = vrot.lane.b32.xlu0 %v1834, 57
      %v2305 = vpop.permute.xlu0 %2304
      %2306 = vrot.lane.b32.xlu0 %v1835, 57
      %v2307 = vpop.permute.xlu0 %2306
      %2308 = vrot.lane.b32.xlu0 %v1836, 57
      %v2309 = vpop.permute.xlu0 %2308
      %vm2310 = vcmask 465920
      %v2311 = vsel %vm2310, %v2287, %v2289
      %v2312 = vsel %vm2310, %v2289, %v2291
      %v2313 = vsel %vm2310, %v2291, %v2293
      %v2314 = vsel %vm2310, %v2295, %v2297
      %v2315 = vsel %vm2310, %v2297, %v2299
      %v2316 = vsel %vm2310, %v2299, %v2301
      %v2317 = vsel %vm2310, %v2303, %v2305
      %v2318 = vsel %vm2310, %v2305, %v2307
      %v2319 = vsel %vm2310, %v2307, %v2309
      %2320 = vrot.lane.b32.xlu0 %v1825, 126
      %v2321 = vpop.permute.xlu0 %2320
      %2322 = vrot.lane.b32.xlu0 %v1826, 126
      %v2323 = vpop.permute.xlu0 %2322
      %2324 = vrot.lane.b32.xlu0 %v1827, 126
      %v2325 = vpop.permute.xlu0 %2324
      %2326 = vrot.lane.b32.xlu0 %v1828, 126
      %v2327 = vpop.permute.xlu0 %2326
      %2328 = vrot.lane.b32.xlu0 %v1829, 126
      %v2329 = vpop.permute.xlu0 %2328
      %2330 = vrot.lane.b32.xlu0 %v1830, 126
      %v2331 = vpop.permute.xlu0 %2330
      %2332 = vrot.lane.b32.xlu0 %v1831, 126
      %v2333 = vpop.permute.xlu0 %2332
      %2334 = vrot.lane.b32.xlu0 %v1832, 126
      %v2335 = vpop.permute.xlu0 %2334
      %2336 = vrot.lane.b32.xlu0 %v1833, 126
      %v2337 = vpop.permute.xlu0 %2336
      %2338 = vrot.lane.b32.xlu0 %v1834, 126
      %v2339 = vpop.permute.xlu0 %2338
      %2340 = vrot.lane.b32.xlu0 %v1835, 126
      %v2341 = vpop.permute.xlu0 %2340
      %2342 = vrot.lane.b32.xlu0 %v1836, 126
      %v2343 = vpop.permute.xlu0 %2342
      %v2344 = vsel %vm524, %v2321, %v2323
      %v2345 = vsel %vm524, %v2323, %v2325
      %v2346 = vsel %vm524, %v2325, %v2327
      %v2347 = vsel %vm524, %v2329, %v2331
      %v2348 = vsel %vm524, %v2331, %v2333
      %v2349 = vsel %vm524, %v2333, %v2335
      %v2350 = vsel %vm524, %v2337, %v2339
      %v2351 = vsel %vm524, %v2339, %v2341
      %v2352 = vsel %vm524, %v2341, %v2343
      %2353 = vrot.lane.b32.xlu0 %v1813, 20
      %v2354 = vpop.permute.xlu0 %2353
      %2355 = vrot.lane.b32.xlu0 %v1814, 20
      %v2356 = vpop.permute.xlu0 %2355
      %2357 = vrot.lane.b32.xlu0 %v1815, 20
      %v2358 = vpop.permute.xlu0 %2357
      %2359 = vrot.lane.b32.xlu0 %v1816, 20
      %v2360 = vpop.permute.xlu0 %2359
      %2361 = vrot.lane.b32.xlu0 %v1817, 20
      %v2362 = vpop.permute.xlu0 %2361
      %2363 = vrot.lane.b32.xlu0 %v1818, 20
      %v2364 = vpop.permute.xlu0 %2363
      %2365 = vrot.lane.b32.xlu0 %v1819, 20
      %v2366 = vpop.permute.xlu0 %2365
      %2367 = vrot.lane.b32.xlu0 %v1820, 20
      %v2368 = vpop.permute.xlu0 %2367
      %2369 = vrot.lane.b32.xlu0 %v1821, 20
      %v2370 = vpop.permute.xlu0 %2369
      %2371 = vrot.lane.b32.xlu0 %v1822, 20
      %v2372 = vpop.permute.xlu0 %2371
      %2373 = vrot.lane.b32.xlu0 %v1823, 20
      %v2374 = vpop.permute.xlu0 %2373
      %2375 = vrot.lane.b32.xlu0 %v1824, 20
      %v2376 = vpop.permute.xlu0 %2375
      %vm2377 = vcmask 162816
      %v2378 = vsel %vm2377, %v2354, %v2356
      %v2379 = vsel %vm2377, %v2356, %v2358
      %v2380 = vsel %vm2377, %v2358, %v2360
      %v2381 = vsel %vm2377, %v2362, %v2364
      %v2382 = vsel %vm2377, %v2364, %v2366
      %v2383 = vsel %vm2377, %v2366, %v2368
      %v2384 = vsel %vm2377, %v2370, %v2372
      %v2385 = vsel %vm2377, %v2372, %v2374
      %v2386 = vsel %vm2377, %v2374, %v2376
      %2387 = vrot.lane.b32.xlu0 %v1813, 16
      %v2388 = vpop.permute.xlu0 %2387
      %2389 = vrot.lane.b32.xlu0 %v1814, 16
      %v2390 = vpop.permute.xlu0 %2389
      %2391 = vrot.lane.b32.xlu0 %v1815, 16
      %v2392 = vpop.permute.xlu0 %2391
      %2393 = vrot.lane.b32.xlu0 %v1816, 16
      %v2394 = vpop.permute.xlu0 %2393
      %2395 = vrot.lane.b32.xlu0 %v1817, 16
      %v2396 = vpop.permute.xlu0 %2395
      %2397 = vrot.lane.b32.xlu0 %v1818, 16
      %v2398 = vpop.permute.xlu0 %2397
      %2399 = vrot.lane.b32.xlu0 %v1819, 16
      %v2400 = vpop.permute.xlu0 %2399
      %2401 = vrot.lane.b32.xlu0 %v1820, 16
      %v2402 = vpop.permute.xlu0 %2401
      %2403 = vrot.lane.b32.xlu0 %v1821, 16
      %v2404 = vpop.permute.xlu0 %2403
      %2405 = vrot.lane.b32.xlu0 %v1822, 16
      %v2406 = vpop.permute.xlu0 %2405
      %2407 = vrot.lane.b32.xlu0 %v1823, 16
      %v2408 = vpop.permute.xlu0 %2407
      %2409 = vrot.lane.b32.xlu0 %v1824, 16
      %v2410 = vpop.permute.xlu0 %2409
      %vm2411 = vcmask 130048
      %v2412 = vsel %vm2411, %v2388, %v2390
      %v2413 = vsel %vm2411, %v2390, %v2392
      %v2414 = vsel %vm2411, %v2392, %v2394
      %v2415 = vsel %vm2411, %v2396, %v2398
      %v2416 = vsel %vm2411, %v2398, %v2400
      %v2417 = vsel %vm2411, %v2400, %v2402
      %v2418 = vsel %vm2411, %v2404, %v2406
      %v2419 = vsel %vm2411, %v2406, %v2408
      %v2420 = vsel %vm2411, %v2408, %v2410
      %2421 = vrot.lane.b32.xlu0 %v1813, 12
      %v2422 = vpop.permute.xlu0 %2421
      %2423 = vrot.lane.b32.xlu0 %v1814, 12
      %v2424 = vpop.permute.xlu0 %2423
      %2425 = vrot.lane.b32.xlu0 %v1815, 12
      %v2426 = vpop.permute.xlu0 %2425
      %2427 = vrot.lane.b32.xlu0 %v1816, 12
      %v2428 = vpop.permute.xlu0 %2427
      %2429 = vrot.lane.b32.xlu0 %v1817, 12
      %v2430 = vpop.permute.xlu0 %2429
      %2431 = vrot.lane.b32.xlu0 %v1818, 12
      %v2432 = vpop.permute.xlu0 %2431
      %2433 = vrot.lane.b32.xlu0 %v1819, 12
      %v2434 = vpop.permute.xlu0 %2433
      %2435 = vrot.lane.b32.xlu0 %v1820, 12
      %v2436 = vpop.permute.xlu0 %2435
      %2437 = vrot.lane.b32.xlu0 %v1821, 12
      %v2438 = vpop.permute.xlu0 %2437
      %2439 = vrot.lane.b32.xlu0 %v1822, 12
      %v2440 = vpop.permute.xlu0 %2439
      %2441 = vrot.lane.b32.xlu0 %v1823, 12
      %v2442 = vpop.permute.xlu0 %2441
      %2443 = vrot.lane.b32.xlu0 %v1824, 12
      %v2444 = vpop.permute.xlu0 %2443
      %vm2445 = vcmask 97280
      %v2446 = vsel %vm2445, %v2422, %v2424
      %v2447 = vsel %vm2445, %v2424, %v2426
      %v2448 = vsel %vm2445, %v2426, %v2428
      %v2449 = vsel %vm2445, %v2430, %v2432
      %v2450 = vsel %vm2445, %v2432, %v2434
      %v2451 = vsel %vm2445, %v2434, %v2436
      %v2452 = vsel %vm2445, %v2438, %v2440
      %v2453 = vsel %vm2445, %v2440, %v2442
      %v2454 = vsel %vm2445, %v2442, %v2444
      %2455 = vrot.lane.b32.xlu0 %v1813, 52
      %v2456 = vpop.permute.xlu0 %2455
      %2457 = vrot.lane.b32.xlu0 %v1814, 52
      %v2458 = vpop.permute.xlu0 %2457
      %2459 = vrot.lane.b32.xlu0 %v1815, 52
      %v2460 = vpop.permute.xlu0 %2459
      %2461 = vrot.lane.b32.xlu0 %v1816, 52
      %v2462 = vpop.permute.xlu0 %2461
      %2463 = vrot.lane.b32.xlu0 %v1817, 52
      %v2464 = vpop.permute.xlu0 %2463
      %2465 = vrot.lane.b32.xlu0 %v1818, 52
      %v2466 = vpop.permute.xlu0 %2465
      %2467 = vrot.lane.b32.xlu0 %v1819, 52
      %v2468 = vpop.permute.xlu0 %2467
      %2469 = vrot.lane.b32.xlu0 %v1820, 52
      %v2470 = vpop.permute.xlu0 %2469
      %2471 = vrot.lane.b32.xlu0 %v1821, 52
      %v2472 = vpop.permute.xlu0 %2471
      %2473 = vrot.lane.b32.xlu0 %v1822, 52
      %v2474 = vpop.permute.xlu0 %2473
      %2475 = vrot.lane.b32.xlu0 %v1823, 52
      %v2476 = vpop.permute.xlu0 %2475
      %2477 = vrot.lane.b32.xlu0 %v1824, 52
      %v2478 = vpop.permute.xlu0 %2477
      %vm2479 = vcmask 424960
      %v2480 = vsel %vm2479, %v2456, %v2458
      %v2481 = vsel %vm2479, %v2458, %v2460
      %v2482 = vsel %vm2479, %v2460, %v2462
      %v2483 = vsel %vm2479, %v2464, %v2466
      %v2484 = vsel %vm2479, %v2466, %v2468
      %v2485 = vsel %vm2479, %v2468, %v2470
      %v2486 = vsel %vm2479, %v2472, %v2474
      %v2487 = vsel %vm2479, %v2474, %v2476
      %v2488 = vsel %vm2479, %v2476, %v2478
      %2489 = vrot.lane.b32.xlu0 %v1814, 48
      %v2490 = vpop.permute.xlu0 %2489
      %2491 = vrot.lane.b32.xlu0 %v1815, 48
      %v2492 = vpop.permute.xlu0 %2491
      %2493 = vrot.lane.b32.xlu0 %v1816, 48
      %v2494 = vpop.permute.xlu0 %2493
      %2495 = vrot.lane.b32.xlu0 %v1818, 48
      %v2496 = vpop.permute.xlu0 %2495
      %2497 = vrot.lane.b32.xlu0 %v1819, 48
      %v2498 = vpop.permute.xlu0 %2497
      %2499 = vrot.lane.b32.xlu0 %v1820, 48
      %v2500 = vpop.permute.xlu0 %2499
      %2501 = vrot.lane.b32.xlu0 %v1822, 48
      %v2502 = vpop.permute.xlu0 %2501
      %2503 = vrot.lane.b32.xlu0 %v1823, 48
      %v2504 = vpop.permute.xlu0 %2503
      %2505 = vrot.lane.b32.xlu0 %v1824, 48
      %v2506 = vpop.permute.xlu0 %2505
      %vm2507 = vcmask 392192
      %v2508 = vsel %vm2507, %v2490, %v2492
      %v2509 = vsel %vm2507, %v2492, %v2494
      %v2510 = vsel %vm2507, %v2496, %v2498
      %v2511 = vsel %vm2507, %v2498, %v2500
      %v2512 = vsel %vm2507, %v2502, %v2504
      %v2513 = vsel %vm2507, %v2504, %v2506
      %2514 = vrot.lane.b32.xlu0 %v1825, 44
      %v2515 = vpop.permute.xlu0 %2514
      %2516 = vrot.lane.b32.xlu0 %v1826, 44
      %v2517 = vpop.permute.xlu0 %2516
      %2518 = vrot.lane.b32.xlu0 %v1827, 44
      %v2519 = vpop.permute.xlu0 %2518
      %2520 = vrot.lane.b32.xlu0 %v1828, 44
      %v2521 = vpop.permute.xlu0 %2520
      %2522 = vrot.lane.b32.xlu0 %v1829, 44
      %v2523 = vpop.permute.xlu0 %2522
      %2524 = vrot.lane.b32.xlu0 %v1830, 44
      %v2525 = vpop.permute.xlu0 %2524
      %2526 = vrot.lane.b32.xlu0 %v1831, 44
      %v2527 = vpop.permute.xlu0 %2526
      %2528 = vrot.lane.b32.xlu0 %v1832, 44
      %v2529 = vpop.permute.xlu0 %2528
      %2530 = vrot.lane.b32.xlu0 %v1833, 44
      %v2531 = vpop.permute.xlu0 %2530
      %2532 = vrot.lane.b32.xlu0 %v1834, 44
      %v2533 = vpop.permute.xlu0 %2532
      %2534 = vrot.lane.b32.xlu0 %v1835, 44
      %v2535 = vpop.permute.xlu0 %2534
      %2536 = vrot.lane.b32.xlu0 %v1836, 44
      %v2537 = vpop.permute.xlu0 %2536
      %vm2538 = vcmask 359424
      %v2539 = vsel %vm2538, %v2515, %v2517
      %v2540 = vsel %vm2538, %v2517, %v2519
      %v2541 = vsel %vm2538, %v2519, %v2521
      %v2542 = vsel %vm2538, %v2523, %v2525
      %v2543 = vsel %vm2538, %v2525, %v2527
      %v2544 = vsel %vm2538, %v2527, %v2529
      %v2545 = vsel %vm2538, %v2531, %v2533
      %v2546 = vsel %vm2538, %v2533, %v2535
      %v2547 = vsel %vm2538, %v2535, %v2537
      %2548 = vrot.lane.b32.xlu0 %v1825, 84
      %v2549 = vpop.permute.xlu0 %2548
      %2550 = vrot.lane.b32.xlu0 %v1826, 84
      %v2551 = vpop.permute.xlu0 %2550
      %2552 = vrot.lane.b32.xlu0 %v1827, 84
      %v2553 = vpop.permute.xlu0 %2552
      %2554 = vrot.lane.b32.xlu0 %v1828, 84
      %v2555 = vpop.permute.xlu0 %2554
      %2556 = vrot.lane.b32.xlu0 %v1829, 84
      %v2557 = vpop.permute.xlu0 %2556
      %2558 = vrot.lane.b32.xlu0 %v1830, 84
      %v2559 = vpop.permute.xlu0 %2558
      %2560 = vrot.lane.b32.xlu0 %v1831, 84
      %v2561 = vpop.permute.xlu0 %2560
      %2562 = vrot.lane.b32.xlu0 %v1832, 84
      %v2563 = vpop.permute.xlu0 %2562
      %2564 = vrot.lane.b32.xlu0 %v1833, 84
      %v2565 = vpop.permute.xlu0 %2564
      %2566 = vrot.lane.b32.xlu0 %v1834, 84
      %v2567 = vpop.permute.xlu0 %2566
      %2568 = vrot.lane.b32.xlu0 %v1835, 84
      %v2569 = vpop.permute.xlu0 %2568
      %2570 = vrot.lane.b32.xlu0 %v1836, 84
      %v2571 = vpop.permute.xlu0 %2570
      %vm2572 = vcmask 687104
      %v2573 = vsel %vm2572, %v2549, %v2551
      %v2574 = vsel %vm2572, %v2551, %v2553
      %v2575 = vsel %vm2572, %v2553, %v2555
      %v2576 = vsel %vm2572, %v2557, %v2559
      %v2577 = vsel %vm2572, %v2559, %v2561
      %v2578 = vsel %vm2572, %v2561, %v2563
      %v2579 = vsel %vm2572, %v2565, %v2567
      %v2580 = vsel %vm2572, %v2567, %v2569
      %v2581 = vsel %vm2572, %v2569, %v2571
      %2582 = vrot.lane.b32.xlu0 %v1825, 76
      %v2583 = vpop.permute.xlu0 %2582
      %2584 = vrot.lane.b32.xlu0 %v1826, 76
      %v2585 = vpop.permute.xlu0 %2584
      %2586 = vrot.lane.b32.xlu0 %v1827, 76
      %v2587 = vpop.permute.xlu0 %2586
      %2588 = vrot.lane.b32.xlu0 %v1828, 76
      %v2589 = vpop.permute.xlu0 %2588
      %2590 = vrot.lane.b32.xlu0 %v1829, 76
      %v2591 = vpop.permute.xlu0 %2590
      %2592 = vrot.lane.b32.xlu0 %v1830, 76
      %v2593 = vpop.permute.xlu0 %2592
      %2594 = vrot.lane.b32.xlu0 %v1831, 76
      %v2595 = vpop.permute.xlu0 %2594
      %2596 = vrot.lane.b32.xlu0 %v1832, 76
      %v2597 = vpop.permute.xlu0 %2596
      %2598 = vrot.lane.b32.xlu0 %v1833, 76
      %v2599 = vpop.permute.xlu0 %2598
      %2600 = vrot.lane.b32.xlu0 %v1834, 76
      %v2601 = vpop.permute.xlu0 %2600
      %2602 = vrot.lane.b32.xlu0 %v1835, 76
      %v2603 = vpop.permute.xlu0 %2602
      %2604 = vrot.lane.b32.xlu0 %v1836, 76
      %v2605 = vpop.permute.xlu0 %2604
      %v2606 = vsel %vm939, %v2583, %v2585
      %v2607 = vsel %vm939, %v2585, %v2587
      %v2608 = vsel %vm939, %v2587, %v2589
      %v2609 = vsel %vm939, %v2591, %v2593
      %v2610 = vsel %vm939, %v2593, %v2595
      %v2611 = vsel %vm939, %v2595, %v2597
      %v2612 = vsel %vm939, %v2599, %v2601
      %v2613 = vsel %vm939, %v2601, %v2603
      %v2614 = vsel %vm939, %v2603, %v2605
      %2615 = vrot.lane.b32.xlu0 %v1825, 55
      %v2616 = vpop.permute.xlu0 %2615
      %2617 = vrot.lane.b32.xlu0 %v1826, 55
      %v2618 = vpop.permute.xlu0 %2617
      %2619 = vrot.lane.b32.xlu0 %v1827, 55
      %v2620 = vpop.permute.xlu0 %2619
      %2621 = vrot.lane.b32.xlu0 %v1828, 55
      %v2622 = vpop.permute.xlu0 %2621
      %2623 = vrot.lane.b32.xlu0 %v1829, 55
      %v2624 = vpop.permute.xlu0 %2623
      %2625 = vrot.lane.b32.xlu0 %v1830, 55
      %v2626 = vpop.permute.xlu0 %2625
      %2627 = vrot.lane.b32.xlu0 %v1831, 55
      %v2628 = vpop.permute.xlu0 %2627
      %2629 = vrot.lane.b32.xlu0 %v1832, 55
      %v2630 = vpop.permute.xlu0 %2629
      %2631 = vrot.lane.b32.xlu0 %v1833, 55
      %v2632 = vpop.permute.xlu0 %2631
      %2633 = vrot.lane.b32.xlu0 %v1834, 55
      %v2634 = vpop.permute.xlu0 %2633
      %2635 = vrot.lane.b32.xlu0 %v1835, 55
      %v2636 = vpop.permute.xlu0 %2635
      %2637 = vrot.lane.b32.xlu0 %v1836, 55
      %v2638 = vpop.permute.xlu0 %2637
      %2639 = vrot.lane.b32.xlu0 %v2344, 55
      %v2640 = vpop.permute.xlu0 %2639
      %2641 = vrot.lane.b32.xlu0 %v2345, 55
      %v2642 = vpop.permute.xlu0 %2641
      %2643 = vrot.lane.b32.xlu0 %v2346, 55
      %v2644 = vpop.permute.xlu0 %2643
      %2645 = vrot.lane.b32.xlu0 %v2327, 55
      %v2646 = vpop.permute.xlu0 %2645
      %2647 = vrot.lane.b32.xlu0 %v2347, 55
      %v2648 = vpop.permute.xlu0 %2647
      %2649 = vrot.lane.b32.xlu0 %v2348, 55
      %v2650 = vpop.permute.xlu0 %2649
      %2651 = vrot.lane.b32.xlu0 %v2349, 55
      %v2652 = vpop.permute.xlu0 %2651
      %2653 = vrot.lane.b32.xlu0 %v2335, 55
      %v2654 = vpop.permute.xlu0 %2653
      %2655 = vrot.lane.b32.xlu0 %v2350, 55
      %v2656 = vpop.permute.xlu0 %2655
      %2657 = vrot.lane.b32.xlu0 %v2351, 55
      %v2658 = vpop.permute.xlu0 %2657
      %2659 = vrot.lane.b32.xlu0 %v2352, 55
      %v2660 = vpop.permute.xlu0 %2659
      %2661 = vrot.lane.b32.xlu0 %v2343, 55
      %v2662 = vpop.permute.xlu0 %2661
      %2663 = vrot.lane.b32.xlu0 %v2354, 55
      %v2664 = vpop.permute.xlu0 %2663
      %2665 = vrot.lane.b32.xlu0 %v2378, 55
      %v2666 = vpop.permute.xlu0 %2665
      %2667 = vrot.lane.b32.xlu0 %v2379, 55
      %v2668 = vpop.permute.xlu0 %2667
      %2669 = vrot.lane.b32.xlu0 %v2380, 55
      %v2670 = vpop.permute.xlu0 %2669
      %2671 = vrot.lane.b32.xlu0 %v2362, 55
      %v2672 = vpop.permute.xlu0 %2671
      %2673 = vrot.lane.b32.xlu0 %v2381, 55
      %v2674 = vpop.permute.xlu0 %2673
      %2675 = vrot.lane.b32.xlu0 %v2382, 55
      %v2676 = vpop.permute.xlu0 %2675
      %2677 = vrot.lane.b32.xlu0 %v2383, 55
      %v2678 = vpop.permute.xlu0 %2677
      %2679 = vrot.lane.b32.xlu0 %v2370, 55
      %v2680 = vpop.permute.xlu0 %2679
      %2681 = vrot.lane.b32.xlu0 %v2384, 55
      %v2682 = vpop.permute.xlu0 %2681
      %2683 = vrot.lane.b32.xlu0 %v2385, 55
      %v2684 = vpop.permute.xlu0 %2683
      %2685 = vrot.lane.b32.xlu0 %v2386, 55
      %v2686 = vpop.permute.xlu0 %2685
      %2687 = vrot.lane.b32.xlu0 %v2388, 55
      %v2688 = vpop.permute.xlu0 %2687
      %2689 = vrot.lane.b32.xlu0 %v2412, 55
      %v2690 = vpop.permute.xlu0 %2689
      %2691 = vrot.lane.b32.xlu0 %v2413, 55
      %v2692 = vpop.permute.xlu0 %2691
      %2693 = vrot.lane.b32.xlu0 %v2414, 55
      %v2694 = vpop.permute.xlu0 %2693
      %2695 = vrot.lane.b32.xlu0 %v2396, 55
      %v2696 = vpop.permute.xlu0 %2695
      %2697 = vrot.lane.b32.xlu0 %v2415, 55
      %v2698 = vpop.permute.xlu0 %2697
      %2699 = vrot.lane.b32.xlu0 %v2416, 55
      %v2700 = vpop.permute.xlu0 %2699
      %2701 = vrot.lane.b32.xlu0 %v2417, 55
      %v2702 = vpop.permute.xlu0 %2701
      %2703 = vrot.lane.b32.xlu0 %v2404, 55
      %v2704 = vpop.permute.xlu0 %2703
      %2705 = vrot.lane.b32.xlu0 %v2418, 55
      %v2706 = vpop.permute.xlu0 %2705
      %2707 = vrot.lane.b32.xlu0 %v2419, 55
      %v2708 = vpop.permute.xlu0 %2707
      %2709 = vrot.lane.b32.xlu0 %v2420, 55
      %v2710 = vpop.permute.xlu0 %2709
      %2711 = vrot.lane.b32.xlu0 %v2422, 55
      %v2712 = vpop.permute.xlu0 %2711
      %2713 = vrot.lane.b32.xlu0 %v2446, 55
      %v2714 = vpop.permute.xlu0 %2713
      %2715 = vrot.lane.b32.xlu0 %v2447, 55
      %v2716 = vpop.permute.xlu0 %2715
      %2717 = vrot.lane.b32.xlu0 %v2448, 55
      %v2718 = vpop.permute.xlu0 %2717
      %2719 = vrot.lane.b32.xlu0 %v2430, 55
      %v2720 = vpop.permute.xlu0 %2719
      %2721 = vrot.lane.b32.xlu0 %v2449, 55
      %v2722 = vpop.permute.xlu0 %2721
      %2723 = vrot.lane.b32.xlu0 %v2450, 55
      %v2724 = vpop.permute.xlu0 %2723
      %2725 = vrot.lane.b32.xlu0 %v2451, 55
      %v2726 = vpop.permute.xlu0 %2725
      %2727 = vrot.lane.b32.xlu0 %v2438, 55
      %v2728 = vpop.permute.xlu0 %2727
      %2729 = vrot.lane.b32.xlu0 %v2452, 55
      %v2730 = vpop.permute.xlu0 %2729
      %2731 = vrot.lane.b32.xlu0 %v2453, 55
      %v2732 = vpop.permute.xlu0 %2731
      %2733 = vrot.lane.b32.xlu0 %v2454, 55
      %v2734 = vpop.permute.xlu0 %2733
      %2735 = vrot.lane.b32.xlu0 %v2480, 55
      %v2736 = vpop.permute.xlu0 %2735
      %2737 = vrot.lane.b32.xlu0 %v2481, 55
      %v2738 = vpop.permute.xlu0 %2737
      %2739 = vrot.lane.b32.xlu0 %v2482, 55
      %v2740 = vpop.permute.xlu0 %2739
      %2741 = vrot.lane.b32.xlu0 %v2462, 55
      %v2742 = vpop.permute.xlu0 %2741
      %2743 = vrot.lane.b32.xlu0 %v2483, 55
      %v2744 = vpop.permute.xlu0 %2743
      %2745 = vrot.lane.b32.xlu0 %v2484, 55
      %v2746 = vpop.permute.xlu0 %2745
      %2747 = vrot.lane.b32.xlu0 %v2485, 55
      %v2748 = vpop.permute.xlu0 %2747
      %2749 = vrot.lane.b32.xlu0 %v2470, 55
      %v2750 = vpop.permute.xlu0 %2749
      %2751 = vrot.lane.b32.xlu0 %v2486, 55
      %v2752 = vpop.permute.xlu0 %2751
      %2753 = vrot.lane.b32.xlu0 %v2487, 55
      %v2754 = vpop.permute.xlu0 %2753
      %2755 = vrot.lane.b32.xlu0 %v2488, 55
      %v2756 = vpop.permute.xlu0 %2755
      %2757 = vrot.lane.b32.xlu0 %v2478, 55
      %v2758 = vpop.permute.xlu0 %2757
      %2759 = vrot.lane.b32.xlu0 %v2490, 55
      %v2760 = vpop.permute.xlu0 %2759
      %2761 = vrot.lane.b32.xlu0 %v2508, 55
      %v2762 = vpop.permute.xlu0 %2761
      %2763 = vrot.lane.b32.xlu0 %v2509, 55
      %v2764 = vpop.permute.xlu0 %2763
      %2765 = vrot.lane.b32.xlu0 %v2494, 55
      %v2766 = vpop.permute.xlu0 %2765
      %2767 = vrot.lane.b32.xlu0 %v2496, 55
      %v2768 = vpop.permute.xlu0 %2767
      %2769 = vrot.lane.b32.xlu0 %v2510, 55
      %v2770 = vpop.permute.xlu0 %2769
      %2771 = vrot.lane.b32.xlu0 %v2511, 55
      %v2772 = vpop.permute.xlu0 %2771
      %2773 = vrot.lane.b32.xlu0 %v2500, 55
      %v2774 = vpop.permute.xlu0 %2773
      %2775 = vrot.lane.b32.xlu0 %v2502, 55
      %v2776 = vpop.permute.xlu0 %2775
      %2777 = vrot.lane.b32.xlu0 %v2512, 55
      %v2778 = vpop.permute.xlu0 %2777
      %2779 = vrot.lane.b32.xlu0 %v2513, 55
      %v2780 = vpop.permute.xlu0 %2779
      %2781 = vrot.lane.b32.xlu0 %v2506, 55
      %v2782 = vpop.permute.xlu0 %2781
      %2783 = vrot.lane.b32.xlu0 %v2515, 55
      %v2784 = vpop.permute.xlu0 %2783
      %2785 = vrot.lane.b32.xlu0 %v2539, 55
      %v2786 = vpop.permute.xlu0 %2785
      %2787 = vrot.lane.b32.xlu0 %v2540, 55
      %v2788 = vpop.permute.xlu0 %2787
      %2789 = vrot.lane.b32.xlu0 %v2541, 55
      %v2790 = vpop.permute.xlu0 %2789
      %2791 = vrot.lane.b32.xlu0 %v2523, 55
      %v2792 = vpop.permute.xlu0 %2791
      %2793 = vrot.lane.b32.xlu0 %v2542, 55
      %v2794 = vpop.permute.xlu0 %2793
      %2795 = vrot.lane.b32.xlu0 %v2543, 55
      %v2796 = vpop.permute.xlu0 %2795
      %2797 = vrot.lane.b32.xlu0 %v2544, 55
      %v2798 = vpop.permute.xlu0 %2797
      %2799 = vrot.lane.b32.xlu0 %v2531, 55
      %v2800 = vpop.permute.xlu0 %2799
      %2801 = vrot.lane.b32.xlu0 %v2545, 55
      %v2802 = vpop.permute.xlu0 %2801
      %2803 = vrot.lane.b32.xlu0 %v2546, 55
      %v2804 = vpop.permute.xlu0 %2803
      %2805 = vrot.lane.b32.xlu0 %v2547, 55
      %v2806 = vpop.permute.xlu0 %2805
      %2807 = vrot.lane.b32.xlu0 %v2573, 55
      %v2808 = vpop.permute.xlu0 %2807
      %2809 = vrot.lane.b32.xlu0 %v2574, 55
      %v2810 = vpop.permute.xlu0 %2809
      %2811 = vrot.lane.b32.xlu0 %v2575, 55
      %v2812 = vpop.permute.xlu0 %2811
      %2813 = vrot.lane.b32.xlu0 %v2555, 55
      %v2814 = vpop.permute.xlu0 %2813
      %2815 = vrot.lane.b32.xlu0 %v2576, 55
      %v2816 = vpop.permute.xlu0 %2815
      %2817 = vrot.lane.b32.xlu0 %v2577, 55
      %v2818 = vpop.permute.xlu0 %2817
      %2819 = vrot.lane.b32.xlu0 %v2578, 55
      %v2820 = vpop.permute.xlu0 %2819
      %2821 = vrot.lane.b32.xlu0 %v2563, 55
      %v2822 = vpop.permute.xlu0 %2821
      %2823 = vrot.lane.b32.xlu0 %v2579, 55
      %v2824 = vpop.permute.xlu0 %2823
      %2825 = vrot.lane.b32.xlu0 %v2580, 55
      %v2826 = vpop.permute.xlu0 %2825
      %2827 = vrot.lane.b32.xlu0 %v2581, 55
      %v2828 = vpop.permute.xlu0 %2827
      %2829 = vrot.lane.b32.xlu0 %v2571, 55
      %v2830 = vpop.permute.xlu0 %2829
      %2831 = vrot.lane.b32.xlu0 %v2041, 55
      %v2832 = vpop.permute.xlu0 %2831
      %2833 = vrot.lane.b32.xlu0 %v2042, 55
      %v2834 = vpop.permute.xlu0 %2833
      %2835 = vrot.lane.b32.xlu0 %v2043, 55
      %v2836 = vpop.permute.xlu0 %2835
      %2837 = vrot.lane.b32.xlu0 %v2024, 55
      %v2838 = vpop.permute.xlu0 %2837
      %2839 = vrot.lane.b32.xlu0 %v2044, 55
      %v2840 = vpop.permute.xlu0 %2839
      %2841 = vrot.lane.b32.xlu0 %v2045, 55
      %v2842 = vpop.permute.xlu0 %2841
      %2843 = vrot.lane.b32.xlu0 %v2046, 55
      %v2844 = vpop.permute.xlu0 %2843
      %2845 = vrot.lane.b32.xlu0 %v2032, 55
      %v2846 = vpop.permute.xlu0 %2845
      %2847 = vrot.lane.b32.xlu0 %v2047, 55
      %v2848 = vpop.permute.xlu0 %2847
      %2849 = vrot.lane.b32.xlu0 %v2048, 55
      %v2850 = vpop.permute.xlu0 %2849
      %2851 = vrot.lane.b32.xlu0 %v2049, 55
      %v2852 = vpop.permute.xlu0 %2851
      %2853 = vrot.lane.b32.xlu0 %v2040, 55
      %v2854 = vpop.permute.xlu0 %2853
      %2855 = vrot.lane.b32.xlu0 %v2606, 55
      %v2856 = vpop.permute.xlu0 %2855
      %2857 = vrot.lane.b32.xlu0 %v2607, 55
      %v2858 = vpop.permute.xlu0 %2857
      %2859 = vrot.lane.b32.xlu0 %v2608, 55
      %v2860 = vpop.permute.xlu0 %2859
      %2861 = vrot.lane.b32.xlu0 %v2589, 55
      %v2862 = vpop.permute.xlu0 %2861
      %2863 = vrot.lane.b32.xlu0 %v2609, 55
      %v2864 = vpop.permute.xlu0 %2863
      %2865 = vrot.lane.b32.xlu0 %v2610, 55
      %v2866 = vpop.permute.xlu0 %2865
      %2867 = vrot.lane.b32.xlu0 %v2611, 55
      %v2868 = vpop.permute.xlu0 %2867
      %2869 = vrot.lane.b32.xlu0 %v2597, 55
      %v2870 = vpop.permute.xlu0 %2869
      %2871 = vrot.lane.b32.xlu0 %v2612, 55
      %v2872 = vpop.permute.xlu0 %2871
      %2873 = vrot.lane.b32.xlu0 %v2613, 55
      %v2874 = vpop.permute.xlu0 %2873
      %2875 = vrot.lane.b32.xlu0 %v2614, 55
      %v2876 = vpop.permute.xlu0 %2875
      %2877 = vrot.lane.b32.xlu0 %v2605, 55
      %v2878 = vpop.permute.xlu0 %2877
      %vm2879 = vcmask 449536
      %v2880 = vsel %vm2879, %v2616, %v2618
      %v2881 = vsel %vm2879, %v2618, %v2620
      %v2882 = vsel %vm2879, %v2620, %v2622
      %v2883 = vsel %vm2879, %v2624, %v2626
      %v2884 = vsel %vm2879, %v2626, %v2628
      %v2885 = vsel %vm2879, %v2628, %v2630
      %v2886 = vsel %vm2879, %v2632, %v2634
      %v2887 = vsel %vm2879, %v2634, %v2636
      %v2888 = vsel %vm2879, %v2636, %v2638
      %v2889 = vsel %vm2879, %v2640, %v2642
      %v2890 = vsel %vm2879, %v2642, %v2644
      %v2891 = vsel %vm2879, %v2644, %v2646
      %v2892 = vsel %vm2879, %v2648, %v2650
      %v2893 = vsel %vm2879, %v2650, %v2652
      %v2894 = vsel %vm2879, %v2652, %v2654
      %v2895 = vsel %vm2879, %v2656, %v2658
      %v2896 = vsel %vm2879, %v2658, %v2660
      %v2897 = vsel %vm2879, %v2660, %v2662
      %v2898 = vsel %vm2879, %v2664, %v2666
      %v2899 = vsel %vm2879, %v2666, %v2668
      %v2900 = vsel %vm2879, %v2668, %v2670
      %v2901 = vsel %vm2879, %v2672, %v2674
      %v2902 = vsel %vm2879, %v2674, %v2676
      %v2903 = vsel %vm2879, %v2676, %v2678
      %v2904 = vsel %vm2879, %v2680, %v2682
      %v2905 = vsel %vm2879, %v2682, %v2684
      %v2906 = vsel %vm2879, %v2684, %v2686
      %v2907 = vsel %vm2879, %v2688, %v2690
      %v2908 = vsel %vm2879, %v2690, %v2692
      %v2909 = vsel %vm2879, %v2692, %v2694
      %v2910 = vsel %vm2879, %v2696, %v2698
      %v2911 = vsel %vm2879, %v2698, %v2700
      %v2912 = vsel %vm2879, %v2700, %v2702
      %v2913 = vsel %vm2879, %v2704, %v2706
      %v2914 = vsel %vm2879, %v2706, %v2708
      %v2915 = vsel %vm2879, %v2708, %v2710
      %v2916 = vsel %vm2879, %v2712, %v2714
      %v2917 = vsel %vm2879, %v2714, %v2716
      %v2918 = vsel %vm2879, %v2716, %v2718
      %v2919 = vsel %vm2879, %v2720, %v2722
      %v2920 = vsel %vm2879, %v2722, %v2724
      %v2921 = vsel %vm2879, %v2724, %v2726
      %v2922 = vsel %vm2879, %v2728, %v2730
      %v2923 = vsel %vm2879, %v2730, %v2732
      %v2924 = vsel %vm2879, %v2732, %v2734
      %v2925 = vsel %vm2879, %v2736, %v2738
      %v2926 = vsel %vm2879, %v2738, %v2740
      %v2927 = vsel %vm2879, %v2740, %v2742
      %v2928 = vsel %vm2879, %v2744, %v2746
      %v2929 = vsel %vm2879, %v2746, %v2748
      %v2930 = vsel %vm2879, %v2748, %v2750
      %v2931 = vsel %vm2879, %v2752, %v2754
      %v2932 = vsel %vm2879, %v2754, %v2756
      %v2933 = vsel %vm2879, %v2756, %v2758
      %v2934 = vsel %vm2879, %v2760, %v2762
      %v2935 = vsel %vm2879, %v2762, %v2764
      %v2936 = vsel %vm2879, %v2764, %v2766
      %v2937 = vsel %vm2879, %v2768, %v2770
      %v2938 = vsel %vm2879, %v2770, %v2772
      %v2939 = vsel %vm2879, %v2772, %v2774
      %v2940 = vsel %vm2879, %v2776, %v2778
      %v2941 = vsel %vm2879, %v2778, %v2780
      %v2942 = vsel %vm2879, %v2780, %v2782
      %v2943 = vsel %vm2879, %v2784, %v2786
      %v2944 = vsel %vm2879, %v2786, %v2788
      %v2945 = vsel %vm2879, %v2788, %v2790
      %v2946 = vsel %vm2879, %v2792, %v2794
      %v2947 = vsel %vm2879, %v2794, %v2796
      %v2948 = vsel %vm2879, %v2796, %v2798
      %v2949 = vsel %vm2879, %v2800, %v2802
      %v2950 = vsel %vm2879, %v2802, %v2804
      %v2951 = vsel %vm2879, %v2804, %v2806
      %v2952 = vsel %vm2879, %v2808, %v2810
      %v2953 = vsel %vm2879, %v2810, %v2812
      %v2954 = vsel %vm2879, %v2812, %v2814
      %v2955 = vsel %vm2879, %v2816, %v2818
      %v2956 = vsel %vm2879, %v2818, %v2820
      %v2957 = vsel %vm2879, %v2820, %v2822
      %v2958 = vsel %vm2879, %v2824, %v2826
      %v2959 = vsel %vm2879, %v2826, %v2828
      %v2960 = vsel %vm2879, %v2828, %v2830
      %v2961 = vsel %vm2879, %v2832, %v2834
      %v2962 = vsel %vm2879, %v2834, %v2836
      %v2963 = vsel %vm2879, %v2836, %v2838
      %v2964 = vsel %vm2879, %v2840, %v2842
      %v2965 = vsel %vm2879, %v2842, %v2844
      %v2966 = vsel %vm2879, %v2844, %v2846
      %v2967 = vsel %vm2879, %v2848, %v2850
      %v2968 = vsel %vm2879, %v2850, %v2852
      %v2969 = vsel %vm2879, %v2852, %v2854
      %v2970 = vsel %vm2879, %v2856, %v2858
      %v2971 = vsel %vm2879, %v2858, %v2860
      %v2972 = vsel %vm2879, %v2860, %v2862
      %v2973 = vsel %vm2879, %v2864, %v2866
      %v2974 = vsel %vm2879, %v2866, %v2868
      %v2975 = vsel %vm2879, %v2868, %v2870
      %v2976 = vsel %vm2879, %v2872, %v2874
      %v2977 = vsel %vm2879, %v2874, %v2876
      %v2978 = vsel %vm2879, %v2876, %v2878
      %v2979 = vld [vmem:[%s6] sm:$0xff]
      %v2980 = vld [vmem:[%s6 + $0x8] sm:$0xff]
      %v2981 = vld [vmem:[%s6 + $0x10] sm:$0xff]
      %v2982 = vld [vmem:[%s6 + $0x18] sm:$0xff]
      %v2983 = vld [vmem:[%s6 + $0x20] sm:$0xff]
      %v2984 = vld [vmem:[%s6 + $0x28] sm:$0xf]
      %v2985 = vld [vmem:[%s6 + $0x2c] sm:$0xff]
      %v2986 = vld [vmem:[%s6 + $0x34] sm:$0xff]
      %v2987 = vld [vmem:[%s6 + $0x3c] sm:$0xff]
      %v2988 = vld [vmem:[%s6 + $0x44] sm:$0xff]
      %v2989 = vld [vmem:[%s6 + $0x4c] sm:$0xff]
      %v2990 = vld [vmem:[%s6 + $0x54] sm:$0xf]
      %v2991 = vld [vmem:[%s7] sm:$0xff]
      %v2992 = vld [vmem:[%s7 + $0x8] sm:$0xff]
      %2994 = vset.pattern.permute.xlu0 0
      %2995 = vperm.xlu0 %2994, %v2991
      %v2996 = vpop.permute.xlu0 %2995
      %2999 = vset.pattern.permute.xlu0 0
      %3000 = vperm.xlu0 %2999, %v2992
      %v3001 = vpop.permute.xlu0 %3000
      %v3015 = vunpack.c.l.b16 %v2979
      %v3016 = vunpack.c.h.b16 %v2979
      %v3017 = vunpack.c.l.b16 %v2980
      %v3018 = vunpack.c.h.b16 %v2980
      %v3019 = vunpack.c.l.b16 %v2981
      %v3020 = vunpack.c.h.b16 %v2981
      %v3021 = vunpack.c.l.b16 %v2982
      %v3022 = vunpack.c.h.b16 %v2982
      %v3023 = vunpack.c.l.b16 %v2983
      %v3024 = vunpack.c.h.b16 %v2983
      %v3025 = vunpack.c.l.b16 %v2984
      %v3026 = vunpack.c.l.b16 %v2985
      %v3027 = vunpack.c.h.b16 %v2985
      %v3028 = vunpack.c.l.b16 %v2986
      %v3029 = vunpack.c.h.b16 %v2986
      %v3030 = vunpack.c.l.b16 %v2987
      %v3031 = vunpack.c.h.b16 %v2987
      %v3032 = vunpack.c.l.b16 %v2988
      %v3033 = vunpack.c.h.b16 %v2988
      %v3034 = vunpack.c.l.b16 %v2989
      %v3035 = vunpack.c.h.b16 %v2989
      %v3036 = vunpack.c.l.b16 %v2990
      %v3037 = vpack.c.b16 %v3026, %v3015
      %v3038 = vpack.c.b16 %v3027, %v3016
      %v3039 = vpack.c.b16 %v3028, %v3017
      %v3040 = vpack.c.b16 %v3029, %v3018
      %v3041 = vpack.c.b16 %v3030, %v3019
      %v3042 = vpack.c.b16 %v3031, %v3020
      %v3043 = vpack.c.b16 %v3032, %v3021
      %v3044 = vpack.c.b16 %v3033, %v3022
      %v3045 = vpack.c.b16 %v3034, %v3023
      %v3046 = vpack.c.b16 %v3035, %v3024
      %v3047 = vpack.c.b16 %v3036, %v3025
      %3058 = vrot.lane.b32.xlu0 %v1873, 25
      %v3059 = vpop.permute.xlu0 %3058
      %3060 = vrot.lane.b32.xlu0 %v1874, 25
      %v3061 = vpop.permute.xlu0 %3060
      %3062 = vrot.lane.b32.xlu0 %v1875, 25
      %v3063 = vpop.permute.xlu0 %3062
      %3064 = vrot.lane.b32.xlu0 %v1856, 25
      %v3065 = vpop.permute.xlu0 %3064
      %3066 = vrot.lane.b32.xlu0 %v1876, 25
      %v3067 = vpop.permute.xlu0 %3066
      %3068 = vrot.lane.b32.xlu0 %v1877, 25
      %v3069 = vpop.permute.xlu0 %3068
      %3070 = vrot.lane.b32.xlu0 %v1878, 25
      %v3071 = vpop.permute.xlu0 %3070
      %3072 = vrot.lane.b32.xlu0 %v1864, 25
      %v3073 = vpop.permute.xlu0 %3072
      %3074 = vrot.lane.b32.xlu0 %v1879, 25
      %v3075 = vpop.permute.xlu0 %3074
      %3076 = vrot.lane.b32.xlu0 %v1880, 25
      %v3077 = vpop.permute.xlu0 %3076
      %3078 = vrot.lane.b32.xlu0 %v1881, 25
      %v3079 = vpop.permute.xlu0 %3078
      %3080 = vrot.lane.b32.xlu0 %v1872, 25
      %v3081 = vpop.permute.xlu0 %3080
      %3082 = vrot.lane.b32.xlu0 %v1906, 25
      %v3083 = vpop.permute.xlu0 %3082
      %3084 = vrot.lane.b32.xlu0 %v1907, 25
      %v3085 = vpop.permute.xlu0 %3084
      %3086 = vrot.lane.b32.xlu0 %v1908, 25
      %v3087 = vpop.permute.xlu0 %3086
      %3088 = vrot.lane.b32.xlu0 %v1889, 25
      %v3089 = vpop.permute.xlu0 %3088
      %3090 = vrot.lane.b32.xlu0 %v1909, 25
      %v3091 = vpop.permute.xlu0 %3090
      %3092 = vrot.lane.b32.xlu0 %v1910, 25
      %v3093 = vpop.permute.xlu0 %3092
      %3094 = vrot.lane.b32.xlu0 %v1911, 25
      %v3095 = vpop.permute.xlu0 %3094
      %3096 = vrot.lane.b32.xlu0 %v1897, 25
      %v3097 = vpop.permute.xlu0 %3096
      %3098 = vrot.lane.b32.xlu0 %v1912, 25
      %v3099 = vpop.permute.xlu0 %3098
      %3100 = vrot.lane.b32.xlu0 %v1913, 25
      %v3101 = vpop.permute.xlu0 %3100
      %3102 = vrot.lane.b32.xlu0 %v1914, 25
      %v3103 = vpop.permute.xlu0 %3102
      %3104 = vrot.lane.b32.xlu0 %v1905, 25
      %v3105 = vpop.permute.xlu0 %3104
      %3106 = vrot.lane.b32.xlu0 %v1939, 25
      %v3107 = vpop.permute.xlu0 %3106
      %3108 = vrot.lane.b32.xlu0 %v1940, 25
      %v3109 = vpop.permute.xlu0 %3108
      %3110 = vrot.lane.b32.xlu0 %v1941, 25
      %v3111 = vpop.permute.xlu0 %3110
      %3112 = vrot.lane.b32.xlu0 %v1922, 25
      %v3113 = vpop.permute.xlu0 %3112
      %3114 = vrot.lane.b32.xlu0 %v1942, 25
      %v3115 = vpop.permute.xlu0 %3114
      %3116 = vrot.lane.b32.xlu0 %v1943, 25
      %v3117 = vpop.permute.xlu0 %3116
      %3118 = vrot.lane.b32.xlu0 %v1944, 25
      %v3119 = vpop.permute.xlu0 %3118
      %3120 = vrot.lane.b32.xlu0 %v1930, 25
      %v3121 = vpop.permute.xlu0 %3120
      %3122 = vrot.lane.b32.xlu0 %v1945, 25
      %v3123 = vpop.permute.xlu0 %3122
      %3124 = vrot.lane.b32.xlu0 %v1946, 25
      %v3125 = vpop.permute.xlu0 %3124
      %3126 = vrot.lane.b32.xlu0 %v1947, 25
      %v3127 = vpop.permute.xlu0 %3126
      %3128 = vrot.lane.b32.xlu0 %v1938, 25
      %v3129 = vpop.permute.xlu0 %3128
      %3130 = vrot.lane.b32.xlu0 %v1949, 25
      %v3131 = vpop.permute.xlu0 %3130
      %3132 = vrot.lane.b32.xlu0 %v1966, 25
      %v3133 = vpop.permute.xlu0 %3132
      %3134 = vrot.lane.b32.xlu0 %v1967, 25
      %v3135 = vpop.permute.xlu0 %3134
      %3136 = vrot.lane.b32.xlu0 %v1953, 25
      %v3137 = vpop.permute.xlu0 %3136
      %3138 = vrot.lane.b32.xlu0 %v1955, 25
      %v3139 = vpop.permute.xlu0 %3138
      %3140 = vrot.lane.b32.xlu0 %v1968, 25
      %v3141 = vpop.permute.xlu0 %3140
      %3142 = vrot.lane.b32.xlu0 %v1969, 25
      %v3143 = vpop.permute.xlu0 %3142
      %3144 = vrot.lane.b32.xlu0 %v1959, 25
      %v3145 = vpop.permute.xlu0 %3144
      %3146 = vrot.lane.b32.xlu0 %v1961, 25
      %v3147 = vpop.permute.xlu0 %3146
      %3148 = vrot.lane.b32.xlu0 %v1970, 25
      %v3149 = vpop.permute.xlu0 %3148
      %3150 = vrot.lane.b32.xlu0 %v1971, 25
      %v3151 = vpop.permute.xlu0 %3150
      %3152 = vrot.lane.b32.xlu0 %v1965, 25
      %v3153 = vpop.permute.xlu0 %3152
      %3154 = vrot.lane.b32.xlu0 %v1985, 25
      %v3155 = vpop.permute.xlu0 %3154
      %3156 = vrot.lane.b32.xlu0 %v2008, 25
      %v3157 = vpop.permute.xlu0 %3156
      %3158 = vrot.lane.b32.xlu0 %v2009, 25
      %v3159 = vpop.permute.xlu0 %3158
      %3160 = vrot.lane.b32.xlu0 %v2010, 25
      %v3161 = vpop.permute.xlu0 %3160
      %3162 = vrot.lane.b32.xlu0 %v1993, 25
      %v3163 = vpop.permute.xlu0 %3162
      %3164 = vrot.lane.b32.xlu0 %v2011, 25
      %v3165 = vpop.permute.xlu0 %3164
      %3166 = vrot.lane.b32.xlu0 %v2012, 25
      %v3167 = vpop.permute.xlu0 %3166
      %3168 = vrot.lane.b32.xlu0 %v2013, 25
      %v3169 = vpop.permute.xlu0 %3168
      %3170 = vrot.lane.b32.xlu0 %v2001, 25
      %v3171 = vpop.permute.xlu0 %3170
      %3172 = vrot.lane.b32.xlu0 %v2014, 25
      %v3173 = vpop.permute.xlu0 %3172
      %3174 = vrot.lane.b32.xlu0 %v2015, 25
      %v3175 = vpop.permute.xlu0 %3174
      %3176 = vrot.lane.b32.xlu0 %v2016, 25
      %v3177 = vpop.permute.xlu0 %3176
      %3178 = vrot.lane.b32.xlu0 %v2018, 25
      %v3179 = vpop.permute.xlu0 %3178
      %3180 = vrot.lane.b32.xlu0 %v2041, 25
      %v3181 = vpop.permute.xlu0 %3180
      %3182 = vrot.lane.b32.xlu0 %v2042, 25
      %v3183 = vpop.permute.xlu0 %3182
      %3184 = vrot.lane.b32.xlu0 %v2043, 25
      %v3185 = vpop.permute.xlu0 %3184
      %3186 = vrot.lane.b32.xlu0 %v2026, 25
      %v3187 = vpop.permute.xlu0 %3186
      %3188 = vrot.lane.b32.xlu0 %v2044, 25
      %v3189 = vpop.permute.xlu0 %3188
      %3190 = vrot.lane.b32.xlu0 %v2045, 25
      %v3191 = vpop.permute.xlu0 %3190
      %3192 = vrot.lane.b32.xlu0 %v2046, 25
      %v3193 = vpop.permute.xlu0 %3192
      %3194 = vrot.lane.b32.xlu0 %v2034, 25
      %v3195 = vpop.permute.xlu0 %3194
      %3196 = vrot.lane.b32.xlu0 %v2047, 25
      %v3197 = vpop.permute.xlu0 %3196
      %3198 = vrot.lane.b32.xlu0 %v2048, 25
      %v3199 = vpop.permute.xlu0 %3198
      %3200 = vrot.lane.b32.xlu0 %v2049, 25
      %v3201 = vpop.permute.xlu0 %3200
      %3202 = vrot.lane.b32.xlu0 %v2051, 25
      %v3203 = vpop.permute.xlu0 %3202
      %3204 = vrot.lane.b32.xlu0 %v2074, 25
      %v3205 = vpop.permute.xlu0 %3204
      %3206 = vrot.lane.b32.xlu0 %v2075, 25
      %v3207 = vpop.permute.xlu0 %3206
      %3208 = vrot.lane.b32.xlu0 %v2076, 25
      %v3209 = vpop.permute.xlu0 %3208
      %3210 = vrot.lane.b32.xlu0 %v2059, 25
      %v3211 = vpop.permute.xlu0 %3210
      %3212 = vrot.lane.b32.xlu0 %v2077, 25
      %v3213 = vpop.permute.xlu0 %3212
      %3214 = vrot.lane.b32.xlu0 %v2078, 25
      %v3215 = vpop.permute.xlu0 %3214
      %3216 = vrot.lane.b32.xlu0 %v2079, 25
      %v3217 = vpop.permute.xlu0 %3216
      %3218 = vrot.lane.b32.xlu0 %v2067, 25
      %v3219 = vpop.permute.xlu0 %3218
      %3220 = vrot.lane.b32.xlu0 %v2080, 25
      %v3221 = vpop.permute.xlu0 %3220
      %3222 = vrot.lane.b32.xlu0 %v2081, 25
      %v3223 = vpop.permute.xlu0 %3222
      %3224 = vrot.lane.b32.xlu0 %v2082, 25
      %v3225 = vpop.permute.xlu0 %3224
      %3226 = vrot.lane.b32.xlu0 %v2084, 25
      %v3227 = vpop.permute.xlu0 %3226
      %3228 = vrot.lane.b32.xlu0 %v2107, 25
      %v3229 = vpop.permute.xlu0 %3228
      %3230 = vrot.lane.b32.xlu0 %v2108, 25
      %v3231 = vpop.permute.xlu0 %3230
      %3232 = vrot.lane.b32.xlu0 %v2109, 25
      %v3233 = vpop.permute.xlu0 %3232
      %3234 = vrot.lane.b32.xlu0 %v2092, 25
      %v3235 = vpop.permute.xlu0 %3234
      %3236 = vrot.lane.b32.xlu0 %v2110, 25
      %v3237 = vpop.permute.xlu0 %3236
      %3238 = vrot.lane.b32.xlu0 %v2111, 25
      %v3239 = vpop.permute.xlu0 %3238
      %3240 = vrot.lane.b32.xlu0 %v2112, 25
      %v3241 = vpop.permute.xlu0 %3240
      %3242 = vrot.lane.b32.xlu0 %v2100, 25
      %v3243 = vpop.permute.xlu0 %3242
      %3244 = vrot.lane.b32.xlu0 %v2113, 25
      %v3245 = vpop.permute.xlu0 %3244
      %3246 = vrot.lane.b32.xlu0 %v2114, 25
      %v3247 = vpop.permute.xlu0 %3246
      %3248 = vrot.lane.b32.xlu0 %v2115, 25
      %v3249 = vpop.permute.xlu0 %3248
      %3250 = vrot.lane.b32.xlu0 %v2117, 25
      %v3251 = vpop.permute.xlu0 %3250
      %3252 = vrot.lane.b32.xlu0 %v2141, 25
      %v3253 = vpop.permute.xlu0 %3252
      %3254 = vrot.lane.b32.xlu0 %v2142, 25
      %v3255 = vpop.permute.xlu0 %3254
      %3256 = vrot.lane.b32.xlu0 %v2143, 25
      %v3257 = vpop.permute.xlu0 %3256
      %3258 = vrot.lane.b32.xlu0 %v2125, 25
      %v3259 = vpop.permute.xlu0 %3258
      %3260 = vrot.lane.b32.xlu0 %v2144, 25
      %v3261 = vpop.permute.xlu0 %3260
      %3262 = vrot.lane.b32.xlu0 %v2145, 25
      %v3263 = vpop.permute.xlu0 %3262
      %3264 = vrot.lane.b32.xlu0 %v2146, 25
      %v3265 = vpop.permute.xlu0 %3264
      %3266 = vrot.lane.b32.xlu0 %v2133, 25
      %v3267 = vpop.permute.xlu0 %3266
      %3268 = vrot.lane.b32.xlu0 %v2147, 25
      %v3269 = vpop.permute.xlu0 %3268
      %3270 = vrot.lane.b32.xlu0 %v2148, 25
      %v3271 = vpop.permute.xlu0 %3270
      %3272 = vrot.lane.b32.xlu0 %v2149, 25
      %v3273 = vpop.permute.xlu0 %3272
      %3274 = vrot.lane.b32.xlu0 %v2151, 25
      %v3275 = vpop.permute.xlu0 %3274
      %3276 = vrot.lane.b32.xlu0 %v2175, 25
      %v3277 = vpop.permute.xlu0 %3276
      %3278 = vrot.lane.b32.xlu0 %v2176, 25
      %v3279 = vpop.permute.xlu0 %3278
      %3280 = vrot.lane.b32.xlu0 %v2177, 25
      %v3281 = vpop.permute.xlu0 %3280
      %3282 = vrot.lane.b32.xlu0 %v2159, 25
      %v3283 = vpop.permute.xlu0 %3282
      %3284 = vrot.lane.b32.xlu0 %v2178, 25
      %v3285 = vpop.permute.xlu0 %3284
      %3286 = vrot.lane.b32.xlu0 %v2179, 25
      %v3287 = vpop.permute.xlu0 %3286
      %3288 = vrot.lane.b32.xlu0 %v2180, 25
      %v3289 = vpop.permute.xlu0 %3288
      %3290 = vrot.lane.b32.xlu0 %v2167, 25
      %v3291 = vpop.permute.xlu0 %3290
      %3292 = vrot.lane.b32.xlu0 %v2181, 25
      %v3293 = vpop.permute.xlu0 %3292
      %3294 = vrot.lane.b32.xlu0 %v2182, 25
      %v3295 = vpop.permute.xlu0 %3294
      %3296 = vrot.lane.b32.xlu0 %v2183, 25
      %v3297 = vpop.permute.xlu0 %3296
      %3298 = vrot.lane.b32.xlu0 %v2185, 25
      %v3299 = vpop.permute.xlu0 %3298
      %3300 = vrot.lane.b32.xlu0 %v2209, 25
      %v3301 = vpop.permute.xlu0 %3300
      %3302 = vrot.lane.b32.xlu0 %v2210, 25
      %v3303 = vpop.permute.xlu0 %3302
      %3304 = vrot.lane.b32.xlu0 %v2211, 25
      %v3305 = vpop.permute.xlu0 %3304
      %3306 = vrot.lane.b32.xlu0 %v2193, 25
      %v3307 = vpop.permute.xlu0 %3306
      %3308 = vrot.lane.b32.xlu0 %v2212, 25
      %v3309 = vpop.permute.xlu0 %3308
      %3310 = vrot.lane.b32.xlu0 %v2213, 25
      %v3311 = vpop.permute.xlu0 %3310
      %3312 = vrot.lane.b32.xlu0 %v2214, 25
      %v3313 = vpop.permute.xlu0 %3312
      %3314 = vrot.lane.b32.xlu0 %v2201, 25
      %v3315 = vpop.permute.xlu0 %3314
      %3316 = vrot.lane.b32.xlu0 %v2215, 25
      %v3317 = vpop.permute.xlu0 %3316
      %3318 = vrot.lane.b32.xlu0 %v2216, 25
      %v3319 = vpop.permute.xlu0 %3318
      %3320 = vrot.lane.b32.xlu0 %v2217, 25
      %v3321 = vpop.permute.xlu0 %3320
      %3322 = vrot.lane.b32.xlu0 %v2243, 25
      %v3323 = vpop.permute.xlu0 %3322
      %3324 = vrot.lane.b32.xlu0 %v2244, 25
      %v3325 = vpop.permute.xlu0 %3324
      %3326 = vrot.lane.b32.xlu0 %v2245, 25
      %v3327 = vpop.permute.xlu0 %3326
      %3328 = vrot.lane.b32.xlu0 %v2225, 25
      %v3329 = vpop.permute.xlu0 %3328
      %3330 = vrot.lane.b32.xlu0 %v2246, 25
      %v3331 = vpop.permute.xlu0 %3330
      %3332 = vrot.lane.b32.xlu0 %v2247, 25
      %v3333 = vpop.permute.xlu0 %3332
      %3334 = vrot.lane.b32.xlu0 %v2248, 25
      %v3335 = vpop.permute.xlu0 %3334
      %3336 = vrot.lane.b32.xlu0 %v2233, 25
      %v3337 = vpop.permute.xlu0 %3336
      %3338 = vrot.lane.b32.xlu0 %v2249, 25
      %v3339 = vpop.permute.xlu0 %3338
      %3340 = vrot.lane.b32.xlu0 %v2250, 25
      %v3341 = vpop.permute.xlu0 %3340
      %3342 = vrot.lane.b32.xlu0 %v2251, 25
      %v3343 = vpop.permute.xlu0 %3342
      %3344 = vrot.lane.b32.xlu0 %v2241, 25
      %v3345 = vpop.permute.xlu0 %3344
      %3346 = vrot.lane.b32.xlu0 %v2253, 25
      %v3347 = vpop.permute.xlu0 %3346
      %3348 = vrot.lane.b32.xlu0 %v2277, 25
      %v3349 = vpop.permute.xlu0 %3348
      %3350 = vrot.lane.b32.xlu0 %v2278, 25
      %v3351 = vpop.permute.xlu0 %3350
      %3352 = vrot.lane.b32.xlu0 %v2279, 25
      %v3353 = vpop.permute.xlu0 %3352
      %3354 = vrot.lane.b32.xlu0 %v2261, 25
      %v3355 = vpop.permute.xlu0 %3354
      %3356 = vrot.lane.b32.xlu0 %v2280, 25
      %v3357 = vpop.permute.xlu0 %3356
      %3358 = vrot.lane.b32.xlu0 %v2281, 25
      %v3359 = vpop.permute.xlu0 %3358
      %3360 = vrot.lane.b32.xlu0 %v2282, 25
      %v3361 = vpop.permute.xlu0 %3360
      %3362 = vrot.lane.b32.xlu0 %v2269, 25
      %v3363 = vpop.permute.xlu0 %3362
      %3364 = vrot.lane.b32.xlu0 %v2283, 25
      %v3365 = vpop.permute.xlu0 %3364
      %3366 = vrot.lane.b32.xlu0 %v2284, 25
      %v3367 = vpop.permute.xlu0 %3366
      %3368 = vrot.lane.b32.xlu0 %v2285, 25
      %v3369 = vpop.permute.xlu0 %3368
      %3370 = vrot.lane.b32.xlu0 %v2287, 25
      %v3371 = vpop.permute.xlu0 %3370
      %3372 = vrot.lane.b32.xlu0 %v2311, 25
      %v3373 = vpop.permute.xlu0 %3372
      %3374 = vrot.lane.b32.xlu0 %v2312, 25
      %v3375 = vpop.permute.xlu0 %3374
      %3376 = vrot.lane.b32.xlu0 %v2313, 25
      %v3377 = vpop.permute.xlu0 %3376
      %3378 = vrot.lane.b32.xlu0 %v2295, 25
      %v3379 = vpop.permute.xlu0 %3378
      %3380 = vrot.lane.b32.xlu0 %v2314, 25
      %v3381 = vpop.permute.xlu0 %3380
      %3382 = vrot.lane.b32.xlu0 %v2315, 25
      %v3383 = vpop.permute.xlu0 %3382
      %3384 = vrot.lane.b32.xlu0 %v2316, 25
      %v3385 = vpop.permute.xlu0 %3384
      %3386 = vrot.lane.b32.xlu0 %v2303, 25
      %v3387 = vpop.permute.xlu0 %3386
      %3388 = vrot.lane.b32.xlu0 %v2317, 25
      %v3389 = vpop.permute.xlu0 %3388
      %3390 = vrot.lane.b32.xlu0 %v2318, 25
      %v3391 = vpop.permute.xlu0 %3390
      %3392 = vrot.lane.b32.xlu0 %v2319, 25
      %v3393 = vpop.permute.xlu0 %3392
      %3394 = vrot.lane.b32.xlu0 %v2616, 25
      %v3395 = vpop.permute.xlu0 %3394
      %3396 = vrot.lane.b32.xlu0 %v2880, 25
      %v3397 = vpop.permute.xlu0 %3396
      %3398 = vrot.lane.b32.xlu0 %v2881, 25
      %v3399 = vpop.permute.xlu0 %3398
      %3400 = vrot.lane.b32.xlu0 %v2882, 25
      %v3401 = vpop.permute.xlu0 %3400
      %3402 = vrot.lane.b32.xlu0 %v2624, 25
      %v3403 = vpop.permute.xlu0 %3402
      %3404 = vrot.lane.b32.xlu0 %v2883, 25
      %v3405 = vpop.permute.xlu0 %3404
      %3406 = vrot.lane.b32.xlu0 %v2884, 25
      %v3407 = vpop.permute.xlu0 %3406
      %3408 = vrot.lane.b32.xlu0 %v2885, 25
      %v3409 = vpop.permute.xlu0 %3408
      %3410 = vrot.lane.b32.xlu0 %v2632, 25
      %v3411 = vpop.permute.xlu0 %3410
      %3412 = vrot.lane.b32.xlu0 %v2886, 25
      %v3413 = vpop.permute.xlu0 %3412
      %3414 = vrot.lane.b32.xlu0 %v2887, 25
      %v3415 = vpop.permute.xlu0 %3414
      %3416 = vrot.lane.b32.xlu0 %v2888, 25
      %v3417 = vpop.permute.xlu0 %3416
      %3418 = vrot.lane.b32.xlu0 %v2640, 25
      %v3419 = vpop.permute.xlu0 %3418
      %3420 = vrot.lane.b32.xlu0 %v2889, 25
      %v3421 = vpop.permute.xlu0 %3420
      %3422 = vrot.lane.b32.xlu0 %v2890, 25
      %v3423 = vpop.permute.xlu0 %3422
      %3424 = vrot.lane.b32.xlu0 %v2891, 25
      %v3425 = vpop.permute.xlu0 %3424
      %3426 = vrot.lane.b32.xlu0 %v2648, 25
      %v3427 = vpop.permute.xlu0 %3426
      %3428 = vrot.lane.b32.xlu0 %v2892, 25
      %v3429 = vpop.permute.xlu0 %3428
      %3430 = vrot.lane.b32.xlu0 %v2893, 25
      %v3431 = vpop.permute.xlu0 %3430
      %3432 = vrot.lane.b32.xlu0 %v2894, 25
      %v3433 = vpop.permute.xlu0 %3432
      %3434 = vrot.lane.b32.xlu0 %v2656, 25
      %v3435 = vpop.permute.xlu0 %3434
      %3436 = vrot.lane.b32.xlu0 %v2895, 25
      %v3437 = vpop.permute.xlu0 %3436
      %3438 = vrot.lane.b32.xlu0 %v2896, 25
      %v3439 = vpop.permute.xlu0 %3438
      %3440 = vrot.lane.b32.xlu0 %v2897, 25
      %v3441 = vpop.permute.xlu0 %3440
      %3442 = vrot.lane.b32.xlu0 %v2664, 25
      %v3443 = vpop.permute.xlu0 %3442
      %3444 = vrot.lane.b32.xlu0 %v2898, 25
      %v3445 = vpop.permute.xlu0 %3444
      %3446 = vrot.lane.b32.xlu0 %v2899, 25
      %v3447 = vpop.permute.xlu0 %3446
      %3448 = vrot.lane.b32.xlu0 %v2900, 25
      %v3449 = vpop.permute.xlu0 %3448
      %3450 = vrot.lane.b32.xlu0 %v2672, 25
      %v3451 = vpop.permute.xlu0 %3450
      %3452 = vrot.lane.b32.xlu0 %v2901, 25
      %v3453 = vpop.permute.xlu0 %3452
      %3454 = vrot.lane.b32.xlu0 %v2902, 25
      %v3455 = vpop.permute.xlu0 %3454
      %3456 = vrot.lane.b32.xlu0 %v2903, 25
      %v3457 = vpop.permute.xlu0 %3456
      %3458 = vrot.lane.b32.xlu0 %v2680, 25
      %v3459 = vpop.permute.xlu0 %3458
      %3460 = vrot.lane.b32.xlu0 %v2904, 25
      %v3461 = vpop.permute.xlu0 %3460
      %3462 = vrot.lane.b32.xlu0 %v2905, 25
      %v3463 = vpop.permute.xlu0 %3462
      %3464 = vrot.lane.b32.xlu0 %v2906, 25
      %v3465 = vpop.permute.xlu0 %3464
      %3466 = vrot.lane.b32.xlu0 %v2688, 25
      %v3467 = vpop.permute.xlu0 %3466
      %3468 = vrot.lane.b32.xlu0 %v2907, 25
      %v3469 = vpop.permute.xlu0 %3468
      %3470 = vrot.lane.b32.xlu0 %v2908, 25
      %v3471 = vpop.permute.xlu0 %3470
      %3472 = vrot.lane.b32.xlu0 %v2909, 25
      %v3473 = vpop.permute.xlu0 %3472
      %3474 = vrot.lane.b32.xlu0 %v2696, 25
      %v3475 = vpop.permute.xlu0 %3474
      %3476 = vrot.lane.b32.xlu0 %v2910, 25
      %v3477 = vpop.permute.xlu0 %3476
      %3478 = vrot.lane.b32.xlu0 %v2911, 25
      %v3479 = vpop.permute.xlu0 %3478
      %3480 = vrot.lane.b32.xlu0 %v2912, 25
      %v3481 = vpop.permute.xlu0 %3480
      %3482 = vrot.lane.b32.xlu0 %v2704, 25
      %v3483 = vpop.permute.xlu0 %3482
      %3484 = vrot.lane.b32.xlu0 %v2913, 25
      %v3485 = vpop.permute.xlu0 %3484
      %3486 = vrot.lane.b32.xlu0 %v2914, 25
      %v3487 = vpop.permute.xlu0 %3486
      %3488 = vrot.lane.b32.xlu0 %v2915, 25
      %v3489 = vpop.permute.xlu0 %3488
      %3490 = vrot.lane.b32.xlu0 %v2712, 25
      %v3491 = vpop.permute.xlu0 %3490
      %3492 = vrot.lane.b32.xlu0 %v2916, 25
      %v3493 = vpop.permute.xlu0 %3492
      %3494 = vrot.lane.b32.xlu0 %v2917, 25
      %v3495 = vpop.permute.xlu0 %3494
      %3496 = vrot.lane.b32.xlu0 %v2918, 25
      %v3497 = vpop.permute.xlu0 %3496
      %3498 = vrot.lane.b32.xlu0 %v2720, 25
      %v3499 = vpop.permute.xlu0 %3498
      %3500 = vrot.lane.b32.xlu0 %v2919, 25
      %v3501 = vpop.permute.xlu0 %3500
      %3502 = vrot.lane.b32.xlu0 %v2920, 25
      %v3503 = vpop.permute.xlu0 %3502
      %3504 = vrot.lane.b32.xlu0 %v2921, 25
      %v3505 = vpop.permute.xlu0 %3504
      %3506 = vrot.lane.b32.xlu0 %v2728, 25
      %v3507 = vpop.permute.xlu0 %3506
      %3508 = vrot.lane.b32.xlu0 %v2922, 25
      %v3509 = vpop.permute.xlu0 %3508
      %3510 = vrot.lane.b32.xlu0 %v2923, 25
      %v3511 = vpop.permute.xlu0 %3510
      %3512 = vrot.lane.b32.xlu0 %v2924, 25
      %v3513 = vpop.permute.xlu0 %3512
      %3514 = vrot.lane.b32.xlu0 %v2736, 25
      %v3515 = vpop.permute.xlu0 %3514
      %3516 = vrot.lane.b32.xlu0 %v2925, 25
      %v3517 = vpop.permute.xlu0 %3516
      %3518 = vrot.lane.b32.xlu0 %v2926, 25
      %v3519 = vpop.permute.xlu0 %3518
      %3520 = vrot.lane.b32.xlu0 %v2927, 25
      %v3521 = vpop.permute.xlu0 %3520
      %3522 = vrot.lane.b32.xlu0 %v2744, 25
      %v3523 = vpop.permute.xlu0 %3522
      %3524 = vrot.lane.b32.xlu0 %v2928, 25
      %v3525 = vpop.permute.xlu0 %3524
      %3526 = vrot.lane.b32.xlu0 %v2929, 25
      %v3527 = vpop.permute.xlu0 %3526
      %3528 = vrot.lane.b32.xlu0 %v2930, 25
      %v3529 = vpop.permute.xlu0 %3528
      %3530 = vrot.lane.b32.xlu0 %v2752, 25
      %v3531 = vpop.permute.xlu0 %3530
      %3532 = vrot.lane.b32.xlu0 %v2931, 25
      %v3533 = vpop.permute.xlu0 %3532
      %3534 = vrot.lane.b32.xlu0 %v2932, 25
      %v3535 = vpop.permute.xlu0 %3534
      %3536 = vrot.lane.b32.xlu0 %v2933, 25
      %v3537 = vpop.permute.xlu0 %3536
      %3538 = vrot.lane.b32.xlu0 %v2760, 25
      %v3539 = vpop.permute.xlu0 %3538
      %3540 = vrot.lane.b32.xlu0 %v2934, 25
      %v3541 = vpop.permute.xlu0 %3540
      %3542 = vrot.lane.b32.xlu0 %v2935, 25
      %v3543 = vpop.permute.xlu0 %3542
      %3544 = vrot.lane.b32.xlu0 %v2936, 25
      %v3545 = vpop.permute.xlu0 %3544
      %3546 = vrot.lane.b32.xlu0 %v2768, 25
      %v3547 = vpop.permute.xlu0 %3546
      %3548 = vrot.lane.b32.xlu0 %v2937, 25
      %v3549 = vpop.permute.xlu0 %3548
      %3550 = vrot.lane.b32.xlu0 %v2938, 25
      %v3551 = vpop.permute.xlu0 %3550
      %3552 = vrot.lane.b32.xlu0 %v2939, 25
      %v3553 = vpop.permute.xlu0 %3552
      %3554 = vrot.lane.b32.xlu0 %v2776, 25
      %v3555 = vpop.permute.xlu0 %3554
      %3556 = vrot.lane.b32.xlu0 %v2940, 25
      %v3557 = vpop.permute.xlu0 %3556
      %3558 = vrot.lane.b32.xlu0 %v2941, 25
      %v3559 = vpop.permute.xlu0 %3558
      %3560 = vrot.lane.b32.xlu0 %v2942, 25
      %v3561 = vpop.permute.xlu0 %3560
      %3562 = vrot.lane.b32.xlu0 %v2784, 25
      %v3563 = vpop.permute.xlu0 %3562
      %3564 = vrot.lane.b32.xlu0 %v2943, 25
      %v3565 = vpop.permute.xlu0 %3564
      %3566 = vrot.lane.b32.xlu0 %v2944, 25
      %v3567 = vpop.permute.xlu0 %3566
      %3568 = vrot.lane.b32.xlu0 %v2945, 25
      %v3569 = vpop.permute.xlu0 %3568
      %3570 = vrot.lane.b32.xlu0 %v2792, 25
      %v3571 = vpop.permute.xlu0 %3570
      %3572 = vrot.lane.b32.xlu0 %v2946, 25
      %v3573 = vpop.permute.xlu0 %3572
      %3574 = vrot.lane.b32.xlu0 %v2947, 25
      %v3575 = vpop.permute.xlu0 %3574
      %3576 = vrot.lane.b32.xlu0 %v2948, 25
      %v3577 = vpop.permute.xlu0 %3576
      %3578 = vrot.lane.b32.xlu0 %v2800, 25
      %v3579 = vpop.permute.xlu0 %3578
      %3580 = vrot.lane.b32.xlu0 %v2949, 25
      %v3581 = vpop.permute.xlu0 %3580
      %3582 = vrot.lane.b32.xlu0 %v2950, 25
      %v3583 = vpop.permute.xlu0 %3582
      %3584 = vrot.lane.b32.xlu0 %v2951, 25
      %v3585 = vpop.permute.xlu0 %3584
      %3586 = vrot.lane.b32.xlu0 %v2808, 25
      %v3587 = vpop.permute.xlu0 %3586
      %3588 = vrot.lane.b32.xlu0 %v2952, 25
      %v3589 = vpop.permute.xlu0 %3588
      %3590 = vrot.lane.b32.xlu0 %v2953, 25
      %v3591 = vpop.permute.xlu0 %3590
      %3592 = vrot.lane.b32.xlu0 %v2954, 25
      %v3593 = vpop.permute.xlu0 %3592
      %3594 = vrot.lane.b32.xlu0 %v2816, 25
      %v3595 = vpop.permute.xlu0 %3594
      %3596 = vrot.lane.b32.xlu0 %v2955, 25
      %v3597 = vpop.permute.xlu0 %3596
      %3598 = vrot.lane.b32.xlu0 %v2956, 25
      %v3599 = vpop.permute.xlu0 %3598
      %3600 = vrot.lane.b32.xlu0 %v2957, 25
      %v3601 = vpop.permute.xlu0 %3600
      %3602 = vrot.lane.b32.xlu0 %v2824, 25
      %v3603 = vpop.permute.xlu0 %3602
      %3604 = vrot.lane.b32.xlu0 %v2958, 25
      %v3605 = vpop.permute.xlu0 %3604
      %3606 = vrot.lane.b32.xlu0 %v2959, 25
      %v3607 = vpop.permute.xlu0 %3606
      %3608 = vrot.lane.b32.xlu0 %v2960, 25
      %v3609 = vpop.permute.xlu0 %3608
      %3610 = vrot.lane.b32.xlu0 %v2832, 25
      %v3611 = vpop.permute.xlu0 %3610
      %3612 = vrot.lane.b32.xlu0 %v2961, 25
      %v3613 = vpop.permute.xlu0 %3612
      %3614 = vrot.lane.b32.xlu0 %v2962, 25
      %v3615 = vpop.permute.xlu0 %3614
      %3616 = vrot.lane.b32.xlu0 %v2963, 25
      %v3617 = vpop.permute.xlu0 %3616
      %3618 = vrot.lane.b32.xlu0 %v2840, 25
      %v3619 = vpop.permute.xlu0 %3618
      %3620 = vrot.lane.b32.xlu0 %v2964, 25
      %v3621 = vpop.permute.xlu0 %3620
      %3622 = vrot.lane.b32.xlu0 %v2965, 25
      %v3623 = vpop.permute.xlu0 %3622
      %3624 = vrot.lane.b32.xlu0 %v2966, 25
      %v3625 = vpop.permute.xlu0 %3624
      %3626 = vrot.lane.b32.xlu0 %v2848, 25
      %v3627 = vpop.permute.xlu0 %3626
      %3628 = vrot.lane.b32.xlu0 %v2967, 25
      %v3629 = vpop.permute.xlu0 %3628
      %3630 = vrot.lane.b32.xlu0 %v2968, 25
      %v3631 = vpop.permute.xlu0 %3630
      %3632 = vrot.lane.b32.xlu0 %v2969, 25
      %v3633 = vpop.permute.xlu0 %3632
      %3634 = vrot.lane.b32.xlu0 %v2856, 25
      %v3635 = vpop.permute.xlu0 %3634
      %3636 = vrot.lane.b32.xlu0 %v2970, 25
      %v3637 = vpop.permute.xlu0 %3636
      %3638 = vrot.lane.b32.xlu0 %v2971, 25
      %v3639 = vpop.permute.xlu0 %3638
      %3640 = vrot.lane.b32.xlu0 %v2972, 25
      %v3641 = vpop.permute.xlu0 %3640
      %3642 = vrot.lane.b32.xlu0 %v2864, 25
      %v3643 = vpop.permute.xlu0 %3642
      %3644 = vrot.lane.b32.xlu0 %v2973, 25
      %v3645 = vpop.permute.xlu0 %3644
      %3646 = vrot.lane.b32.xlu0 %v2974, 25
      %v3647 = vpop.permute.xlu0 %3646
      %3648 = vrot.lane.b32.xlu0 %v2975, 25
      %v3649 = vpop.permute.xlu0 %3648
      %3650 = vrot.lane.b32.xlu0 %v2872, 25
      %v3651 = vpop.permute.xlu0 %3650
      %3652 = vrot.lane.b32.xlu0 %v2976, 25
      %v3653 = vpop.permute.xlu0 %3652
      %3654 = vrot.lane.b32.xlu0 %v2977, 25
      %v3655 = vpop.permute.xlu0 %3654
      %3656 = vrot.lane.b32.xlu0 %v2978, 25
      %v3657 = vpop.permute.xlu0 %3656
      %v3658 = vsel %vm2140, %v3059, %v3061
      %v3659 = vsel %vm2140, %v3061, %v3063
      %v3660 = vsel %vm2140, %v3063, %v3065
      %v3661 = vsel %vm2140, %v3067, %v3069
      %v3662 = vsel %vm2140, %v3069, %v3071
      %v3663 = vsel %vm2140, %v3071, %v3073
      %v3664 = vsel %vm2140, %v3075, %v3077
      %v3665 = vsel %vm2140, %v3077, %v3079
      %v3666 = vsel %vm2140, %v3079, %v3081
      %v3667 = vsel %vm2140, %v3083, %v3085
      %v3668 = vsel %vm2140, %v3085, %v3087
      %v3669 = vsel %vm2140, %v3087, %v3089
      %v3670 = vsel %vm2140, %v3091, %v3093
      %v3671 = vsel %vm2140, %v3093, %v3095
      %v3672 = vsel %vm2140, %v3095, %v3097
      %v3673 = vsel %vm2140, %v3099, %v3101
      %v3674 = vsel %vm2140, %v3101, %v3103
      %v3675 = vsel %vm2140, %v3103, %v3105
      %v3676 = vsel %vm2140, %v3107, %v3109
      %v3677 = vsel %vm2140, %v3109, %v3111
      %v3678 = vsel %vm2140, %v3111, %v3113
      %v3679 = vsel %vm2140, %v3115, %v3117
      %v3680 = vsel %vm2140, %v3117, %v3119
      %v3681 = vsel %vm2140, %v3119, %v3121
      %v3682 = vsel %vm2140, %v3123, %v3125
      %v3683 = vsel %vm2140, %v3125, %v3127
      %v3684 = vsel %vm2140, %v3127, %v3129
      %v3685 = vsel %vm2140, %v3131, %v3133
      %v3686 = vsel %vm2140, %v3133, %v3135
      %v3687 = vsel %vm2140, %v3135, %v3137
      %v3688 = vsel %vm2140, %v3139, %v3141
      %v3689 = vsel %vm2140, %v3141, %v3143
      %v3690 = vsel %vm2140, %v3143, %v3145
      %v3691 = vsel %vm2140, %v3147, %v3149
      %v3692 = vsel %vm2140, %v3149, %v3151
      %v3693 = vsel %vm2140, %v3151, %v3153
      %v3694 = vsel %vm2140, %v3155, %v3157
      %v3695 = vsel %vm2140, %v3157, %v3159
      %v3696 = vsel %vm2140, %v3159, %v3161
      %v3697 = vsel %vm2140, %v3163, %v3165
      %v3698 = vsel %vm2140, %v3165, %v3167
      %v3699 = vsel %vm2140, %v3167, %v3169
      %v3700 = vsel %vm2140, %v3171, %v3173
      %v3701 = vsel %vm2140, %v3173, %v3175
      %v3702 = vsel %vm2140, %v3175, %v3177
      %v3703 = vsel %vm2140, %v3179, %v3181
      %v3704 = vsel %vm2140, %v3181, %v3183
      %v3705 = vsel %vm2140, %v3183, %v3185
      %v3706 = vsel %vm2140, %v3187, %v3189
      %v3707 = vsel %vm2140, %v3189, %v3191
      %v3708 = vsel %vm2140, %v3191, %v3193
      %v3709 = vsel %vm2140, %v3195, %v3197
      %v3710 = vsel %vm2140, %v3197, %v3199
      %v3711 = vsel %vm2140, %v3199, %v3201
      %v3712 = vsel %vm2140, %v3203, %v3205
      %v3713 = vsel %vm2140, %v3205, %v3207
      %v3714 = vsel %vm2140, %v3207, %v3209
      %v3715 = vsel %vm2140, %v3211, %v3213
      %v3716 = vsel %vm2140, %v3213, %v3215
      %v3717 = vsel %vm2140, %v3215, %v3217
      %v3718 = vsel %vm2140, %v3219, %v3221
      %v3719 = vsel %vm2140, %v3221, %v3223
      %v3720 = vsel %vm2140, %v3223, %v3225
      %v3721 = vsel %vm2140, %v3227, %v3229
      %v3722 = vsel %vm2140, %v3229, %v3231
      %v3723 = vsel %vm2140, %v3231, %v3233
      %v3724 = vsel %vm2140, %v3235, %v3237
      %v3725 = vsel %vm2140, %v3237, %v3239
      %v3726 = vsel %vm2140, %v3239, %v3241
      %v3727 = vsel %vm2140, %v3243, %v3245
      %v3728 = vsel %vm2140, %v3245, %v3247
      %v3729 = vsel %vm2140, %v3247, %v3249
      %v3730 = vsel %vm2140, %v3251, %v3253
      %v3731 = vsel %vm2140, %v3253, %v3255
      %v3732 = vsel %vm2140, %v3255, %v3257
      %v3733 = vsel %vm2140, %v3259, %v3261
      %v3734 = vsel %vm2140, %v3261, %v3263
      %v3735 = vsel %vm2140, %v3263, %v3265
      %v3736 = vsel %vm2140, %v3267, %v3269
      %v3737 = vsel %vm2140, %v3269, %v3271
      %v3738 = vsel %vm2140, %v3271, %v3273
      %v3739 = vsel %vm2140, %v3275, %v3277
      %v3740 = vsel %vm2140, %v3277, %v3279
      %v3741 = vsel %vm2140, %v3279, %v3281
      %v3742 = vsel %vm2140, %v3283, %v3285
      %v3743 = vsel %vm2140, %v3285, %v3287
      %v3744 = vsel %vm2140, %v3287, %v3289
      %v3745 = vsel %vm2140, %v3291, %v3293
      %v3746 = vsel %vm2140, %v3293, %v3295
      %v3747 = vsel %vm2140, %v3295, %v3297
      %v3748 = vsel %vm2140, %v3299, %v3301
      %v3749 = vsel %vm2140, %v3301, %v3303
      %v3750 = vsel %vm2140, %v3303, %v3305
      %v3751 = vsel %vm2140, %v3307, %v3309
      %v3752 = vsel %vm2140, %v3309, %v3311
      %v3753 = vsel %vm2140, %v3311, %v3313
      %v3754 = vsel %vm2140, %v3315, %v3317
      %v3755 = vsel %vm2140, %v3317, %v3319
      %v3756 = vsel %vm2140, %v3319, %v3321
      %v3757 = vsel %vm2140, %v3323, %v3325
      %v3758 = vsel %vm2140, %v3325, %v3327
      %v3759 = vsel %vm2140, %v3327, %v3329
      %v3760 = vsel %vm2140, %v3331, %v3333
      %v3761 = vsel %vm2140, %v3333, %v3335
      %v3762 = vsel %vm2140, %v3335, %v3337
      %v3763 = vsel %vm2140, %v3339, %v3341
      %v3764 = vsel %vm2140, %v3341, %v3343
      %v3765 = vsel %vm2140, %v3343, %v3345
      %v3766 = vsel %vm2140, %v3347, %v3349
      %v3767 = vsel %vm2140, %v3349, %v3351
      %v3768 = vsel %vm2140, %v3351, %v3353
      %v3769 = vsel %vm2140, %v3355, %v3357
      %v3770 = vsel %vm2140, %v3357, %v3359
      %v3771 = vsel %vm2140, %v3359, %v3361
      %v3772 = vsel %vm2140, %v3363, %v3365
      %v3773 = vsel %vm2140, %v3365, %v3367
      %v3774 = vsel %vm2140, %v3367, %v3369
      %v3775 = vsel %vm2140, %v3371, %v3373
      %v3776 = vsel %vm2140, %v3373, %v3375
      %v3777 = vsel %vm2140, %v3375, %v3377
      %v3778 = vsel %vm2140, %v3379, %v3381
      %v3779 = vsel %vm2140, %v3381, %v3383
      %v3780 = vsel %vm2140, %v3383, %v3385
      %v3781 = vsel %vm2140, %v3387, %v3389
      %v3782 = vsel %vm2140, %v3389, %v3391
      %v3783 = vsel %vm2140, %v3391, %v3393
      %v3784 = vsel %vm2140, %v3395, %v3397
      %v3785 = vsel %vm2140, %v3397, %v3399
      %v3786 = vsel %vm2140, %v3399, %v3401
      %v3787 = vsel %vm2140, %v3403, %v3405
      %v3788 = vsel %vm2140, %v3405, %v3407
      %v3789 = vsel %vm2140, %v3407, %v3409
      %v3790 = vsel %vm2140, %v3411, %v3413
      %v3791 = vsel %vm2140, %v3413, %v3415
      %v3792 = vsel %vm2140, %v3415, %v3417
      %v3793 = vsel %vm2140, %v3419, %v3421
      %v3794 = vsel %vm2140, %v3421, %v3423
      %v3795 = vsel %vm2140, %v3423, %v3425
      %v3796 = vsel %vm2140, %v3427, %v3429
      %v3797 = vsel %vm2140, %v3429, %v3431
      %v3798 = vsel %vm2140, %v3431, %v3433
      %v3799 = vsel %vm2140, %v3435, %v3437
      %v3800 = vsel %vm2140, %v3437, %v3439
      %v3801 = vsel %vm2140, %v3439, %v3441
      %v3802 = vsel %vm2140, %v3443, %v3445
      %v3803 = vsel %vm2140, %v3445, %v3447
      %v3804 = vsel %vm2140, %v3447, %v3449
      %v3805 = vsel %vm2140, %v3451, %v3453
      %v3806 = vsel %vm2140, %v3453, %v3455
      %v3807 = vsel %vm2140, %v3455, %v3457
      %v3808 = vsel %vm2140, %v3459, %v3461
      %v3809 = vsel %vm2140, %v3461, %v3463
      %v3810 = vsel %vm2140, %v3463, %v3465
      %v3811 = vsel %vm2140, %v3467, %v3469
      %v3812 = vsel %vm2140, %v3469, %v3471
      %v3813 = vsel %vm2140, %v3471, %v3473
      %v3814 = vsel %vm2140, %v3475, %v3477
      %v3815 = vsel %vm2140, %v3477, %v3479
      %v3816 = vsel %vm2140, %v3479, %v3481
      %v3817 = vsel %vm2140, %v3483, %v3485
      %v3818 = vsel %vm2140, %v3485, %v3487
      %v3819 = vsel %vm2140, %v3487, %v3489
      %v3820 = vsel %vm2140, %v3491, %v3493
      %v3821 = vsel %vm2140, %v3493, %v3495
      %v3822 = vsel %vm2140, %v3495, %v3497
      %v3823 = vsel %vm2140, %v3499, %v3501
      %v3824 = vsel %vm2140, %v3501, %v3503
      %v3825 = vsel %vm2140, %v3503, %v3505
      %v3826 = vsel %vm2140, %v3507, %v3509
      %v3827 = vsel %vm2140, %v3509, %v3511
      %v3828 = vsel %vm2140, %v3511, %v3513
      %v3829 = vsel %vm2140, %v3515, %v3517
      %v3830 = vsel %vm2140, %v3517, %v3519
      %v3831 = vsel %vm2140, %v3519, %v3521
      %v3832 = vsel %vm2140, %v3523, %v3525
      %v3833 = vsel %vm2140, %v3525, %v3527
      %v3834 = vsel %vm2140, %v3527, %v3529
      %v3835 = vsel %vm2140, %v3531, %v3533
      %v3836 = vsel %vm2140, %v3533, %v3535
      %v3837 = vsel %vm2140, %v3535, %v3537
      %v3838 = vsel %vm2140, %v3539, %v3541
      %v3839 = vsel %vm2140, %v3541, %v3543
      %v3840 = vsel %vm2140, %v3543, %v3545
      %v3841 = vsel %vm2140, %v3547, %v3549
      %v3842 = vsel %vm2140, %v3549, %v3551
      %v3843 = vsel %vm2140, %v3551, %v3553
      %v3844 = vsel %vm2140, %v3555, %v3557
      %v3845 = vsel %vm2140, %v3557, %v3559
      %v3846 = vsel %vm2140, %v3559, %v3561
      %v3847 = vsel %vm2140, %v3563, %v3565
      %v3848 = vsel %vm2140, %v3565, %v3567
      %v3849 = vsel %vm2140, %v3567, %v3569
      %v3850 = vsel %vm2140, %v3571, %v3573
      %v3851 = vsel %vm2140, %v3573, %v3575
      %v3852 = vsel %vm2140, %v3575, %v3577
      %v3853 = vsel %vm2140, %v3579, %v3581
      %v3854 = vsel %vm2140, %v3581, %v3583
      %v3855 = vsel %vm2140, %v3583, %v3585
      %v3856 = vsel %vm2140, %v3587, %v3589
      %v3857 = vsel %vm2140, %v3589, %v3591
      %v3858 = vsel %vm2140, %v3591, %v3593
      %v3859 = vsel %vm2140, %v3595, %v3597
      %v3860 = vsel %vm2140, %v3597, %v3599
      %v3861 = vsel %vm2140, %v3599, %v3601
      %v3862 = vsel %vm2140, %v3603, %v3605
      %v3863 = vsel %vm2140, %v3605, %v3607
      %v3864 = vsel %vm2140, %v3607, %v3609
      %v3865 = vsel %vm2140, %v3611, %v3613
      %v3866 = vsel %vm2140, %v3613, %v3615
      %v3867 = vsel %vm2140, %v3615, %v3617
      %v3868 = vsel %vm2140, %v3619, %v3621
      %v3869 = vsel %vm2140, %v3621, %v3623
      %v3870 = vsel %vm2140, %v3623, %v3625
      %v3871 = vsel %vm2140, %v3627, %v3629
      %v3872 = vsel %vm2140, %v3629, %v3631
      %v3873 = vsel %vm2140, %v3631, %v3633
      %v3874 = vsel %vm2140, %v3635, %v3637
      %v3875 = vsel %vm2140, %v3637, %v3639
      %v3876 = vsel %vm2140, %v3639, %v3641
      %v3877 = vsel %vm2140, %v3643, %v3645
      %v3878 = vsel %vm2140, %v3645, %v3647
      %v3879 = vsel %vm2140, %v3647, %v3649
      %v3880 = vsel %vm2140, %v3651, %v3653
      %v3881 = vsel %vm2140, %v3653, %v3655
      %v3882 = vsel %vm2140, %v3655, %v3657
      %v4118 = vsel %vm746, %v3047, 0
      %4120 = vmatprep.subr.bf16.mxu0 %v2142
      %4121 = vmatpush1.bf16.msra.mxu0 %v2141
      %4122 = vmatprep.subr.bf16.mxu0 %v2145
      %4123 = vmatpush1.bf16.msra.mxu0 %v2144
      %4124 = vmatprep.subr.bf16.mxu0 %v2148
      %4125 = vmatpush1.bf16.msra.mxu0 %v2147
      %4126 = vmatprep.subr.bf16.mxu0 %v3659
      %4127 = vmatpush1.bf16.msra.mxu0 %v3658
      %4128 = vmatprep.subr.bf16.mxu0 %v3662
      %4129 = vmatpush1.bf16.msra.mxu0 %v3661
      %4130 = vmatprep.subr.bf16.mxu0 %v3665
      %4131 = vmatpush1.bf16.msra.mxu0 %v3664
      %4132 = vmatprep.subr.bf16.mxu0 %v3668
      %4133 = vmatpush1.bf16.msra.mxu0 %v3667
      %4134 = vmatprep.subr.bf16.mxu0 %v3671
      %4135 = vmatpush1.bf16.msra.mxu0 %v3670
      %4136 = vmatprep.subr.bf16.mxu0 %v3674
      %4137 = vmatpush1.bf16.msra.mxu0 %v3673
      %4138 = vmatprep.subr.bf16.mxu0 %v3677
      %4139 = vmatpush1.bf16.msra.mxu0 %v3676
      %4140 = vmatprep.subr.bf16.mxu0 %v3680
      %4141 = vmatpush1.bf16.msra.mxu0 %v3679
      %4142 = vmatprep.subr.bf16.mxu0 %v3683
      %4143 = vmatpush1.bf16.msra.mxu0 %v3682
      %4144 = vmatprep.subr.bf16.mxu0 %v3686
      %4145 = vmatpush1.bf16.msra.mxu0 %v3685
      %4146 = vmatprep.subr.bf16.mxu0 %v3689
      %4147 = vmatpush1.bf16.msra.mxu0 %v3688
      %4148 = vmatprep.subr.bf16.mxu0 %v3692
      %4149 = vmatpush1.bf16.msra.mxu0 %v3691
      %4150 = vmatprep.subr.bf16.mxu0 %v3695
      %4151 = vmatpush1.bf16.msra.mxu0 %v3694
      %4152 = vmatprep.mubr.bf16.mxu0 %v3038
      %4153 = vmatmul.mubr.bf16.gmra.mrb[0].mxu0 %v3037
      %v4154 = vpop.f32.mrb[0].mxu0
      %v4155 = vadd.f32 %v2996, %v4154
      %v4156 = vpop.f32.mrb[0].mxu0
      %v4157 = vadd.f32 %v2996, %v4156
      %v4158 = vpop.f32.mrb[0].mxu0
      %v4159 = vadd.f32 %v3001, %v4158
      %v4160 = vpop.f32.mrb[0].mxu0
      %v4161 = vadd.f32 %v3001, %v4160
      %4162 = vdwg.mxu0
      %4163 = vmatprep.subr.bf16.mxu0 %v3698
      %4164 = vmatpush1.bf16.msra.mxu0 %v3697
      %4165 = vmatprep.subr.bf16.mxu0 %v3701
      %4166 = vmatpush1.bf16.msra.mxu0 %v3700
      %4167 = vmatprep.subr.bf16.mxu0 %v3704
      %4168 = vmatpush1.bf16.msra.mxu0 %v3703
      %4169 = vmatprep.subr.bf16.mxu0 %v3707
      %4170 = vmatpush1.bf16.msra.mxu0 %v3706
      %4171 = vmatprep.subr.bf16.mxu0 %v3710
      %4172 = vmatpush1.bf16.msra.mxu0 %v3709
      %4173 = vmatprep.subr.bf16.mxu0 %v3713
      %4174 = vmatpush1.bf16.msra.mxu0 %v3712
      %4175 = vmatprep.subr.bf16.mxu0 %v3716
      %4176 = vmatpush1.bf16.msra.mxu0 %v3715
      %4177 = vmatprep.subr.bf16.mxu0 %v3719
      %4178 = vmatpush1.bf16.msra.mxu0 %v3718
      %4179 = vmatprep.subr.bf16.mxu0 %v3722
      %4180 = vmatpush1.bf16.msra.mxu0 %v3721
      %4181 = vmatprep.subr.bf16.mxu0 %v3725
      %4182 = vmatpush1.bf16.msra.mxu0 %v3724
      %4183 = vmatprep.subr.bf16.mxu0 %v3728
      %4184 = vmatpush1.bf16.msra.mxu0 %v3727
      %4185 = vmatprep.subr.bf16.mxu0 %v3731
      %4186 = vmatpush1.bf16.msra.mxu0 %v3730
      %4187 = vmatprep.subr.bf16.mxu0 %v3734
      %4188 = vmatpush1.bf16.msra.mxu0 %v3733
      %4189 = vmatprep.subr.bf16.mxu0 %v3737
      %4190 = vmatpush1.bf16.msra.mxu0 %v3736
      %4191 = vmatprep.subr.bf16.mxu0 %v3740
      %4192 = vmatpush1.bf16.msra.mxu0 %v3739
      %4193 = vmatprep.subr.bf16.mxu0 %v3743
      %4194 = vmatpush1.bf16.msra.mxu0 %v3742
      %4195 = vmatprep.mubr.bf16.mxu0 %v3040
      %4196 = vmatmul.mubr.bf16.gmra.mrb[0].mxu0 %v3039
      %v4197 = vpop.f32.mrb[0].mxu0
      %v4198 = vadd.f32 %v4155, %v4197
      %v4199 = vpop.f32.mrb[0].mxu0
      %v4200 = vadd.f32 %v4157, %v4199
      %v4201 = vpop.f32.mrb[0].mxu0
      %v4202 = vadd.f32 %v4159, %v4201
      %v4203 = vpop.f32.mrb[0].mxu0
      %v4204 = vadd.f32 %v4161, %v4203
      %4205 = vdwg.mxu0
      %4206 = vmatprep.subr.bf16.mxu0 %v3746
      %4207 = vmatpush1.bf16.msra.mxu0 %v3745
      %4208 = vmatprep.subr.bf16.mxu0 %v3749
      %4209 = vmatpush1.bf16.msra.mxu0 %v3748
      %4210 = vmatprep.subr.bf16.mxu0 %v3752
      %4211 = vmatpush1.bf16.msra.mxu0 %v3751
      %4212 = vmatprep.subr.bf16.mxu0 %v3755
      %4213 = vmatpush1.bf16.msra.mxu0 %v3754
      %4214 = vmatprep.subr.bf16.mxu0 %v3758
      %4215 = vmatpush1.bf16.msra.mxu0 %v3757
      %4216 = vmatprep.subr.bf16.mxu0 %v3761
      %4217 = vmatpush1.bf16.msra.mxu0 %v3760
      %4218 = vmatprep.subr.bf16.mxu0 %v3764
      %4219 = vmatpush1.bf16.msra.mxu0 %v3763
      %4220 = vmatprep.subr.bf16.mxu0 %v3686
      %4221 = vmatpush1.bf16.msra.mxu0 %v3685
      %4222 = vmatprep.subr.bf16.mxu0 %v3689
      %4223 = vmatpush1.bf16.msra.mxu0 %v3688
      %4224 = vmatprep.subr.bf16.mxu0 %v3692
      %4225 = vmatpush1.bf16.msra.mxu0 %v3691
      %4226 = vmatprep.subr.bf16.mxu0 %v3767
      %4227 = vmatpush1.bf16.msra.mxu0 %v3766
      %4228 = vmatprep.subr.bf16.mxu0 %v3770
      %4229 = vmatpush1.bf16.msra.mxu0 %v3769
      %4230 = vmatprep.subr.bf16.mxu0 %v3773
      %4231 = vmatpush1.bf16.msra.mxu0 %v3772
      %4232 = vmatprep.subr.bf16.mxu0 %v3776
      %4233 = vmatpush1.bf16.msra.mxu0 %v3775
      %4234 = vmatprep.subr.bf16.mxu0 %v3779
      %4235 = vmatpush1.bf16.msra.mxu0 %v3778
      %4236 = vmatprep.subr.bf16.mxu0 %v3782
      %4237 = vmatpush1.bf16.msra.mxu0 %v3781
      %4238 = vmatprep.mubr.bf16.mxu0 %v3042
      %4239 = vmatmul.mubr.bf16.gmra.mrb[0].mxu0 %v3041
      %v4240 = vpop.f32.mrb[0].mxu0
      %v4241 = vadd.f32 %v4198, %v4240
      %v4242 = vpop.f32.mrb[0].mxu0
      %v4243 = vadd.f32 %v4200, %v4242
      %v4244 = vpop.f32.mrb[0].mxu0
      %v4245 = vadd.f32 %v4202, %v4244
      %v4246 = vpop.f32.mrb[0].mxu0
      %v4247 = vadd.f32 %v4204, %v4246
      %4248 = vdwg.mxu0
      %4249 = vmatprep.subr.bf16.mxu0 %v3785
      %4250 = vmatpush1.bf16.msra.mxu0 %v3784
      %4251 = vmatprep.subr.bf16.mxu0 %v3788
      %4252 = vmatpush1.bf16.msra.mxu0 %v3787
      %4253 = vmatprep.subr.bf16.mxu0 %v3791
      %4254 = vmatpush1.bf16.msra.mxu0 %v3790
      %4255 = vmatprep.subr.bf16.mxu0 %v3794
      %4256 = vmatpush1.bf16.msra.mxu0 %v3793
      %4257 = vmatprep.subr.bf16.mxu0 %v3797
      %4258 = vmatpush1.bf16.msra.mxu0 %v3796
      %4259 = vmatprep.subr.bf16.mxu0 %v3800
      %4260 = vmatpush1.bf16.msra.mxu0 %v3799
      %4261 = vmatprep.subr.bf16.mxu0 %v3803
      %4262 = vmatpush1.bf16.msra.mxu0 %v3802
      %4263 = vmatprep.subr.bf16.mxu0 %v3806
      %4264 = vmatpush1.bf16.msra.mxu0 %v3805
      %4265 = vmatprep.subr.bf16.mxu0 %v3809
      %4266 = vmatpush1.bf16.msra.mxu0 %v3808
      %4267 = vmatprep.subr.bf16.mxu0 %v3812
      %4268 = vmatpush1.bf16.msra.mxu0 %v3811
      %4269 = vmatprep.subr.bf16.mxu0 %v3815
      %4270 = vmatpush1.bf16.msra.mxu0 %v3814
      %4271 = vmatprep.subr.bf16.mxu0 %v3818
      %4272 = vmatpush1.bf16.msra.mxu0 %v3817
      %4273 = vmatprep.subr.bf16.mxu0 %v3821
      %4274 = vmatpush1.bf16.msra.mxu0 %v3820
      %4275 = vmatprep.subr.bf16.mxu0 %v3824
      %4276 = vmatpush1.bf16.msra.mxu0 %v3823
      %4277 = vmatprep.subr.bf16.mxu0 %v3827
      %4278 = vmatpush1.bf16.msra.mxu0 %v3826
      %4279 = vmatprep.subr.bf16.mxu0 %v3830
      %4280 = vmatpush1.bf16.msra.mxu0 %v3829
      %4281 = vmatprep.mubr.bf16.mxu0 %v3044
      %4282 = vmatmul.mubr.bf16.gmra.mrb[0].mxu0 %v3043
      %v4283 = vpop.f32.mrb[0].mxu0
      %v4284 = vadd.f32 %v4241, %v4283
      %v4285 = vpop.f32.mrb[0].mxu0
      %v4286 = vadd.f32 %v4243, %v4285
      %v4287 = vpop.f32.mrb[0].mxu0
      %v4288 = vadd.f32 %v4245, %v4287
      %v4289 = vpop.f32.mrb[0].mxu0
      %v4290 = vadd.f32 %v4247, %v4289
      %4291 = vdwg.mxu0
      %4292 = vmatprep.subr.bf16.mxu0 %v3833
      %4293 = vmatpush1.bf16.msra.mxu0 %v3832
      %4294 = vmatprep.subr.bf16.mxu0 %v3836
      %4295 = vmatpush1.bf16.msra.mxu0 %v3835
      %4296 = vmatprep.subr.bf16.mxu0 %v3839
      %4297 = vmatpush1.bf16.msra.mxu0 %v3838
      %4298 = vmatprep.subr.bf16.mxu0 %v3842
      %4299 = vmatpush1.bf16.msra.mxu0 %v3841
      %4300 = vmatprep.subr.bf16.mxu0 %v3845
      %4301 = vmatpush1.bf16.msra.mxu0 %v3844
      %4302 = vmatprep.subr.bf16.mxu0 %v3848
      %4303 = vmatpush1.bf16.msra.mxu0 %v3847
      %4304 = vmatprep.subr.bf16.mxu0 %v3851
      %4305 = vmatpush1.bf16.msra.mxu0 %v3850
      %4306 = vmatprep.subr.bf16.mxu0 %v3854
      %4307 = vmatpush1.bf16.msra.mxu0 %v3853
      %4308 = vmatprep.subr.bf16.mxu0 %v3857
      %4309 = vmatpush1.bf16.msra.mxu0 %v3856
      %4310 = vmatprep.subr.bf16.mxu0 %v3860
      %4311 = vmatpush1.bf16.msra.mxu0 %v3859
      %4312 = vmatprep.subr.bf16.mxu0 %v3863
      %4313 = vmatpush1.bf16.msra.mxu0 %v3862
      %4314 = vmatprep.subr.bf16.mxu0 %v3866
      %4315 = vmatpush1.bf16.msra.mxu0 %v3865
      %4316 = vmatprep.subr.bf16.mxu0 %v3869
      %4317 = vmatpush1.bf16.msra.mxu0 %v3868
      %4318 = vmatprep.subr.bf16.mxu0 %v3872
      %4319 = vmatpush1.bf16.msra.mxu0 %v3871
      %4320 = vmatprep.subr.bf16.mxu0 %v3875
      %4321 = vmatpush1.bf16.msra.mxu0 %v3874
      %4322 = vmatprep.subr.bf16.mxu0 %v3878
      %4323 = vmatpush1.bf16.msra.mxu0 %v3877
      %4324 = vmatprep.mubr.bf16.mxu0 %v3046
      %4325 = vmatmul.mubr.bf16.gmra.mrb[0].mxu0 %v3045
      %v4326 = vpop.f32.mrb[0].mxu0
      %v4327 = vadd.f32 %v4284, %v4326
      %v4328 = vpop.f32.mrb[0].mxu0
      %v4329 = vadd.f32 %v4286, %v4328
      %v4330 = vpop.f32.mrb[0].mxu0
      %v4331 = vadd.f32 %v4288, %v4330
      %v4332 = vpop.f32.mrb[0].mxu0
      %v4333 = vadd.f32 %v4290, %v4332
      %4334 = vdwg.mxu0
      %4335 = vmatprep.subr.bf16.mxu0 %v3881
      %4336 = vmatpush1.bf16.msra.mxu0 %v3880
      %4337 = vmatprep.subr.bf16.mxu0 0
      %4338 = vmatpush1.bf16.msra.mxu0 0
      %4339 = vmatprep.subr.bf16.mxu0 0
      %4340 = vmatpush1.bf16.msra.mxu0 0
      %4341 = vmatprep.subr.bf16.mxu0 0
      %4342 = vmatpush1.bf16.msra.mxu0 0
      %4343 = vmatprep.subr.bf16.mxu0 0
      %4344 = vmatpush1.bf16.msra.mxu0 0
      %4345 = vmatprep.subr.bf16.mxu0 0
      %4346 = vmatpush1.bf16.msra.mxu0 0
      %4347 = vmatprep.subr.bf16.mxu0 0
      %4348 = vmatpush1.bf16.msra.mxu0 0
      %4349 = vmatprep.subr.bf16.mxu0 0
      %4350 = vmatpush1.bf16.msra.mxu0 0
      %4351 = vmatprep.subr.bf16.mxu0 0
      %4352 = vmatpush1.bf16.msra.mxu0 0
      %4353 = vmatprep.subr.bf16.mxu0 0
      %4354 = vmatpush1.bf16.msra.mxu0 0
      %4355 = vmatprep.subr.bf16.mxu0 0
      %4356 = vmatpush1.bf16.msra.mxu0 0
      %4357 = vmatprep.subr.bf16.mxu0 0
      %4358 = vmatpush1.bf16.msra.mxu0 0
      %4359 = vmatprep.subr.bf16.mxu0 0
      %4360 = vmatpush1.bf16.msra.mxu0 0
      %4361 = vmatprep.subr.bf16.mxu0 0
      %4362 = vmatpush1.bf16.msra.mxu0 0
      %4363 = vmatprep.subr.bf16.mxu0 0
      %4364 = vmatpush1.bf16.msra.mxu0 0
      %4365 = vmatprep.subr.bf16.mxu0 0
      %4366 = vmatpush1.bf16.msra.mxu0 0
      %4367 = vmatprep.mubr.bf16.mxu0 0
      %4368 = vmatmul.mubr.bf16.gmra.mrb[0].mxu0 %v4118
      %v4369 = vpop.f32.mrb[0].mxu0
      %v4370 = vadd.f32 %v4327, %v4369
      %v4371 = vpop.f32.mrb[0].mxu0
      %v4372 = vadd.f32 %v4329, %v4371
      %v4373 = vpop.f32.mrb[0].mxu0
      %v4374 = vadd.f32 %v4331, %v4373
      %v4375 = vpop.f32.mrb[0].mxu0
      %v4376 = vadd.f32 %v4333, %v4375
      %4377 = vdwg.mxu0
      %4378 = vmatprep.subr.bf16.mxu0 0
      %4379 = vmatpush1.bf16.msra.mxu0 %v2143
      %4380 = vmatprep.subr.bf16.mxu0 0
      %4381 = vmatpush1.bf16.msra.mxu0 %v2146
      %4382 = vmatprep.subr.bf16.mxu0 0
      %4383 = vmatpush1.bf16.msra.mxu0 %v2149
      %4384 = vmatprep.subr.bf16.mxu0 0
      %4385 = vmatpush1.bf16.msra.mxu0 %v3660
      %4386 = vmatprep.subr.bf16.mxu0 0
      %4387 = vmatpush1.bf16.msra.mxu0 %v3663
      %4388 = vmatprep.subr.bf16.mxu0 0
      %4389 = vmatpush1.bf16.msra.mxu0 %v3666
      %4390 = vmatprep.subr.bf16.mxu0 0
      %4391 = vmatpush1.bf16.msra.mxu0 %v3669
      %4392 = vmatprep.subr.bf16.mxu0 0
      %4393 = vmatpush1.bf16.msra.mxu0 %v3672
      %4394 = vmatprep.subr.bf16.mxu0 0
      %4395 = vmatpush1.bf16.msra.mxu0 %v3675
      %4396 = vmatprep.subr.bf16.mxu0 0
      %4397 = vmatpush1.bf16.msra.mxu0 %v3678
      %4398 = vmatprep.subr.bf16.mxu0 0
      %4399 = vmatpush1.bf16.msra.mxu0 %v3681
      %4400 = vmatprep.subr.bf16.mxu0 0
      %4401 = vmatpush1.bf16.msra.mxu0 %v3684
      %4402 = vmatprep.subr.bf16.mxu0 0
      %4403 = vmatpush1.bf16.msra.mxu0 %v3687
      %4404 = vmatprep.subr.bf16.mxu0 0
      %4405 = vmatpush1.bf16.msra.mxu0 %v3690
      %4406 = vmatprep.subr.bf16.mxu0 0
      %4407 = vmatpush1.bf16.msra.mxu0 %v3693
      %4408 = vmatprep.subr.bf16.mxu0 0
      %4409 = vmatpush1.bf16.msra.mxu0 %v3696
      %4410 = vmatprep.mubr.bf16.mxu0 %v3038
      %4411 = vmatmul.mubr.bf16.gmra.mrb[0].mxu0 %v3037
      %v4412 = vpop.f32.mrb[0].mxu0
      %v4413 = vadd.f32 %v2996, %v4412
      %v4414 = vpop.f32.mrb[0].mxu0
      %v4415 = vpop.f32.mrb[0].mxu0
      %v4416 = vadd.f32 %v3001, %v4415
      %v4417 = vpop.f32.mrb[0].mxu0
      %4418 = vdwg.mxu0
      %4419 = vmatprep.subr.bf16.mxu0 0
      %4420 = vmatpush1.bf16.msra.mxu0 %v3699
      %4421 = vmatprep.subr.bf16.mxu0 0
      %4422 = vmatpush1.bf16.msra.mxu0 %v3702
      %4423 = vmatprep.subr.bf16.mxu0 0
      %4424 = vmatpush1.bf16.msra.mxu0 %v3705
      %4425 = vmatprep.subr.bf16.mxu0 0
      %4426 = vmatpush1.bf16.msra.mxu0 %v3708
      %4427 = vmatprep.subr.bf16.mxu0 0
      %4428 = vmatpush1.bf16.msra.mxu0 %v3711
      %4429 = vmatprep.subr.bf16.mxu0 0
      %4430 = vmatpush1.bf16.msra.mxu0 %v3714
      %4431 = vmatprep.subr.bf16.mxu0 0
      %4432 = vmatpush1.bf16.msra.mxu0 %v3717
      %4433 = vmatprep.subr.bf16.mxu0 0
      %4434 = vmatpush1.bf16.msra.mxu0 %v3720
      %4435 = vmatprep.subr.bf16.mxu0 0
      %4436 = vmatpush1.bf16.msra.mxu0 %v3723
      %4437 = vmatprep.subr.bf16.mxu0 0
      %4438 = vmatpush1.bf16.msra.mxu0 %v3726
      %4439 = vmatprep.subr.bf16.mxu0 0
      %4440 = vmatpush1.bf16.msra.mxu0 %v3729
      %4441 = vmatprep.subr.bf16.mxu0 0
      %4442 = vmatpush1.bf16.msra.mxu0 %v3732
      %4443 = vmatprep.subr.bf16.mxu0 0
      %4444 = vmatpush1.bf16.msra.mxu0 %v3735
      %4445 = vmatprep.subr.bf16.mxu0 0
      %4446 = vmatpush1.bf16.msra.mxu0 %v3738
      %4447 = vmatprep.subr.bf16.mxu0 0
      %4448 = vmatpush1.bf16.msra.mxu0 %v3741
      %4449 = vmatprep.subr.bf16.mxu0 0
      %4450 = vmatpush1.bf16.msra.mxu0 %v3744
      %4451 = vmatprep.mubr.bf16.mxu0 %v3040
      %4452 = vmatmul.mubr.bf16.gmra.mrb[0].mxu0 %v3039
      %v4453 = vpop.f32.mrb[0].mxu0
      %v4454 = vadd.f32 %v4413, %v4453
      %v4455 = vpop.f32.mrb[0].mxu0
      %v4456 = vpop.f32.mrb[0].mxu0
      %v4457 = vadd.f32 %v4416, %v4456
      %v4458 = vpop.f32.mrb[0].mxu0
      %4459 = vdwg.mxu0
      %4460 = vmatprep.subr.bf16.mxu0 0
      %4461 = vmatpush1.bf16.msra.mxu0 %v3747
      %4462 = vmatprep.subr.bf16.mxu0 0
      %4463 = vmatpush1.bf16.msra.mxu0 %v3750
      %4464 = vmatprep.subr.bf16.mxu0 0
      %4465 = vmatpush1.bf16.msra.mxu0 %v3753
      %4466 = vmatprep.subr.bf16.mxu0 0
      %4467 = vmatpush1.bf16.msra.mxu0 %v3756
      %4468 = vmatprep.subr.bf16.mxu0 0
      %4469 = vmatpush1.bf16.msra.mxu0 %v3759
      %4470 = vmatprep.subr.bf16.mxu0 0
      %4471 = vmatpush1.bf16.msra.mxu0 %v3762
      %4472 = vmatprep.subr.bf16.mxu0 0
      %4473 = vmatpush1.bf16.msra.mxu0 %v3765
      %4474 = vmatprep.subr.bf16.mxu0 0
      %4475 = vmatpush1.bf16.msra.mxu0 %v3687
      %4476 = vmatprep.subr.bf16.mxu0 0
      %4477 = vmatpush1.bf16.msra.mxu0 %v3690
      %4478 = vmatprep.subr.bf16.mxu0 0
      %4479 = vmatpush1.bf16.msra.mxu0 %v3693
      %4480 = vmatprep.subr.bf16.mxu0 0
      %4481 = vmatpush1.bf16.msra.mxu0 %v3768
      %4482 = vmatprep.subr.bf16.mxu0 0
      %4483 = vmatpush1.bf16.msra.mxu0 %v3771
      %4484 = vmatprep.subr.bf16.mxu0 0
      %4485 = vmatpush1.bf16.msra.mxu0 %v3774
      %4486 = vmatprep.subr.bf16.mxu0 0
      %4487 = vmatpush1.bf16.msra.mxu0 %v3777
      %4488 = vmatprep.subr.bf16.mxu0 0
      %4489 = vmatpush1.bf16.msra.mxu0 %v3780
      %4490 = vmatprep.subr.bf16.mxu0 0
      %4491 = vmatpush1.bf16.msra.mxu0 %v3783
      %4492 = vmatprep.mubr.bf16.mxu0 %v3042
      %4493 = vmatmul.mubr.bf16.gmra.mrb[0].mxu0 %v3041
      %v4494 = vpop.f32.mrb[0].mxu0
      %v4495 = vadd.f32 %v4454, %v4494
      %v4496 = vpop.f32.mrb[0].mxu0
      %v4497 = vpop.f32.mrb[0].mxu0
      %v4498 = vadd.f32 %v4457, %v4497
      %v4499 = vpop.f32.mrb[0].mxu0
      %4500 = vdwg.mxu0
      %4501 = vmatprep.subr.bf16.mxu0 0
      %4502 = vmatpush1.bf16.msra.mxu0 %v3786
      %4503 = vmatprep.subr.bf16.mxu0 0
      %4504 = vmatpush1.bf16.msra.mxu0 %v3789
      %4505 = vmatprep.subr.bf16.mxu0 0
      %4506 = vmatpush1.bf16.msra.mxu0 %v3792
      %4507 = vmatprep.subr.bf16.mxu0 0
      %4508 = vmatpush1.bf16.msra.mxu0 %v3795
      %4509 = vmatprep.subr.bf16.mxu0 0
      %4510 = vmatpush1.bf16.msra.mxu0 %v3798
      %4511 = vmatprep.subr.bf16.mxu0 0
      %4512 = vmatpush1.bf16.msra.mxu0 %v3801
      %4513 = vmatprep.subr.bf16.mxu0 0
      %4514 = vmatpush1.bf16.msra.mxu0 %v3804
      %4515 = vmatprep.subr.bf16.mxu0 0
      %4516 = vmatpush1.bf16.msra.mxu0 %v3807
      %4517 = vmatprep.subr.bf16.mxu0 0
      %4518 = vmatpush1.bf16.msra.mxu0 %v3810
      %4519 = vmatprep.subr.bf16.mxu0 0
      %4520 = vmatpush1.bf16.msra.mxu0 %v3813
      %4521 = vmatprep.subr.bf16.mxu0 0
      %4522 = vmatpush1.bf16.msra.mxu0 %v3816
      %4523 = vmatprep.subr.bf16.mxu0 0
      %4524 = vmatpush1.bf16.msra.mxu0 %v3819
      %4525 = vmatprep.subr.bf16.mxu0 0
      %4526 = vmatpush1.bf16.msra.mxu0 %v3822
      %4527 = vmatprep.subr.bf16.mxu0 0
      %4528 = vmatpush1.bf16.msra.mxu0 %v3825
      %4529 = vmatprep.subr.bf16.mxu0 0
      %4530 = vmatpush1.bf16.msra.mxu0 %v3828
      %4531 = vmatprep.subr.bf16.mxu0 0
      %4532 = vmatpush1.bf16.msra.mxu0 %v3831
      %4533 = vmatprep.mubr.bf16.mxu0 %v3044
      %4534 = vmatmul.mubr.bf16.gmra.mrb[0].mxu0 %v3043
      %v4535 = vpop.f32.mrb[0].mxu0
      %v4536 = vadd.f32 %v4495, %v4535
      %v4537 = vpop.f32.mrb[0].mxu0
      %v4538 = vpop.f32.mrb[0].mxu0
      %v4539 = vadd.f32 %v4498, %v4538
      %v4540 = vpop.f32.mrb[0].mxu0
      %4541 = vdwg.mxu0
      %4542 = vmatprep.subr.bf16.mxu0 0
      %4543 = vmatpush1.bf16.msra.mxu0 %v3834
      %4544 = vmatprep.subr.bf16.mxu0 0
      %4545 = vmatpush1.bf16.msra.mxu0 %v3837
      %4546 = vmatprep.subr.bf16.mxu0 0
      %4547 = vmatpush1.bf16.msra.mxu0 %v3840
      %4548 = vmatprep.subr.bf16.mxu0 0
      %4549 = vmatpush1.bf16.msra.mxu0 %v3843
      %4550 = vmatprep.subr.bf16.mxu0 0
      %4551 = vmatpush1.bf16.msra.mxu0 %v3846
      %4552 = vmatprep.subr.bf16.mxu0 0
      %4553 = vmatpush1.bf16.msra.mxu0 %v3849
      %4554 = vmatprep.subr.bf16.mxu0 0
      %4555 = vmatpush1.bf16.msra.mxu0 %v3852
      %4556 = vmatprep.subr.bf16.mxu0 0
      %4557 = vmatpush1.bf16.msra.mxu0 %v3855
      %4558 = vmatprep.subr.bf16.mxu0 0
      %4559 = vmatpush1.bf16.msra.mxu0 %v3858
      %4560 = vmatprep.subr.bf16.mxu0 0
      %4561 = vmatpush1.bf16.msra.mxu0 %v3861
      %4562 = vmatprep.subr.bf16.mxu0 0
      %4563 = vmatpush1.bf16.msra.mxu0 %v3864
      %4564 = vmatprep.subr.bf16.mxu0 0
      %4565 = vmatpush1.bf16.msra.mxu0 %v3867
      %4566 = vmatprep.subr.bf16.mxu0 0
      %4567 = vmatpush1.bf16.msra.mxu0 %v3870
      %4568 = vmatprep.subr.bf16.mxu0 0
      %4569 = vmatpush1.bf16.msra.mxu0 %v3873
      %4570 = vmatprep.subr.bf16.mxu0 0
      %4571 = vmatpush1.bf16.msra.mxu0 %v3876
      %4572 = vmatprep.subr.bf16.mxu0 0
      %4573 = vmatpush1.bf16.msra.mxu0 %v3879
      %4574 = vmatprep.mubr.bf16.mxu0 %v3046
      %4575 = vmatmul.mubr.bf16.gmra.mrb[0].mxu0 %v3045
      %v4576 = vpop.f32.mrb[0].mxu0
      %v4577 = vadd.f32 %v4536, %v4576
      %v4578 = vpop.f32.mrb[0].mxu0
      %v4579 = vpop.f32.mrb[0].mxu0
      %v4580 = vadd.f32 %v4539, %v4579
      %v4581 = vpop.f32.mrb[0].mxu0
      %4582 = vdwg.mxu0
      %4583 = vmatprep.subr.bf16.mxu0 0
      %4584 = vmatpush1.bf16.msra.mxu0 %v3882
      %4585 = vmatprep.subr.bf16.mxu0 0
      %4586 = vmatpush1.bf16.msra.mxu0 0
      %4587 = vmatprep.subr.bf16.mxu0 0
      %4588 = vmatpush1.bf16.msra.mxu0 0
      %4589 = vmatprep.subr.bf16.mxu0 0
      %4590 = vmatpush1.bf16.msra.mxu0 0
      %4591 = vmatprep.subr.bf16.mxu0 0
      %4592 = vmatpush1.bf16.msra.mxu0 0
      %4593 = vmatprep.subr.bf16.mxu0 0
      %4594 = vmatpush1.bf16.msra.mxu0 0
      %4595 = vmatprep.subr.bf16.mxu0 0
      %4596 = vmatpush1.bf16.msra.mxu0 0
      %4597 = vmatprep.subr.bf16.mxu0 0
      %4598 = vmatpush1.bf16.msra.mxu0 0
      %4599 = vmatprep.subr.bf16.mxu0 0
      %4600 = vmatpush1.bf16.msra.mxu0 0
      %4601 = vmatprep.subr.bf16.mxu0 0
      %4602 = vmatpush1.bf16.msra.mxu0 0
      %4603 = vmatprep.subr.bf16.mxu0 0
      %4604 = vmatpush1.bf16.msra.mxu0 0
      %4605 = vmatprep.subr.bf16.mxu0 0
      %4606 = vmatpush1.bf16.msra.mxu0 0
      %4607 = vmatprep.subr.bf16.mxu0 0
      %4608 = vmatpush1.bf16.msra.mxu0 0
      %4609 = vmatprep.subr.bf16.mxu0 0
      %4610 = vmatpush1.bf16.msra.mxu0 0
      %4611 = vmatprep.subr.bf16.mxu0 0
      %4612 = vmatpush1.bf16.msra.mxu0 0
      %4613 = vmatprep.subr.bf16.mxu0 0
      %4614 = vmatpush1.bf16.msra.mxu0 0
      %4615 = vmatprep.mubr.bf16.mxu0 0
      %4616 = vmatmul.mubr.bf16.gmra.mrb[0].mxu0 %v4118
      %v4617 = vpop.f32.mrb[0].mxu0
      %v4618 = vadd.f32 %v4577, %v4617
      %v4619 = vpop.f32.mrb[0].mxu0
      %v4620 = vpop.f32.mrb[0].mxu0
      %v4621 = vadd.f32 %v4580, %v4620
      %v4622 = vpop.f32.mrb[0].mxu0
      %4623 = vdwg.mxu0
      %v4624 = vmax.f32 %v4370, 0.0
      %v4625 = vmax.f32 %v4372, 0.0
      %v4626 = vmax.f32 %v4618, 0.0
      %v4627 = vmax.f32 %v4374, 0.0
      %v4628 = vmax.f32 %v4376, 0.0
      %v4629 = vmax.f32 %v4621, 0.0
      %v4630 = vmul.f32 %v4624, %v844
      %v4631 = vmul.f32 %v4625, %v848
      %v4632 = vmul.f32 %v4626, %v852
      %v4633 = vmul.f32 %v4627, %v844
      %v4634 = vmul.f32 %v4628, %v848
      %v4635 = vmul.f32 %v4629, %v852
      %v4636 = vadd.f32 %v4630, %v4631
      %v4637 = vadd.f32 %v4636, %v4632
      %4638 = vadd.xlane.f32.xlu0 %v4637
      %v4639 = vpop.xlane.xlu0 %4638
      %v4640 = vadd.f32 %v4633, %v4634
      %v4641 = vadd.f32 %v4640, %v4635
      %4642 = vadd.xlane.f32.xlu0 %v4641
      %v4643 = vpop.xlane.xlu0 %4642
      %v4644 = vmul.f32 %v4639, 0.00390625
      %v4645 = vmul.f32 %v4643, 0.00390625
      %v4646 = vld [vmem:[%s8] sm:$0xf]
      %v4647 = vld [vmem:[%s8 + $0x4] sm:$0xf]
      %v4648 = vld [vmem:[%s8 + $0x8] sm:$0x1]
      %v4649 = vpack.c.bf16 %v4645, %v4644
      %v4653 = vunpack.c.l.b16 %v4646
      %v4654 = vunpack.c.l.b16 %v4647
      %v4655 = vunpack.c.l.b16 %v4648
      %v4656 = vpack.c.b16 %v4654, %v4653
      %v4657 = vpack.c.b16 %v4655, %v4655
      %v4659 = vsel %vm746, %v4656, 0
      %v4662 = vsel %vm746, %v4657, 0
      %4664 = vmatprep.subr.bf16.mxu0 0
      %4665 = vmatpush1.bf16.msra.mxu0 %v4649
      %4666 = vmatprep.subr.bf16.mxu0 0
      %4667 = vmatpush1.bf16.msra.mxu0 0
      %4668 = vmatprep.subr.bf16.mxu0 0
      %4669 = vmatpush1.bf16.msra.mxu0 0
      %4670 = vmatprep.subr.bf16.mxu0 0
      %4671 = vmatpush1.bf16.msra.mxu0 0
      %4672 = vmatprep.subr.bf16.mxu0 0
      %4673 = vmatpush1.bf16.msra.mxu0 0
      %4674 = vmatprep.subr.bf16.mxu0 0
      %4675 = vmatpush1.bf16.msra.mxu0 0
      %4676 = vmatprep.subr.bf16.mxu0 0
      %4677 = vmatpush1.bf16.msra.mxu0 0
      %4678 = vmatprep.subr.bf16.mxu0 0
      %4679 = vmatpush1.bf16.msra.mxu0 0
      %4680 = vmatprep.subr.bf16.mxu0 0
      %4681 = vmatpush1.bf16.msra.mxu0 0
      %4682 = vmatprep.subr.bf16.mxu0 0
      %4683 = vmatpush1.bf16.msra.mxu0 0
      %4684 = vmatprep.subr.bf16.mxu0 0
      %4685 = vmatpush1.bf16.msra.mxu0 0
      %4686 = vmatprep.subr.bf16.mxu0 0
      %4687 = vmatpush1.bf16.msra.mxu0 0
      %4688 = vmatprep.subr.bf16.mxu0 0
      %4689 = vmatpush1.bf16.msra.mxu0 0
      %4690 = vmatprep.subr.bf16.mxu0 0
      %4691 = vmatpush1.bf16.msra.mxu0 0
      %4692 = vmatprep.subr.bf16.mxu0 0
      %4693 = vmatpush1.bf16.msra.mxu0 0
      %4694 = vmatprep.subr.bf16.mxu0 0
      %4695 = vmatpush1.bf16.msra.mxu0 0
      %4696 = vmatprep.mubr.bf16.mxu0 0
      %4697 = vmatmul.mubr.bf16.gmra.mrb[0].mxu0 %v4659
      %v4698 = vpop.f32.mrb[0].mxu0
      %v4699 = vadd.f32 0.0, %v4698
      %v4700 = vpop.f32.mrb[0].mxu0
      %v4701 = vpop.f32.mrb[0].mxu0
      %v4702 = vadd.f32 0.0, %v4701
      %v4703 = vpop.f32.mrb[0].mxu0
      %4704 = vmatprep.mubr.bf16.mxu0 0
      %4705 = vmatmul.mubr.bf16.gmra.mrb[0].mxu0 %v4662
      %v4706 = vpop.f32.mrb[0].mxu0
      %v4707 = vadd.f32 0.0, %v4706
      %v4708 = vpop.f32.mrb[0].mxu0
      %v4709 = vpop.f32.mrb[0].mxu0
      %v4710 = vpop.f32.mrb[0].mxu0
      %4711 = vdwg.mxu0
      %v4712 = vld [vmem:[%s9] sm:$0xff]
      %v4713 = vld [vmem:[%s9 + $0x8] sm:$0xff]
      %v4714 = vadd.f32 %v4699, %v4712
      %v4715 = vadd.f32 %v4702, %v4713
      %v4716 = vxor.u32 %v4714, 2147483648
      %v4717 = vxor.u32 %v4715, 2147483648
      %v4718 = vmul.f32 %v4716, 1.442695
      %v4719 = vpow.pop %v4718
      %v4720 = vmul.f32 %v4717, 1.442695
      %v4721 = vpow.pop %v4720
      %v4722 = vadd.f32 %v4719, 1.0
      %v4723 = vadd.f32 %v4721, 1.0
      %v4724 = vrcp.pop %v4722
      %v4725 = vmul.f32 1.0, %v4724
      %v4726 = vrcp.pop %v4723
      %v4727 = vmul.f32 1.0, %v4726
      %v4728 = vld [vmem:[%s10] sm:$0x3]
      %v4729 = vadd.f32 %v4707, %v4728
      %4731 = vset.pattern.permute.xlu0 0
      %4732 = vperm.xlu0 %4731, %v4725
      %v4733 = vpop.permute.xlu0 %4732
      %4736 = vset.pattern.permute.xlu0 0
      %4737 = vperm.xlu0 %4736, %v4727
      %v4738 = vpop.permute.xlu0 %4737
      %v4740 = vmul.f32 %v4624, %v4733
      %v4741 = vmul.f32 %v4625, %v4733
      %v4742 = vmul.f32 %v4626, %v4733
      %v4743 = vmul.f32 %v4627, %v4738
      %v4744 = vmul.f32 %v4628, %v4738
      %v4745 = vmul.f32 %v4629, %v4738
      %v4746 = vpack.c.bf16 %v4743, %v4740
      %v4747 = vpack.c.bf16 %v4744, %v4741
      %v4748 = vpack.c.bf16 %v4745, %v4742
      %v4749 = vld [vmem:[%s11] sm:$0x1]
      %v4750 = vld [vmem:[%s12] sm:$0x3]
      %4752 = vset.pattern.permute.xlu0 0
      %4753 = vperm.xlu0 %4752, %v4750
      %v4754 = vpop.permute.xlu0 %4753
      %v4757 = vsel %vm746, %v4749, 0
      %4759 = vmatprep.subr.bf16.mxu0 %v4747
      %4760 = vmatpush1.bf16.msra.mxu0 %v4746
      %4761 = vmatprep.subr.bf16.mxu0 0
      %4762 = vmatpush1.bf16.msra.mxu0 0
      %4763 = vmatprep.subr.bf16.mxu0 0
      %4764 = vmatpush1.bf16.msra.mxu0 0
      %4765 = vmatprep.subr.bf16.mxu0 0
      %4766 = vmatpush1.bf16.msra.mxu0 0
      %4767 = vmatprep.subr.bf16.mxu0 0
      %4768 = vmatpush1.bf16.msra.mxu0 0
      %4769 = vmatprep.subr.bf16.mxu0 0
      %4770 = vmatpush1.bf16.msra.mxu0 0
      %4771 = vmatprep.subr.bf16.mxu0 0
      %4772 = vmatpush1.bf16.msra.mxu0 0
      %4773 = vmatprep.subr.bf16.mxu0 0
      %4774 = vmatpush1.bf16.msra.mxu0 0
      %4775 = vmatprep.subr.bf16.mxu0 0
      %4776 = vmatpush1.bf16.msra.mxu0 0
      %4777 = vmatprep.subr.bf16.mxu0 0
      %4778 = vmatpush1.bf16.msra.mxu0 0
      %4779 = vmatprep.subr.bf16.mxu0 0
      %4780 = vmatpush1.bf16.msra.mxu0 0
      %4781 = vmatprep.subr.bf16.mxu0 0
      %4782 = vmatpush1.bf16.msra.mxu0 0
      %4783 = vmatprep.subr.bf16.mxu0 0
      %4784 = vmatpush1.bf16.msra.mxu0 0
      %4785 = vmatprep.subr.bf16.mxu0 0
      %4786 = vmatpush1.bf16.msra.mxu0 0
      %4787 = vmatprep.subr.bf16.mxu0 0
      %4788 = vmatpush1.bf16.msra.mxu0 0
      %4789 = vmatprep.subr.bf16.mxu0 0
      %4790 = vmatpush1.bf16.msra.mxu0 0
      %4791 = vmatprep.mubr.bf16.mxu0 0
      %4792 = vmatmul.mubr.bf16.gmra.mrb[0].mxu0 %v4757
      %v4793 = vpop.f32.mrb[0].mxu0
      %v4794 = vadd.f32 %v4754, %v4793
      %v4795 = vpop.f32.mrb[0].mxu0
      %v4796 = vadd.f32 %v4754, %v4795
      %v4797 = vpop.f32.mrb[0].mxu0
      %v4798 = vpop.f32.mrb[0].mxu0
      %4799 = vdwg.mxu0
      %4800 = vmatprep.subr.bf16.mxu0 0
      %4801 = vmatpush1.bf16.msra.mxu0 %v4748
      %4802 = vmatprep.subr.bf16.mxu0 0
      %4803 = vmatpush1.bf16.msra.mxu0 0
      %4804 = vmatprep.subr.bf16.mxu0 0
      %4805 = vmatpush1.bf16.msra.mxu0 0
      %4806 = vmatprep.subr.bf16.mxu0 0
      %4807 = vmatpush1.bf16.msra.mxu0 0
      %4808 = vmatprep.subr.bf16.mxu0 0
      %4809 = vmatpush1.bf16.msra.mxu0 0
      %4810 = vmatprep.subr.bf16.mxu0 0
      %4811 = vmatpush1.bf16.msra.mxu0 0
      %4812 = vmatprep.subr.bf16.mxu0 0
      %4813 = vmatpush1.bf16.msra.mxu0 0
      %4814 = vmatprep.subr.bf16.mxu0 0
      %4815 = vmatpush1.bf16.msra.mxu0 0
      %4816 = vmatprep.subr.bf16.mxu0 0
      %4817 = vmatpush1.bf16.msra.mxu0 0
      %4818 = vmatprep.subr.bf16.mxu0 0
      %4819 = vmatpush1.bf16.msra.mxu0 0
      %4820 = vmatprep.subr.bf16.mxu0 0
      %4821 = vmatpush1.bf16.msra.mxu0 0
      %4822 = vmatprep.subr.bf16.mxu0 0
      %4823 = vmatpush1.bf16.msra.mxu0 0
      %4824 = vmatprep.subr.bf16.mxu0 0
      %4825 = vmatpush1.bf16.msra.mxu0 0
      %4826 = vmatprep.subr.bf16.mxu0 0
      %4827 = vmatpush1.bf16.msra.mxu0 0
      %4828 = vmatprep.subr.bf16.mxu0 0
      %4829 = vmatpush1.bf16.msra.mxu0 0
      %4830 = vmatprep.subr.bf16.mxu0 0
      %4831 = vmatpush1.bf16.msra.mxu0 0
      %4832 = vmatprep.mubr.bf16.mxu0 0
      %4833 = vmatmul.mubr.bf16.gmra.mrb[0].mxu0 %v4757
      %v4834 = vpop.f32.mrb[0].mxu0
      %v4835 = vadd.f32 %v4754, %v4834
      %v4836 = vpop.f32.mrb[0].mxu0
      %v4837 = vpop.f32.mrb[0].mxu0
      %v4838 = vpop.f32.mrb[0].mxu0
      %4839 = vdwg.mxu0
      %4841 = vset.pattern.permute.xlu0 0
      %4842 = vperm.xlu0 %4841, %v4729
      %v4843 = vpop.permute.xlu0 %4842
      %v4847 = vcombine.low %v4794, %v4796
      %v4848 = vcombine.low %v4835, %v4843
      %v4850 = vunpack.c.l.s4 1983009808
      %v4851 = vunpack.c.0.s8 %v4850
      %v4852 = vlaneseq
      %v4853 = vshrl.u32 %v4852, 7
      %v4854 = vsub.s32 %v4851, %v4853
      %v4855 = vrot.slane %v4847, %v4854
      %v4857 = vunpack.c.l.s4 1983009808
      %v4858 = vunpack.c.0.s8 %v4857
      %v4859 = vlaneseq
      %v4860 = vshrl.u32 %v4859, 7
      %v4861 = vsub.s32 %v4858, %v4860
      %v4862 = vrot.slane %v4848, %v4861
      %v4863 = vcombine.low %v4855, %v4862
      %4865 = vst [vmem:[%s467] sm:$0xff] %v4863
      %p4866 = scmp.lt.s32.totalorder %s25, 1
      %s4867 = scalar_select %p4866, %s25, 1
      %s4868 = smul.addr %s4867, 4
      %s4869 = smul.addr %s4868, 2
      %s4870 = scalar_lea.vmem %s14, %s4869
      // Predicated region
      $region77: #{a_call__.1} parent=75 // pred_check
        %p4871 = pneg %p342
      $region78: #{a_call__.1} parent=75 // pred_check_branch
        %4873 = sbr.rel (%p4871) target = $region80
      $region79: #{a_call__.1} parent=75 // pred_region
        _
      $region80: #{a_call__.1} parent=75 // pred_fallthru
        _
    $region76: #{a_call__.1} parent=5 // pred_fallthru
      _
    %p4874 = scmp.le.s32.totalorder 2, %s20
    // Predicated region
    $region81: #{a_call__.1} parent=5 // pred_check
      %p4875 = pneg %p4874
    $region82: #{a_call__.1} parent=5 // pred_check_branch
      %4877 = sbr.rel (%p4875) target = $region84
    $region83: #{a_call__.1} parent=5 // pred_region
      %s4878 = ssub.s32 %s20, 2
      // Predicated region
      $region85: #{a_call__.1} parent=83 // pred_check
        %p4879 = pneg %p348
      $region86: #{a_call__.1} parent=83 // pred_check_branch
        %4881 = sbr.rel (%p4879) target = $region88
      $region87: #{a_call__.1} parent=83 // pred_region
        %p4882 = scmp.lt.s32.totalorder %s26, 1
        %s4883 = scalar_select %p4882, %s26, 1
        %s4884 = smul.addr %s4883, 4
        %s4885 = smul.addr %s4884, 2
        %s4886 = scalar_lea.vmem %s14, %s4885
      $region88: #{a_call__.1} parent=83 // pred_fallthru
        _
    $region84: #{a_call__.1} parent=5 // pred_fallthru
      _
  $region6: #{a_call__.1} parent=0 // loop_footer
    %s24 = sadd.s32 1, %s20
  $region7: #{a_call__.1} parent=0 // loop_footer_branch
    %19 = sbr.rel target = $region3
  $region8: #{a_call__.1} parent=0 // loop_exit
    _

</llo_original>
